<compile_context>
chip_gen: v7x
topology: tpu7x:2x2x1
jax: 0.10.0
libtpu: 0.0.40
codegen_flags: <defaults>
</compile_context>

<pallas_src>
import functools
import math

import numpy as np
import jax
import jax.numpy as jnp
from jax.experimental import pallas as pl
from jax.experimental.pallas import tpu as pltpu


_LANES = 128
# Scoped VMEM limit: fine for v5e/v6e/v7x at these block sizes; raise toward ~64-100 MiB on
# v6e (128 MiB physical) when using bm=256, cap around ~48 MiB on v7x (64 MiB physical).
_VMEM_LIMIT = 32 * 1024 * 1024


# ----------------------------- Pallas kernels ------------------------------

def _encoder_kernel(x_ref, *refs, b_blk, r_img, w2, num_layers):
    """Fused pixel-encoder conv stack for one block of `b_blk` images.

    Layout: activations are (rows, channels) with channels in lanes and the flattened
    (image, y, x) spatial index in rows (per-image row stride = r_img = H2*W2).  Each conv
    tap is a sublane-offset slice + dense (cin, cout) matmul.  Rows whose (y, x) fall
    outside the valid conv output (or that straddle an image boundary) hold garbage; the
    fc weight rows for those positions are zero, so they never contaminate the features.

    x_ref : (1, b_blk*r_img, 4*Cin) bf16 -- 2x2 pixel phases packed along lanes
            (the /255 normalisation is folded into the layer-0 weights).
    refs  : (w_0, b_0, ..., w_{L-1}, b_{L-1}, out_ref)
            w_0 : (4, 4*Cin, C) bf16  combined-phase layer-0 weights, row offsets {0,1,W2,W2+1}
            w_l : (9, C, C)     bf16  dense 3x3 tap weights, row offsets di*W2 + dj
            b_l : (1, C)        f32
    out   : (1, b_blk*r_img, C) bf16
    """
    out_ref = refs[-1]
    w_refs = refs[0:-1:2]
    b_refs = refs[1:-1:2]

    x = x_ref[0]                                           # (B*R, 4*Cin) bf16
    rows = b_blk * r_img

    # ---- layer 0: stride-2 3x3 conv == 4 combined-phase matmuls ----
    m = rows - (w2 + 1)
    offs0 = (0, 1, w2, w2 + 1)
    acc = jnp.dot(x[0:m], w_refs[0][0], preferred_element_type=jnp.float32)
    for t in range(1, 4):
        o = offs0[t]
        acc += jnp.dot(x[o:o + m], w_refs[0][t], preferred_element_type=jnp.float32)
    a = jnp.maximum(acc + b_refs[0][...], 0.0)             # ReLU, f32

    # ---- layers 1..L-1: stride-1 3x3 convs, 9 dense tap matmuls each ----
    for l in range(1, num_layers):
        a16 = a.astype(jnp.bfloat16)
        m = m - (2 * w2 + 2)
        acc = jnp.dot(a16[0:m], w_refs[l][0], preferred_element_type=jnp.float32)
        for t in range(1, 9):
            o = (t // 3) * w2 + (t % 3)
            acc += jnp.dot(a16[o:o + m], w_refs[l][t],
                           preferred_element_type=jnp.float32)
        a = jnp.maximum(acc + b_refs[l][...], 0.0)

    # pad back to b_blk*r_img rows (pad rows are invalid spatial positions whose fc weight
    # rows are zero) and write a single full-block lane-dense bf16 store.
    pad = rows - m
    out = jnp.concatenate([a, jnp.zeros((pad, a.shape[1]), jnp.float32)], axis=0)
    out_ref[0] = out.astype(out_ref.dtype)


def _head_kernel(f_ref, wfc_ref, bfc_ref, g_ref, be_ref,
                 w1_ref, b1_ref, w2_ref, b2_ref, w3_ref, b3_ref,
                 noise_ref, o_ref, *,
                 act_dim, log_std_min, log_std_max, ln_eps):
    """Fused fc -> LayerNorm+tanh+round -> trunk MLP -> squashed-Gaussian head.

    t3 weights/bias are zero-padded so mu lives in lanes [0,128) and pre-tanh log_std in
    lanes [128,256); reductions over the action dim are lane-masked.  The result is packed
    into a single (bm, 512) f32 slab [mu | pi | log_std | log_pi] and written in one store.
    """
    f = f_ref[...]                                          # bf16 features
    h = jnp.dot(f, wfc_ref[...], preferred_element_type=jnp.float32) + bfc_ref[...]

    # LayerNorm (biased variance, like torch) + tanh + entropy-bottleneck quantization
    # (eval-mode deterministic quantize with medians == 0: obs_Q = round(tanh(ln(h))))
    mean = jnp.mean(h, axis=-1, keepdims=True)
    var = jnp.mean(jnp.square(h - mean), axis=-1, keepdims=True)
    hn = (h - mean) * jax.lax.rsqrt(var + ln_eps)
    hn = hn * g_ref[...] + be_ref[...]
    q = jnp.round(jnp.tanh(hn))

    # trunk MLP (bf16 MXU operands, f32 accumulation / element-wise)
    t = jnp.dot(q.astype(jnp.bfloat16), w1_ref[...],
                preferred_element_type=jnp.float32) + b1_ref[...]
    t = jnp.maximum(t, 0.0)
    t = jnp.dot(t.astype(jnp.bfloat16), w2_ref[...],
                preferred_element_type=jnp.float32) + b2_ref[...]
    t = jnp.maximum(t, 0.0)
    mls = jnp.dot(t.astype(jnp.bfloat16), w3_ref[...],
                  preferred_element_type=jnp.float32) + b3_ref[...]   # (bm, 256)

    mu = mls[:, 0:_LANES]                                   # lane-tile aligned slices
    log_std = jnp.tanh(mls[:, _LANES:2 * _LANES])
    log_std = log_std_min + 0.5 * (log_std_max - log_std_min) * (log_std + 1.0)
    std = jnp.exp(log_std)

    noise = noise_ref[...]                                  # (bm, 128) f32, zero pad lanes
    pi = mu + noise * std

    lane = jax.lax.broadcasted_iota(jnp.int32, mu.shape, 1)
    valid = lane < act_dim

    # gaussian_logprob (lane-masked so pad lanes contribute nothing)
    residual = jnp.sum(jnp.where(valid, -0.5 * noise * noise - log_std, 0.0),
                       axis=-1, keepdims=True)
    log_pi = residual - 0.5 * np.log(2.0 * np.pi) * act_dim

    # squash
    mu_t = jnp.tanh(mu)                                     # pad lanes are exactly 0
    pi_t = jnp.tanh(pi)
    corr = jnp.where(valid,
                     jnp.log(jnp.maximum(1.0 - pi_t * pi_t, 0.0) + 1e-6), 0.0)
    log_pi = log_pi - jnp.sum(corr, axis=-1, keepdims=True)

    log_std_out = jnp.where(valid, log_std, 0.0)
    lp_blk = jnp.where(lane == 0, log_pi, 0.0)

    # single lane-dense full-width store: [mu | pi | log_std | log_pi] each 128 lanes wide
    o_ref[...] = jnp.concatenate([mu_t, pi_t, log_std_out, lp_blk], axis=1)


# ------------------------------ pallas wrappers ------------------------------

def _const_spec(shape):
    nd = len(shape)
    # TODO(synk): add pipeline_mode=pl.Buffered(1) on v7x (constant blocks need no 2x buffer).
    return pl.BlockSpec(shape, lambda i, _nd=nd: (0,) * _nd)


def encoder_pallas(x_packed, tap_w, tap_b, *, b_blk, r_img, w2):
    """x_packed: (NB, b_blk*r_img, 4*Cin) bf16 -> (NB, b_blk*r_img, C_last) bf16."""
    nb, rows, _ = x_packed.shape
    num_layers = len(tap_w)
    c_last = tap_b[-1].shape[-1]
    kernel = functools.partial(_encoder_kernel, b_blk=b_blk, r_img=r_img, w2=w2,
                               num_layers=num_layers)

    in_specs = [pl.BlockSpec((1, rows, x_packed.shape[2]), lambda i: (i, 0, 0))]
    inputs = [x_packed]
    for w, b in zip(tap_w, tap_b):
        in_specs += [_const_spec(w.shape), _const_spec(b.shape)]
        inputs += [w, b]

    # cost estimate for the dense-tap formulation (true conv arithmetic, weights counted once)
    m = rows - (w2 + 1)
    flops = nb * 4 * 2 * m * tap_w[0].shape[1] * tap_w[0].shape[2]
    for l in range(1, num_layers):
        m = m - (2 * w2 + 2)
        flops += nb * 9 * 2 * m * tap_w[l].shape[1] * tap_w[l].shape[2]
    bytes_acc = (x_packed.size * 2 + nb * rows * c_last * 2
                 + sum(int(w.size) * 2 for w in tap_w)
                 + sum(int(b.size) * 4 for b in tap_b))

    return pl.pallas_call(
        kernel,
        out_shape=jax.ShapeDtypeStruct((nb, rows, c_last), jnp.bfloat16),
        grid=(nb,),
        in_specs=in_specs,
        out_specs=pl.BlockSpec((1, rows, c_last), lambda i: (i, 0, 0)),
        compiler_params=pltpu.CompilerParams(
            dimension_semantics=("parallel",),
            vmem_limit_bytes=_VMEM_LIMIT),
        cost_estimate=pl.CostEstimate(flops=int(flops), transcendentals=0,
                                      bytes_accessed=int(bytes_acc)),
    )(*inputs)


def head_pallas(feats, noise_pad, p, act_dim, log_std_min, log_std_max):
    """feats: (M, flat) bf16, noise_pad: (M, 128) f32 -> (M, 512) f32 packed slab."""
    m, flat = feats.shape
    feat_dim = p["fc_w"].shape[-1]
    hid = p["t1_w"].shape[-1]
    out_width = 4 * _LANES

    # bm=128 fills the MXU M dim on v5e/v7x; raise to 256 on v6e for batch >= 256
    # (with bf16 feats and a raised vmem_limit).  Re-derive for the 64 MiB VMEM of v7x.
    bm = m if m <= 128 else 128
    grid = (pl.cdiv(m, bm),)

    kernel = functools.partial(
        _head_kernel, act_dim=act_dim,
        log_std_min=float(log_std_min), log_std_max=float(log_std_max), ln_eps=1e-5)

    in_specs = [
        pl.BlockSpec((bm, flat), lambda i: (i, 0)),
        _const_spec(p["fc_w"].shape), _const_spec(p["fc_b"].shape),
        _const_spec(p["ln_g"].shape), _const_spec(p["ln_b"].shape),
        _const_spec(p["t1_w"].shape), _const_spec(p["t1_b"].shape),
        _const_spec(p["t2_w"].shape), _const_spec(p["t2_b"].shape),
        _const_spec(p["t3_w"].shape), _const_spec(p["t3_b"].shape),
        pl.BlockSpec((bm, _LANES), lambda i: (i, 0)),
    ]

    flops = 2 * m * (flat * feat_dim + feat_dim * hid + hid * hid + hid * 2 * _LANES)
    transc = m * (feat_dim + 3 * _LANES + 8)
    bytes_acc = feats.size * 2 + noise_pad.size * 4 + m * out_width * 4
    for k in ("fc_w", "t1_w", "t2_w", "t3_w"):
        bytes_acc += int(p[k].size) * 2
    for k in ("fc_b", "ln_g", "ln_b", "t1_b", "t2_b", "t3_b"):
        bytes_acc += int(p[k].size) * 4

    return pl.pallas_call(
        kernel,
        out_shape=jax.ShapeDtypeStruct((m, out_width), jnp.float32),
        grid=grid,
        in_specs=in_specs,
        out_specs=pl.BlockSpec((bm, out_width), lambda i: (i, 0)),
        compiler_params=pltpu.CompilerParams(
            dimension_semantics=("parallel",),
            vmem_limit_bytes=_VMEM_LIMIT),
        cost_estimate=pl.CostEstimate(flops=int(flops), transcendentals=int(transc),
                                      bytes_accessed=int(bytes_acc)),
    )(feats, p["fc_w"], p["fc_b"], p["ln_g"], p["ln_b"],
      p["t1_w"], p["t1_b"], p["t2_w"], p["t2_b"], p["t3_w"], p["t3_b"], noise_pad)


# ------------------------------- glue helpers -------------------------------

def pack_obs_polyphase(obs_nchw, b_blk):
    """(N, C, H, W) pixels -> (NB, b_blk*H2*W2, 4*C) bf16 (2x2 phases packed along lanes)."""
    n, c, h, w = obs_nchw.shape
    assert h % 2 == 0 and w % 2 == 0
    h2, w2 = h // 2, w // 2
    x = jnp.transpose(obs_nchw, (0, 2, 3, 1))                              # NHWC
    x = x.reshape(n, h2, 2, w2, 2, c)
    x = jnp.transpose(x, (0, 1, 3, 2, 4, 5))                               # (n,h2,w2,ph,pw,c)
    x = x.reshape(n, h2 * w2, 4 * c)
    nb = -(-n // b_blk)
    if nb * b_blk != n:
        pad = jnp.zeros((nb * b_blk - n,) + x.shape[1:], x.dtype)
        x = jnp.concatenate([x, pad], axis=0)
    return x.reshape(nb, b_blk * h2 * w2, 4 * c).astype(jnp.bfloat16)


def conv0_phase_weights(w_oihw, scale=1.0):
    """(Cout, Cin, 3, 3) -> (4, 4*Cin, Cout) bf16 combined-phase weights (offsets 0,1,W2,W2+1)."""
    cout, cin, k, k2 = w_oihw.shape
    assert k == 3 and k2 == 3
    w = np.asarray(w_oihw, np.float32)
    ww = np.zeros((4, 4 * cin, cout), np.float32)
    for di in range(3):
        for dj in range(3):
            t = (di // 2) * 2 + (dj // 2)           # row-offset slot
            p = (di % 2) * 2 + (dj % 2)             # phase lane block
            ww[t, p * cin:(p + 1) * cin, :] += w[:, :, di, dj].T * scale
    return jnp.asarray(ww, jnp.bfloat16)


def conv_tap_weights(w_oihw):
    """(Cout, Cin, 3, 3) -> (9, Cin, Cout) bf16 dense tap weights."""
    cout, cin, k, k2 = w_oihw.shape
    assert k == 3 and k2 == 3
    w = np.asarray(w_oihw, np.float32)
    taps = [w[:, :, di, dj].T for di in range(3) for dj in range(3)]
    return jnp.asarray(np.stack(taps), jnp.bfloat16)


def pad_fc_weight(fc_w_in_out, c, oh, ow, w2, r_img):
    """fc rows (torch NCHW-flatten order) -> zero-padded (r_img*C, feat) rows matching the
    encoder's flat (y*W2 + x, channel) layout (garbage rows get zero weight)."""
    feat = fc_w_in_out.shape[1]
    w = np.asarray(fc_w_in_out, np.float32).reshape(c, oh, ow, feat)
    w = np.transpose(w, (1, 2, 0, 3))                                      # (oh, ow, c, feat)
    dst = np.zeros((r_img, c, feat), np.float32)
    rows = (np.arange(oh)[:, None] * w2 + np.arange(ow)[None, :]).reshape(-1)
    dst[rows] = w.reshape(oh * ow, c, feat)
    return jnp.asarray(dst.reshape(r_img * c, feat), jnp.bfloat16)


def pad_head_weight(w_in_out, bias, act_dim):
    """Pad t3 so mu -> lanes [0,128) and pre-tanh log_std -> lanes [128,256)."""
    hid = w_in_out.shape[0]
    w = np.asarray(w_in_out, np.float32)
    b = np.asarray(bias, np.float32)
    wp = np.zeros((hid, 2 * _LANES), np.float32)
    bp = np.zeros((1, 2 * _LANES), np.float32)
    wp[:, :act_dim] = w[:, :act_dim]
    wp[:, _LANES:_LANES + act_dim] = w[:, act_dim:2 * act_dim]
    bp[0, :act_dim] = b[:act_dim]
    bp[0, _LANES:_LANES + act_dim] = b[act_dim:2 * act_dim]
    return jnp.asarray(wp, jnp.bfloat16), jnp.asarray(bp, jnp.float32)


def orthogonal(key, shape, gain=1.0):
    return jax.nn.initializers.orthogonal(scale=gain)(key, shape, jnp.float32)


def init_conv(key, out_c, in_c, k):
    """weight_init for Conv2d: zeros except center tap orthogonal (gain=sqrt(2))."""
    w = jnp.zeros((out_c, in_c, k, k), jnp.float32)
    mid = k // 2
    center = orthogonal(key, (out_c, in_c), gain=math.sqrt(2.0))
    w = w.at[:, :, mid, mid].set(center)
    return w, jnp.zeros((out_c,), jnp.float32)


def init_linear(key, in_dim, out_dim):
    """weight_init for Linear: orthogonal weight (PyTorch (out,in)), zero bias."""
    w_oi = orthogonal(key, (out_dim, in_dim))
    return jnp.transpose(w_oi), jnp.zeros((out_dim,), jnp.float32)   # stored (in, out)


# ------------------------------ Actor forward -------------------------------

@functools.partial(jax.jit, static_argnames=("log_std_min", "log_std_max", "b_blk"))
def actor_forward(params, obs_nchw, noise, *, log_std_min, log_std_max, b_blk):
    n, c, h, w = obs_nchw.shape
    w2 = w // 2
    r_img = (h // 2) * w2
    act_dim = noise.shape[-1]

    # fused pixel encoder (one pallas_call, B_BLK images per grid step)
    x_packed = pack_obs_polyphase(obs_nchw.astype(jnp.float32), b_blk)
    enc = encoder_pallas(x_packed, params["tap_w"], params["tap_b"],
                         b_blk=b_blk, r_img=r_img, w2=w2)      # (NB, b_blk*r_img, C) bf16
    c_last = enc.shape[-1]
    n_pad = enc.shape[0] * b_blk
    feats = enc.reshape(n_pad, r_img * c_last)                 # contiguous reshape, bf16
    # TODO(synk): entropy_bottleneck likelihoods (learned CDF) are not computed; the Actor
    # forward only consumes the quantized features obs_Q (round, medians == 0).

    noise_pad = jnp.zeros((n_pad, _LANES), jnp.float32).at[:n, :act_dim].set(noise)

    # fused fc -> LayerNorm+tanh+round -> trunk -> squashed-Gaussian head (one pallas_call)
    slab = head_pallas(feats, noise_pad, params, act_dim, log_std_min, log_std_max)

    mu = slab[:n, 0:act_dim]
    pi = slab[:n, _LANES:_LANES + act_dim]
    log_std = slab[:n, 2 * _LANES:2 * _LANES + act_dim]
    log_pi = slab[:n, 3 * _LANES:3 * _LANES + 1]
    return mu, pi, log_pi, log_std


# ----------------------------------- main -----------------------------------

if __name__ == "__main__":
    # small but structurally faithful configuration
    batch = 2
    obs_shape = (4, 16, 16)          # (C, H, W), PyTorch NCHW convention
    action_dim = 6
    hidden_dim = 32
    feature_dim = 32
    num_layers = 2
    num_filters = 8
    log_std_min, log_std_max = -10.0, 2.0
    b_blk = 2                        # images per encoder grid step (use 8-16 in production)

    key = jax.random.PRNGKey(0)
    keys = jax.random.split(key, 12)

    c_in, H, W = obs_shape
    H2, W2 = H // 2, W // 2
    r_img = H2 * W2
    # encoder output spatial sizes: stride-2 3x3 conv, then (num_layers-1) stride-1 3x3 convs
    oh, ow = H2 - 1, W2 - 1
    for _ in range(1, num_layers):
        oh, ow = oh - 2, ow - 2
    flat_true = num_filters * oh * ow

    # ---- PyTorch-convention parameter init (matches weight_init) ----
    conv_w, conv_b = [], []
    w0, b0 = init_conv(keys[0], num_filters, c_in, 3)
    conv_w.append(w0); conv_b.append(b0)
    for i in range(1, num_layers):
        wi, bi = init_conv(keys[i], num_filters, num_filters, 3)
        conv_w.append(wi); conv_b.append(bi)

    fc_w, fc_b = init_linear(keys[4], flat_true, feature_dim)  # rows in NCHW-flatten order
    t1_w, t1_b = init_linear(keys[5], feature_dim, hidden_dim)
    t2_w, t2_b = init_linear(keys[6], hidden_dim, hidden_dim)
    t3_w, t3_b = init_linear(keys[7], hidden_dim, 2 * action_dim)

    # ---- kernel-ready parameter prep (init-time only, free at runtime) ----
    tap_w = [conv0_phase_weights(conv_w[0], scale=1.0 / 255.0)]
    tap_b = [conv_b[0].reshape(1, -1).astype(jnp.float32)]
    for l in range(1, num_layers):
        tap_w.append(conv_tap_weights(conv_w[l]))
        tap_b.append(conv_b[l].reshape(1, -1).astype(jnp.float32))

    t3_w_pad, t3_b_pad = pad_head_weight(t3_w, t3_b, action_dim)

    params = dict(
        tap_w=tap_w, tap_b=tap_b,
        fc_w=pad_fc_weight(fc_w, num_filters, oh, ow, W2, r_img),
        fc_b=fc_b.reshape(1, -1),
        ln_g=jnp.ones((1, feature_dim), jnp.float32),
        ln_b=jnp.zeros((1, feature_dim), jnp.float32),
        t1_w=t1_w.astype(jnp.bfloat16), t1_b=t1_b.reshape(1, -1),
        t2_w=t2_w.astype(jnp.bfloat16), t2_b=t2_b.reshape(1, -1),
        t3_w=t3_w_pad, t3_b=t3_b_pad,
    )

    obs = jax.random.uniform(keys[8], (batch,) + obs_shape, jnp.float32, 0.0, 255.0)
    noise = jax.random.normal(keys[9], (batch, action_dim), jnp.float32)  # randn_like(mu)

    mu, pi, log_pi, log_std = actor_forward(
        params, obs, noise,
        log_std_min=log_std_min, log_std_max=log_std_max, b_blk=b_blk)
    jax.block_until_ready((mu, pi, log_pi, log_std))

    assert mu.shape == (batch, action_dim)
    assert pi.shape == (batch, action_dim)
    assert log_pi.shape == (batch, 1)
    assert log_std.shape == (batch, action_dim)
    assert bool(jnp.all(jnp.isfinite(mu)))
    assert bool(jnp.all(jnp.isfinite(pi)))
    assert bool(jnp.all(jnp.isfinite(log_pi)))
    assert bool(jnp.all(jnp.isfinite(log_std)))
    assert bool(jnp.all(log_std >= log_std_min)) and bool(jnp.all(log_std <= log_std_max))

    print("KERNEL_OK")
</pallas_src>

<mosaic_0001>
module attributes {stable_mosaic.version = 11 : i64} {
  func.func @_encoder_kernel(%arg0: i32, %arg1: memref<1x128x16xbf16, #tpu.memory_space<vmem>>, %arg2: memref<4x16x8xbf16, #tpu.memory_space<vmem>>, %arg3: memref<1x8xf32, #tpu.memory_space<vmem>>, %arg4: memref<9x8x8xbf16, #tpu.memory_space<vmem>>, %arg5: memref<1x8xf32, #tpu.memory_space<vmem>>, %arg6: memref<1x128x8xbf16, #tpu.memory_space<vmem>>) attributes {dimension_semantics = [#tpu.dimension_semantics<parallel>], iteration_bounds = array<i64: 1>, scalar_prefetch = 0 : i64, scratch_operands = 0 : i64, tpu.core_type = #tpu.core_type<tc>, window_params = [{transform_indices = @transform_0, window_bounds = array<i64: 1, 128, 16>}, {pipeline_mode = #tpu.pipeline_mode<synchronous>, transform_indices = @transform_1, window_bounds = array<i64: 4, 16, 8>}, {pipeline_mode = #tpu.pipeline_mode<synchronous>, transform_indices = @transform_2, window_bounds = array<i64: 1, 8>}, {pipeline_mode = #tpu.pipeline_mode<synchronous>, transform_indices = @transform_3, window_bounds = array<i64: 9, 8, 8>}, {pipeline_mode = #tpu.pipeline_mode<synchronous>, transform_indices = @transform_4, window_bounds = array<i64: 1, 8>}, {transform_indices = @transform_5, window_bounds = array<i64: 1, 128, 8>}]} {
    %c0 = arith.constant 0 : index
    %c0_0 = arith.constant 0 : index
    %c0_1 = arith.constant 0 : index
    %0 = vector.load %arg1[%c0, %c0_0, %c0_1] : memref<1x128x16xbf16, #tpu.memory_space<vmem>>, vector<1x128x16xbf16>
    %1 = vector.shape_cast %0 : vector<1x128x16xbf16> to vector<128x16xbf16>
    %2 = vector.extract_strided_slice %1 {offsets = [0, 0], sizes = [119, 16], strides = [1, 1]} : vector<128x16xbf16> to vector<119x16xbf16>
    %c0_2 = arith.constant 0 : index
    %c0_3 = arith.constant 0 : index
    %c0_4 = arith.constant 0 : index
    %3 = vector.load %arg2[%c0_2, %c0_3, %c0_4] : memref<4x16x8xbf16, #tpu.memory_space<vmem>>, vector<1x16x8xbf16>
    %4 = vector.shape_cast %3 : vector<1x16x8xbf16> to vector<16x8xbf16>
    %cst = arith.constant dense<0.000000e+00> : vector<119x8xf32>
    %5 = tpu.matmul %2, %4, %cst {dimension_numbers = #tpu.dot_dimension_numbers<[1], [0], [0], [1], [0, 0, 1, 1], [], []>} : vector<119x16xbf16>, vector<16x8xbf16>, vector<119x8xf32> -> vector<119x8xf32>
    %6 = vector.extract_strided_slice %1 {offsets = [1, 0], sizes = [119, 16], strides = [1, 1]} : vector<128x16xbf16> to vector<119x16xbf16>
    %c1 = arith.constant 1 : index
    %c0_5 = arith.constant 0 : index
    %c0_6 = arith.constant 0 : index
    %7 = vector.load %arg2[%c1, %c0_5, %c0_6] : memref<4x16x8xbf16, #tpu.memory_space<vmem>>, vector<1x16x8xbf16>
    %8 = vector.shape_cast %7 : vector<1x16x8xbf16> to vector<16x8xbf16>
    %cst_7 = arith.constant dense<0.000000e+00> : vector<119x8xf32>
    %9 = tpu.matmul %6, %8, %cst_7 {dimension_numbers = #tpu.dot_dimension_numbers<[1], [0], [0], [1], [0, 0, 1, 1], [], []>} : vector<119x16xbf16>, vector<16x8xbf16>, vector<119x8xf32> -> vector<119x8xf32>
    %10 = arith.addf %5, %9 : vector<119x8xf32>
    %11 = vector.extract_strided_slice %1 {offsets = [8, 0], sizes = [119, 16], strides = [1, 1]} : vector<128x16xbf16> to vector<119x16xbf16>
    %c2 = arith.constant 2 : index
    %c0_8 = arith.constant 0 : index
    %c0_9 = arith.constant 0 : index
    %12 = vector.load %arg2[%c2, %c0_8, %c0_9] : memref<4x16x8xbf16, #tpu.memory_space<vmem>>, vector<1x16x8xbf16>
    %13 = vector.shape_cast %12 : vector<1x16x8xbf16> to vector<16x8xbf16>
    %cst_10 = arith.constant dense<0.000000e+00> : vector<119x8xf32>
    %14 = tpu.matmul %11, %13, %cst_10 {dimension_numbers = #tpu.dot_dimension_numbers<[1], [0], [0], [1], [0, 0, 1, 1], [], []>} : vector<119x16xbf16>, vector<16x8xbf16>, vector<119x8xf32> -> vector<119x8xf32>
    %15 = arith.addf %10, %14 : vector<119x8xf32>
    %16 = vector.extract_strided_slice %1 {offsets = [9, 0], sizes = [119, 16], strides = [1, 1]} : vector<128x16xbf16> to vector<119x16xbf16>
    %c3 = arith.constant 3 : index
    %c0_11 = arith.constant 0 : index
    %c0_12 = arith.constant 0 : index
    %17 = vector.load %arg2[%c3, %c0_11, %c0_12] : memref<4x16x8xbf16, #tpu.memory_space<vmem>>, vector<1x16x8xbf16>
    %18 = vector.shape_cast %17 : vector<1x16x8xbf16> to vector<16x8xbf16>
    %cst_13 = arith.constant dense<0.000000e+00> : vector<119x8xf32>
    %19 = tpu.matmul %16, %18, %cst_13 {dimension_numbers = #tpu.dot_dimension_numbers<[1], [0], [0], [1], [0, 0, 1, 1], [], []>} : vector<119x16xbf16>, vector<16x8xbf16>, vector<119x8xf32> -> vector<119x8xf32>
    %20 = arith.addf %15, %19 : vector<119x8xf32>
    %c0_14 = arith.constant 0 : index
    %c0_15 = arith.constant 0 : index
    %21 = vector.load %arg3[%c0_14, %c0_15] : memref<1x8xf32, #tpu.memory_space<vmem>>, vector<1x8xf32>
    %22 = vector.broadcast %21 : vector<1x8xf32> to vector<119x8xf32>
    %23 = arith.addf %20, %22 : vector<119x8xf32>
    %cst_16 = arith.constant 0.000000e+00 : f32
    %24 = vector.broadcast %cst_16 : f32 to vector<119x8xf32>
    %25 = arith.maximumf %23, %24 : vector<119x8xf32>
    %26 = arith.truncf %25 : vector<119x8xf32> to vector<119x8xbf16>
    %27 = vector.extract_strided_slice %26 {offsets = [0, 0], sizes = [101, 8], strides = [1, 1]} : vector<119x8xbf16> to vector<101x8xbf16>
    %c0_17 = arith.constant 0 : index
    %c0_18 = arith.constant 0 : index
    %c0_19 = arith.constant 0 : index
    %28 = vector.load %arg4[%c0_17, %c0_18, %c0_19] : memref<9x8x8xbf16, #tpu.memory_space<vmem>>, vector<1x8x8xbf16>
    %29 = vector.shape_cast %28 : vector<1x8x8xbf16> to vector<8x8xbf16>
    %cst_20 = arith.constant dense<0.000000e+00> : vector<101x8xf32>
    %30 = tpu.matmul %27, %29, %cst_20 {dimension_numbers = #tpu.dot_dimension_numbers<[1], [0], [0], [1], [0, 0, 1, 1], [], []>} : vector<101x8xbf16>, vector<8x8xbf16>, vector<101x8xf32> -> vector<101x8xf32>
    %31 = vector.extract_strided_slice %26 {offsets = [1, 0], sizes = [101, 8], strides = [1, 1]} : vector<119x8xbf16> to vector<101x8xbf16>
    %c1_21 = arith.constant 1 : index
    %c0_22 = arith.constant 0 : index
    %c0_23 = arith.constant 0 : index
    %32 = vector.load %arg4[%c1_21, %c0_22, %c0_23] : memref<9x8x8xbf16, #tpu.memory_space<vmem>>, vector<1x8x8xbf16>
    %33 = vector.shape_cast %32 : vector<1x8x8xbf16> to vector<8x8xbf16>
    %cst_24 = arith.constant dense<0.000000e+00> : vector<101x8xf32>
    %34 = tpu.matmul %31, %33, %cst_24 {dimension_numbers = #tpu.dot_dimension_numbers<[1], [0], [0], [1], [0, 0, 1, 1], [], []>} : vector<101x8xbf16>, vector<8x8xbf16>, vector<101x8xf32> -> vector<101x8xf32>
    %35 = arith.addf %30, %34 : vector<101x8xf32>
    %36 = vector.extract_strided_slice %26 {offsets = [2, 0], sizes = [101, 8], strides = [1, 1]} : vector<119x8xbf16> to vector<101x8xbf16>
    %c2_25 = arith.constant 2 : index
    %c0_26 = arith.constant 0 : index
    %c0_27 = arith.constant 0 : index
    %37 = vector.load %arg4[%c2_25, %c0_26, %c0_27] : memref<9x8x8xbf16, #tpu.memory_space<vmem>>, vector<1x8x8xbf16>
    %38 = vector.shape_cast %37 : vector<1x8x8xbf16> to vector<8x8xbf16>
    %cst_28 = arith.constant dense<0.000000e+00> : vector<101x8xf32>
    %39 = tpu.matmul %36, %38, %cst_28 {dimension_numbers = #tpu.dot_dimension_numbers<[1], [0], [0], [1], [0, 0, 1, 1], [], []>} : vector<101x8xbf16>, vector<8x8xbf16>, vector<101x8xf32> -> vector<101x8xf32>
    %40 = arith.addf %35, %39 : vector<101x8xf32>
    %41 = vector.extract_strided_slice %26 {offsets = [8, 0], sizes = [101, 8], strides = [1, 1]} : vector<119x8xbf16> to vector<101x8xbf16>
    %c3_29 = arith.constant 3 : index
    %c0_30 = arith.constant 0 : index
    %c0_31 = arith.constant 0 : index
    %42 = vector.load %arg4[%c3_29, %c0_30, %c0_31] : memref<9x8x8xbf16, #tpu.memory_space<vmem>>, vector<1x8x8xbf16>
    %43 = vector.shape_cast %42 : vector<1x8x8xbf16> to vector<8x8xbf16>
    %cst_32 = arith.constant dense<0.000000e+00> : vector<101x8xf32>
    %44 = tpu.matmul %41, %43, %cst_32 {dimension_numbers = #tpu.dot_dimension_numbers<[1], [0], [0], [1], [0, 0, 1, 1], [], []>} : vector<101x8xbf16>, vector<8x8xbf16>, vector<101x8xf32> -> vector<101x8xf32>
    %45 = arith.addf %40, %44 : vector<101x8xf32>
    %46 = vector.extract_strided_slice %26 {offsets = [9, 0], sizes = [101, 8], strides = [1, 1]} : vector<119x8xbf16> to vector<101x8xbf16>
    %c4 = arith.constant 4 : index
    %c0_33 = arith.constant 0 : index
    %c0_34 = arith.constant 0 : index
    %47 = vector.load %arg4[%c4, %c0_33, %c0_34] : memref<9x8x8xbf16, #tpu.memory_space<vmem>>, vector<1x8x8xbf16>
    %48 = vector.shape_cast %47 : vector<1x8x8xbf16> to vector<8x8xbf16>
    %cst_35 = arith.constant dense<0.000000e+00> : vector<101x8xf32>
    %49 = tpu.matmul %46, %48, %cst_35 {dimension_numbers = #tpu.dot_dimension_numbers<[1], [0], [0], [1], [0, 0, 1, 1], [], []>} : vector<101x8xbf16>, vector<8x8xbf16>, vector<101x8xf32> -> vector<101x8xf32>
    %50 = arith.addf %45, %49 : vector<101x8xf32>
    %51 = vector.extract_strided_slice %26 {offsets = [10, 0], sizes = [101, 8], strides = [1, 1]} : vector<119x8xbf16> to vector<101x8xbf16>
    %c5 = arith.constant 5 : index
    %c0_36 = arith.constant 0 : index
    %c0_37 = arith.constant 0 : index
    %52 = vector.load %arg4[%c5, %c0_36, %c0_37] : memref<9x8x8xbf16, #tpu.memory_space<vmem>>, vector<1x8x8xbf16>
    %53 = vector.shape_cast %52 : vector<1x8x8xbf16> to vector<8x8xbf16>
    %cst_38 = arith.constant dense<0.000000e+00> : vector<101x8xf32>
    %54 = tpu.matmul %51, %53, %cst_38 {dimension_numbers = #tpu.dot_dimension_numbers<[1], [0], [0], [1], [0, 0, 1, 1], [], []>} : vector<101x8xbf16>, vector<8x8xbf16>, vector<101x8xf32> -> vector<101x8xf32>
    %55 = arith.addf %50, %54 : vector<101x8xf32>
    %56 = vector.extract_strided_slice %26 {offsets = [16, 0], sizes = [101, 8], strides = [1, 1]} : vector<119x8xbf16> to vector<101x8xbf16>
    %c6 = arith.constant 6 : index
    %c0_39 = arith.constant 0 : index
    %c0_40 = arith.constant 0 : index
    %57 = vector.load %arg4[%c6, %c0_39, %c0_40] : memref<9x8x8xbf16, #tpu.memory_space<vmem>>, vector<1x8x8xbf16>
    %58 = vector.shape_cast %57 : vector<1x8x8xbf16> to vector<8x8xbf16>
    %cst_41 = arith.constant dense<0.000000e+00> : vector<101x8xf32>
    %59 = tpu.matmul %56, %58, %cst_41 {dimension_numbers = #tpu.dot_dimension_numbers<[1], [0], [0], [1], [0, 0, 1, 1], [], []>} : vector<101x8xbf16>, vector<8x8xbf16>, vector<101x8xf32> -> vector<101x8xf32>
    %60 = arith.addf %55, %59 : vector<101x8xf32>
    %61 = vector.extract_strided_slice %26 {offsets = [17, 0], sizes = [101, 8], strides = [1, 1]} : vector<119x8xbf16> to vector<101x8xbf16>
    %c7 = arith.constant 7 : index
    %c0_42 = arith.constant 0 : index
    %c0_43 = arith.constant 0 : index
    %62 = vector.load %arg4[%c7, %c0_42, %c0_43] : memref<9x8x8xbf16, #tpu.memory_space<vmem>>, vector<1x8x8xbf16>
    %63 = vector.shape_cast %62 : vector<1x8x8xbf16> to vector<8x8xbf16>
    %cst_44 = arith.constant dense<0.000000e+00> : vector<101x8xf32>
    %64 = tpu.matmul %61, %63, %cst_44 {dimension_numbers = #tpu.dot_dimension_numbers<[1], [0], [0], [1], [0, 0, 1, 1], [], []>} : vector<101x8xbf16>, vector<8x8xbf16>, vector<101x8xf32> -> vector<101x8xf32>
    %65 = arith.addf %60, %64 : vector<101x8xf32>
    %66 = vector.extract_strided_slice %26 {offsets = [18, 0], sizes = [101, 8], strides = [1, 1]} : vector<119x8xbf16> to vector<101x8xbf16>
    %c8 = arith.constant 8 : index
    %c0_45 = arith.constant 0 : index
    %c0_46 = arith.constant 0 : index
    %67 = vector.load %arg4[%c8, %c0_45, %c0_46] : memref<9x8x8xbf16, #tpu.memory_space<vmem>>, vector<1x8x8xbf16>
    %68 = vector.shape_cast %67 : vector<1x8x8xbf16> to vector<8x8xbf16>
    %cst_47 = arith.constant dense<0.000000e+00> : vector<101x8xf32>
    %69 = tpu.matmul %66, %68, %cst_47 {dimension_numbers = #tpu.dot_dimension_numbers<[1], [0], [0], [1], [0, 0, 1, 1], [], []>} : vector<101x8xbf16>, vector<8x8xbf16>, vector<101x8xf32> -> vector<101x8xf32>
    %70 = arith.addf %65, %69 : vector<101x8xf32>
    %c0_48 = arith.constant 0 : index
    %c0_49 = arith.constant 0 : index
    %71 = vector.load %arg5[%c0_48, %c0_49] : memref<1x8xf32, #tpu.memory_space<vmem>>, vector<1x8xf32>
    %72 = vector.broadcast %71 : vector<1x8xf32> to vector<101x8xf32>
    %73 = arith.addf %70, %72 : vector<101x8xf32>
    %cst_50 = arith.constant 0.000000e+00 : f32
    %74 = vector.broadcast %cst_50 : f32 to vector<101x8xf32>
    %75 = arith.maximumf %73, %74 : vector<101x8xf32>
    %cst_51 = arith.constant 0.000000e+00 : f32
    %76 = vector.broadcast %cst_51 : f32 to vector<27x8xf32>
    %77 = tpu.concatenate %75, %76 in 0 : vector<101x8xf32>, vector<27x8xf32> -> vector<128x8xf32>
    %78 = arith.truncf %77 : vector<128x8xf32> to vector<128x8xbf16>
    %c0_52 = arith.constant 0 : index
    %c0_53 = arith.constant 0 : index
    %c0_54 = arith.constant 0 : index
    %79 = vector.load %arg6[%c0_52, %c0_53, %c0_54] : memref<1x128x8xbf16, #tpu.memory_space<vmem>>, vector<1x128x8xbf16>
    %80 = vector.shape_cast %79 : vector<1x128x8xbf16> to vector<128x8xbf16>
    %81 = vector.shape_cast %78 : vector<128x8xbf16> to vector<1x128x8xbf16>
    tpu.vector_store %arg6[%c0_52, %c0_53, %c0_54], %81 {strides = array<i32>} : memref<1x128x8xbf16, #tpu.memory_space<vmem>>, vector<1x128x8xbf16>,
    return
  }
  func.func @transform_0(%arg0: i32) -> (i32, i32, i32) {
    %c0_i32 = arith.constant 0 : i32
    %c0_i32_0 = arith.constant 0 : i32
    %c0_i32_1 = arith.constant 0 : i32
    return %arg0, %c0_i32, %c0_i32_0 : i32, i32, i32
  }
  func.func @transform_1(%arg0: i32) -> (i32, i32, i32) {
    %c0_i32 = arith.constant 0 : i32
    %c0_i32_0 = arith.constant 0 : i32
    %c0_i32_1 = arith.constant 0 : i32
    %c0_i32_2 = arith.constant 0 : i32
    return %c0_i32, %c0_i32_0, %c0_i32_1 : i32, i32, i32
  }
  func.func @transform_2(%arg0: i32) -> (i32, i32) {
    %c0_i32 = arith.constant 0 : i32
    %c0_i32_0 = arith.constant 0 : i32
    %c0_i32_1 = arith.constant 0 : i32
    return %c0_i32, %c0_i32_0 : i32, i32
  }
  func.func @transform_3(%arg0: i32) -> (i32, i32, i32) {
    %c0_i32 = arith.constant 0 : i32
    %c0_i32_0 = arith.constant 0 : i32
    %c0_i32_1 = arith.constant 0 : i32
    %c0_i32_2 = arith.constant 0 : i32
    return %c0_i32, %c0_i32_0, %c0_i32_1 : i32, i32, i32
  }
  func.func @transform_4(%arg0: i32) -> (i32, i32) {
    %c0_i32 = arith.constant 0 : i32
    %c0_i32_0 = arith.constant 0 : i32
    %c0_i32_1 = arith.constant 0 : i32
    return %c0_i32, %c0_i32_0 : i32, i32
  }
  func.func @transform_5(%arg0: i32) -> (i32, i32, i32) {
    %c0_i32 = arith.constant 0 : i32
    %c0_i32_0 = arith.constant 0 : i32
    %c0_i32_1 = arith.constant 0 : i32
    return %arg0, %c0_i32, %c0_i32_0 : i32, i32, i32
  }
}

module attributes {stable_mosaic.version = 11 : i64} {
  func.func @_head_kernel(%arg0: i32, %arg1: memref<2x512xbf16, #tpu.memory_space<vmem>>, %arg2: memref<512x32xbf16, #tpu.memory_space<vmem>>, %arg3: memref<1x32xf32, #tpu.memory_space<vmem>>, %arg4: memref<1x32xf32, #tpu.memory_space<vmem>>, %arg5: memref<1x32xf32, #tpu.memory_space<vmem>>, %arg6: memref<32x32xbf16, #tpu.memory_space<vmem>>, %arg7: memref<1x32xf32, #tpu.memory_space<vmem>>, %arg8: memref<32x32xbf16, #tpu.memory_space<vmem>>, %arg9: memref<1x32xf32, #tpu.memory_space<vmem>>, %arg10: memref<32x256xbf16, #tpu.memory_space<vmem>>, %arg11: memref<1x256xf32, #tpu.memory_space<vmem>>, %arg12: memref<2x128xf32, #tpu.memory_space<vmem>>, %arg13: memref<2x512xf32, #tpu.memory_space<vmem>>) attributes {dimension_semantics = [#tpu.dimension_semantics<parallel>], iteration_bounds = array<i64: 1>, scalar_prefetch = 0 : i64, scratch_operands = 0 : i64, tpu.core_type = #tpu.core_type<tc>, window_params = [{transform_indices = @transform_0, window_bounds = array<i64: 2, 512>}, {pipeline_mode = #tpu.pipeline_mode<synchronous>, transform_indices = @transform_1, window_bounds = array<i64: 512, 32>}, {pipeline_mode = #tpu.pipeline_mode<synchronous>, transform_indices = @transform_2, window_bounds = array<i64: 1, 32>}, {pipeline_mode = #tpu.pipeline_mode<synchronous>, transform_indices = @transform_3, window_bounds = array<i64: 1, 32>}, {pipeline_mode = #tpu.pipeline_mode<synchronous>, transform_indices = @transform_4, window_bounds = array<i64: 1, 32>}, {pipeline_mode = #tpu.pipeline_mode<synchronous>, transform_indices = @transform_5, window_bounds = array<i64: 32, 32>}, {pipeline_mode = #tpu.pipeline_mode<synchronous>, transform_indices = @transform_6, window_bounds = array<i64: 1, 32>}, {pipeline_mode = #tpu.pipeline_mode<synchronous>, transform_indices = @transform_7, window_bounds = array<i64: 32, 32>}, {pipeline_mode = #tpu.pipeline_mode<synchronous>, transform_indices = @transform_8, window_bounds = array<i64: 1, 32>}, {pipeline_mode = #tpu.pipeline_mode<synchronous>, transform_indices = @transform_9, window_bounds = array<i64: 32, 256>}, {pipeline_mode = #tpu.pipeline_mode<synchronous>, transform_indices = @transform_10, window_bounds = array<i64: 1, 256>}, {transform_indices = @transform_11, window_bounds = array<i64: 2, 128>}, {transform_indices = @transform_12, window_bounds = array<i64: 2, 512>}]} {
    %c0 = arith.constant 0 : index
    %c0_0 = arith.constant 0 : index
    %0 = vector.load %arg1[%c0, %c0_0] : memref<2x512xbf16, #tpu.memory_space<vmem>>, vector<2x512xbf16>
    %c0_1 = arith.constant 0 : index
    %c0_2 = arith.constant 0 : index
    %1 = vector.load %arg2[%c0_1, %c0_2] : memref<512x32xbf16, #tpu.memory_space<vmem>>, vector<512x32xbf16>
    %cst = arith.constant dense<0.000000e+00> : vector<2x32xf32>
    %2 = tpu.matmul %0, %1, %cst {dimension_numbers = #tpu.dot_dimension_numbers<[1], [0], [0], [1], [0, 0, 1, 1], [], []>} : vector<2x512xbf16>, vector<512x32xbf16>, vector<2x32xf32> -> vector<2x32xf32>
    %c0_3 = arith.constant 0 : index
    %c0_4 = arith.constant 0 : index
    %3 = vector.load %arg3[%c0_3, %c0_4] : memref<1x32xf32, #tpu.memory_space<vmem>>, vector<1x32xf32>
    %4 = vector.broadcast %3 : vector<1x32xf32> to vector<2x32xf32>
    %5 = arith.addf %2, %4 : vector<2x32xf32>
    %cst_5 = arith.constant dense<0.000000e+00> : vector<2xf32>
    %6 = vector.multi_reduction <add>, %5, %cst_5 [1] : vector<2x32xf32> to vector<2xf32>
    %7 = vector.shape_cast %6 : vector<2xf32> to vector<2x1xf32>
    %cst_6 = arith.constant 3.200000e+01 : f32
    %8 = vector.broadcast %cst_6 : f32 to vector<2x1xf32>
    %9 = arith.divf %7, %8 : vector<2x1xf32>
    %10 = vector.broadcast %9 : vector<2x1xf32> to vector<2x32xf32>
    %11 = arith.subf %5, %10 : vector<2x32xf32>
    %12 = arith.mulf %11, %11 : vector<2x32xf32>
    %cst_7 = arith.constant dense<0.000000e+00> : vector<2xf32>
    %13 = vector.multi_reduction <add>, %12, %cst_7 [1] : vector<2x32xf32> to vector<2xf32>
    %14 = vector.shape_cast %13 : vector<2xf32> to vector<2x1xf32>
    %cst_8 = arith.constant 3.200000e+01 : f32
    %15 = vector.broadcast %cst_8 : f32 to vector<2x1xf32>
    %16 = arith.divf %14, %15 : vector<2x1xf32>
    %17 = vector.broadcast %9 : vector<2x1xf32> to vector<2x32xf32>
    %18 = arith.subf %5, %17 : vector<2x32xf32>
    %cst_9 = arith.constant 9.99999974E-6 : f32
    %19 = vector.broadcast %cst_9 : f32 to vector<2x1xf32>
    %20 = arith.addf %16, %19 : vector<2x1xf32>
    %21 = math.rsqrt %20 : vector<2x1xf32>
    %22 = vector.broadcast %21 : vector<2x1xf32> to vector<2x32xf32>
    %23 = arith.mulf %18, %22 : vector<2x32xf32>
    %c0_10 = arith.constant 0 : index
    %c0_11 = arith.constant 0 : index
    %24 = vector.load %arg4[%c0_10, %c0_11] : memref<1x32xf32, #tpu.memory_space<vmem>>, vector<1x32xf32>
    %25 = vector.broadcast %24 : vector<1x32xf32> to vector<2x32xf32>
    %26 = arith.mulf %23, %25 : vector<2x32xf32>
    %c0_12 = arith.constant 0 : index
    %c0_13 = arith.constant 0 : index
    %27 = vector.load %arg5[%c0_12, %c0_13] : memref<1x32xf32, #tpu.memory_space<vmem>>, vector<1x32xf32>
    %28 = vector.broadcast %27 : vector<1x32xf32> to vector<2x32xf32>
    %29 = arith.addf %26, %28 : vector<2x32xf32>
    %30 = math.tanh %29 : vector<2x32xf32>
    %31 = math.roundeven %30 : vector<2x32xf32>
    %32 = arith.truncf %31 : vector<2x32xf32> to vector<2x32xbf16>
    %c0_14 = arith.constant 0 : index
    %c0_15 = arith.constant 0 : index
    %33 = vector.load %arg6[%c0_14, %c0_15] : memref<32x32xbf16, #tpu.memory_space<vmem>>, vector<32x32xbf16>
    %cst_16 = arith.constant dense<0.000000e+00> : vector<2x32xf32>
    %34 = tpu.matmul %32, %33, %cst_16 {dimension_numbers = #tpu.dot_dimension_numbers<[1], [0], [0], [1], [0, 0, 1, 1], [], []>} : vector<2x32xbf16>, vector<32x32xbf16>, vector<2x32xf32> -> vector<2x32xf32>
    %c0_17 = arith.constant 0 : index
    %c0_18 = arith.constant 0 : index
    %35 = vector.load %arg7[%c0_17, %c0_18] : memref<1x32xf32, #tpu.memory_space<vmem>>, vector<1x32xf32>
    %36 = vector.broadcast %35 : vector<1x32xf32> to vector<2x32xf32>
    %37 = arith.addf %34, %36 : vector<2x32xf32>
    %cst_19 = arith.constant 0.000000e+00 : f32
    %38 = vector.broadcast %cst_19 : f32 to vector<2x32xf32>
    %39 = arith.maximumf %37, %38 : vector<2x32xf32>
    %40 = arith.truncf %39 : vector<2x32xf32> to vector<2x32xbf16>
    %c0_20 = arith.constant 0 : index
    %c0_21 = arith.constant 0 : index
    %41 = vector.load %arg8[%c0_20, %c0_21] : memref<32x32xbf16, #tpu.memory_space<vmem>>, vector<32x32xbf16>
    %cst_22 = arith.constant dense<0.000000e+00> : vector<2x32xf32>
    %42 = tpu.matmul %40, %41, %cst_22 {dimension_numbers = #tpu.dot_dimension_numbers<[1], [0], [0], [1], [0, 0, 1, 1], [], []>} : vector<2x32xbf16>, vector<32x32xbf16>, vector<2x32xf32> -> vector<2x32xf32>
    %c0_23 = arith.constant 0 : index
    %c0_24 = arith.constant 0 : index
    %43 = vector.load %arg9[%c0_23, %c0_24] : memref<1x32xf32, #tpu.memory_space<vmem>>, vector<1x32xf32>
    %44 = vector.broadcast %43 : vector<1x32xf32> to vector<2x32xf32>
    %45 = arith.addf %42, %44 : vector<2x32xf32>
    %cst_25 = arith.constant 0.000000e+00 : f32
    %46 = vector.broadcast %cst_25 : f32 to vector<2x32xf32>
    %47 = arith.maximumf %45, %46 : vector<2x32xf32>
    %48 = arith.truncf %47 : vector<2x32xf32> to vector<2x32xbf16>
    %c0_26 = arith.constant 0 : index
    %c0_27 = arith.constant 0 : index
    %49 = vector.load %arg10[%c0_26, %c0_27] : memref<32x256xbf16, #tpu.memory_space<vmem>>, vector<32x256xbf16>
    %cst_28 = arith.constant dense<0.000000e+00> : vector<2x256xf32>
    %50 = tpu.matmul %48, %49, %cst_28 {dimension_numbers = #tpu.dot_dimension_numbers<[1], [0], [0], [1], [0, 0, 1, 1], [], []>} : vector<2x32xbf16>, vector<32x256xbf16>, vector<2x256xf32> -> vector<2x256xf32>
    %c0_29 = arith.constant 0 : index
    %c0_30 = arith.constant 0 : index
    %51 = vector.load %arg11[%c0_29, %c0_30] : memref<1x256xf32, #tpu.memory_space<vmem>>, vector<1x256xf32>
    %52 = vector.broadcast %51 : vector<1x256xf32> to vector<2x256xf32>
    %53 = arith.addf %50, %52 : vector<2x256xf32>
    %54 = vector.extract_strided_slice %53 {offsets = [0, 0], sizes = [2, 128], strides = [1, 1]} : vector<2x256xf32> to vector<2x128xf32>
    %55 = vector.extract_strided_slice %53 {offsets = [0, 128], sizes = [2, 128], strides = [1, 1]} : vector<2x256xf32> to vector<2x128xf32>
    %56 = math.tanh %55 : vector<2x128xf32>
    %cst_31 = arith.constant 1.000000e+00 : f32
    %57 = vector.broadcast %cst_31 : f32 to vector<2x128xf32>
    %58 = arith.addf %56, %57 : vector<2x128xf32>
    %cst_32 = arith.constant 6.000000e+00 : f32
    %59 = vector.broadcast %cst_32 : f32 to vector<2x128xf32>
    %60 = arith.mulf %59, %58 : vector<2x128xf32>
    %cst_33 = arith.constant -1.000000e+01 : f32
    %61 = vector.broadcast %cst_33 : f32 to vector<2x128xf32>
    %62 = arith.addf %61, %60 : vector<2x128xf32>
    %63 = math.exp %62 : vector<2x128xf32>
    %c0_34 = arith.constant 0 : index
    %c0_35 = arith.constant 0 : index
    %64 = vector.load %arg12[%c0_34, %c0_35] : memref<2x128xf32, #tpu.memory_space<vmem>>, vector<2x128xf32>
    %65 = arith.mulf %64, %63 : vector<2x128xf32>
    %66 = arith.addf %54, %65 : vector<2x128xf32>
    %67 = tpu.iota {dimensions = array<i32: 1>} : vector<2x128xi32>
    %c6_i32 = arith.constant 6 : i32
    %68 = vector.broadcast %c6_i32 : i32 to vector<2x128xi32>
    %69 = arith.cmpi slt, %67, %68 : vector<2x128xi32>
    %cst_36 = arith.constant -5.000000e-01 : f32
    %70 = vector.broadcast %cst_36 : f32 to vector<2x128xf32>
    %71 = arith.mulf %70, %64 : vector<2x128xf32>
    %72 = arith.mulf %71, %64 : vector<2x128xf32>
    %73 = arith.subf %72, %62 : vector<2x128xf32>
    %cst_37 = arith.constant 0.000000e+00 : f32
    %74 = vector.broadcast %cst_37 : f32 to vector<2x128xf32>
    %75 = arith.select %69, %73, %74 : vector<2x128xi1>, vector<2x128xf32>
    %cst_38 = arith.constant dense<0.000000e+00> : vector<2xf32>
    %76 = vector.multi_reduction <add>, %75, %cst_38 [1] : vector<2x128xf32> to vector<2xf32>
    %77 = vector.shape_cast %76 : vector<2xf32> to vector<2x1xf32>
    %cst_39 = arith.constant 5.51363134 : f32
    %78 = vector.broadcast %cst_39 : f32 to vector<2x1xf32>
    %79 = arith.subf %77, %78 : vector<2x1xf32>
    %80 = math.tanh %54 : vector<2x128xf32>
    %81 = math.tanh %66 : vector<2x128xf32>
    %82 = arith.mulf %81, %81 : vector<2x128xf32>
    %cst_40 = arith.constant 1.000000e+00 : f32
    %83 = vector.broadcast %cst_40 : f32 to vector<2x128xf32>
    %84 = arith.subf %83, %82 : vector<2x128xf32>
    %cst_41 = arith.constant 0.000000e+00 : f32
    %85 = vector.broadcast %cst_41 : f32 to vector<2x128xf32>
    %86 = arith.maximumf %84, %85 : vector<2x128xf32>
    %cst_42 = arith.constant 9.99999997E-7 : f32
    %87 = vector.broadcast %cst_42 : f32 to vector<2x128xf32>
    %88 = arith.addf %86, %87 : vector<2x128xf32>
    %89 = math.log %88 : vector<2x128xf32>
    %cst_43 = arith.constant 0.000000e+00 : f32
    %90 = vector.broadcast %cst_43 : f32 to vector<2x128xf32>
    %91 = arith.select %69, %89, %90 : vector<2x128xi1>, vector<2x128xf32>
    %cst_44 = arith.constant dense<0.000000e+00> : vector<2xf32>
    %92 = vector.multi_reduction <add>, %91, %cst_44 [1] : vector<2x128xf32> to vector<2xf32>
    %93 = vector.shape_cast %92 : vector<2xf32> to vector<2x1xf32>
    %94 = arith.subf %79, %93 : vector<2x1xf32>
    %cst_45 = arith.constant 0.000000e+00 : f32
    %95 = vector.broadcast %cst_45 : f32 to vector<2x128xf32>
    %96 = arith.select %69, %62, %95 : vector<2x128xi1>, vector<2x128xf32>
    %c0_i32 = arith.constant 0 : i32
    %97 = vector.broadcast %c0_i32 : i32 to vector<2x128xi32>
    %98 = arith.cmpi eq, %67, %97 : vector<2x128xi32>
    %cst_46 = arith.constant 0.000000e+00 : f32
    %99 = vector.shape_cast %94 : vector<2x1xf32> to vector<2x1xf32>
    %100 = vector.broadcast %99 : vector<2x1xf32> to vector<2x128xf32>
    %101 = vector.broadcast %cst_46 : f32 to vector<2x128xf32>
    %102 = arith.select %98, %100, %101 : vector<2x128xi1>, vector<2x128xf32>
    %103 = tpu.concatenate %80, %81, %96, %102 in 1 : vector<2x128xf32>, vector<2x128xf32>, vector<2x128xf32>, vector<2x128xf32> -> vector<2x512xf32>
    %c0_47 = arith.constant 0 : index
    %c0_48 = arith.constant 0 : index
    %104 = vector.load %arg13[%c0_47, %c0_48] : memref<2x512xf32, #tpu.memory_space<vmem>>, vector<2x512xf32>
    tpu.vector_store %arg13[%c0_47, %c0_48], %103 {strides = array<i32>} : memref<2x512xf32, #tpu.memory_space<vmem>>, vector<2x512xf32>,
    return
  }
  func.func @transform_0(%arg0: i32) -> (i32, i32) {
    %c0_i32 = arith.constant 0 : i32
    %c0_i32_0 = arith.constant 0 : i32
    return %arg0, %c0_i32 : i32, i32
  }
  func.func @transform_1(%arg0: i32) -> (i32, i32) {
    %c0_i32 = arith.constant 0 : i32
    %c0_i32_0 = arith.constant 0 : i32
    %c0_i32_1 = arith.constant 0 : i32
    return %c0_i32, %c0_i32_0 : i32, i32
  }
  func.func @transform_2(%arg0: i32) -> (i32, i32) {
    %c0_i32 = arith.constant 0 : i32
    %c0_i32_0 = arith.constant 0 : i32
    %c0_i32_1 = arith.constant 0 : i32
    return %c0_i32, %c0_i32_0 : i32, i32
  }
  func.func @transform_3(%arg0: i32) -> (i32, i32) {
    %c0_i32 = arith.constant 0 : i32
    %c0_i32_0 = arith.constant 0 : i32
    %c0_i32_1 = arith.constant 0 : i32
    return %c0_i32, %c0_i32_0 : i32, i32
  }
  func.func @transform_4(%arg0: i32) -> (i32, i32) {
    %c0_i32 = arith.constant 0 : i32
    %c0_i32_0 = arith.constant 0 : i32
    %c0_i32_1 = arith.constant 0 : i32
    return %c0_i32, %c0_i32_0 : i32, i32
  }
  func.func @transform_5(%arg0: i32) -> (i32, i32) {
    %c0_i32 = arith.constant 0 : i32
    %c0_i32_0 = arith.constant 0 : i32
    %c0_i32_1 = arith.constant 0 : i32
    return %c0_i32, %c0_i32_0 : i32, i32
  }
  func.func @transform_6(%arg0: i32) -> (i32, i32) {
    %c0_i32 = arith.constant 0 : i32
    %c0_i32_0 = arith.constant 0 : i32
    %c0_i32_1 = arith.constant 0 : i32
    return %c0_i32, %c0_i32_0 : i32, i32
  }
  func.func @transform_7(%arg0: i32) -> (i32, i32) {
    %c0_i32 = arith.constant 0 : i32
    %c0_i32_0 = arith.constant 0 : i32
    %c0_i32_1 = arith.constant 0 : i32
    return %c0_i32, %c0_i32_0 : i32, i32
  }
  func.func @transform_8(%arg0: i32) -> (i32, i32) {
    %c0_i32 = arith.constant 0 : i32
    %c0_i32_0 = arith.constant 0 : i32
    %c0_i32_1 = arith.constant 0 : i32
    return %c0_i32, %c0_i32_0 : i32, i32
  }
  func.func @transform_9(%arg0: i32) -> (i32, i32) {
    %c0_i32 = arith.constant 0 : i32
    %c0_i32_0 = arith.constant 0 : i32
    %c0_i32_1 = arith.constant 0 : i32
    return %c0_i32, %c0_i32_0 : i32, i32
  }
  func.func @transform_10(%arg0: i32) -> (i32, i32) {
    %c0_i32 = arith.constant 0 : i32
    %c0_i32_0 = arith.constant 0 : i32
    %c0_i32_1 = arith.constant 0 : i32
    return %c0_i32, %c0_i32_0 : i32, i32
  }
  func.func @transform_11(%arg0: i32) -> (i32, i32) {
    %c0_i32 = arith.constant 0 : i32
    %c0_i32_0 = arith.constant 0 : i32
    return %arg0, %c0_i32 : i32, i32
  }
  func.func @transform_12(%arg0: i32) -> (i32, i32) {
    %c0_i32 = arith.constant 0 : i32
    %c0_i32_0 = arith.constant 0 : i32
    return %arg0, %c0_i32 : i32, i32
  }
}

</mosaic_0001>

<llo_original>
// kernel: actor_forward.3
$region0: #{actor_forward.3}
  #allocation0 [shape = 'u32[]', space=smem, size = 0x4, offset = 0x4, fixed_abs, tag = 'smem constant byte address 0x4 - core index']
  #allocation1 [shape = 'u32[144,128]{1,0:T(1,128)}', space=vmem, size = 0x12000, scoped, tag = 'internal scratch']
  %s0 = inlined_call_operand.vmem [shape: bf16[2,512], index: 0, kind: input, shape index: {}]
  %s1 = inlined_call_operand.vmem [shape: bf16[512,32], index: 1, kind: input, shape index: {}]
  %s2 = inlined_call_operand.vmem [shape: f32[1,32], index: 2, kind: input, shape index: {}]
  %s3 = inlined_call_operand.vmem [shape: f32[1,32], index: 3, kind: input, shape index: {}]
  %s4 = inlined_call_operand.vmem [shape: f32[1,32], index: 4, kind: input, shape index: {}]
  %s5 = inlined_call_operand.vmem [shape: bf16[32,32], index: 5, kind: input, shape index: {}]
  %s6 = inlined_call_operand.vmem [shape: f32[1,32], index: 6, kind: input, shape index: {}]
  %s7 = inlined_call_operand.vmem [shape: bf16[32,32], index: 7, kind: input, shape index: {}]
  %s8 = inlined_call_operand.vmem [shape: f32[1,32], index: 8, kind: input, shape index: {}]
  %s9 = inlined_call_operand.vmem [shape: bf16[32,256], index: 9, kind: input, shape index: {}]
  %s10 = inlined_call_operand.vmem [shape: f32[1,256], index: 10, kind: input, shape index: {}]
  %s11 = inlined_call_operand.vmem [shape: f32[2,128], index: 11, kind: input, shape index: {}]
  %s12 = inlined_call_operand.vmem [shape: f32[2,512], index: 12, kind: output, shape index: {}]
  %s13 = sld [smem:[#allocation0]]
  $region58: #{actor_forward.3} parent=0
    _
  %s15 = ssub.s32 1, %s13
  %s16 = scalar_select 0, %s15, %s13
  // Predicated region
  $region2: #{actor_forward.3} parent=0 // pred_check
    _
  $region3: #{actor_forward.3} parent=0 // pred_check_branch
    %18 = sbr.rel (0) target = $region5
  $region4: #{actor_forward.3} parent=0 // pred_region
    _
  $region5: #{actor_forward.3} parent=0 // pred_fallthru
    _
  // Predicated region
  $region6: #{actor_forward.3} parent=0 // pred_check
    _
  $region7: #{actor_forward.3} parent=0 // pred_check_branch
    %20 = sbr.rel (0) target = $region9
  $region8: #{actor_forward.3} parent=0 // pred_region
    _
  $region9: #{actor_forward.3} parent=0 // pred_fallthru
    _
  // Predicated region
  $region10: #{actor_forward.3} parent=0 // pred_check
    _
  $region11: #{actor_forward.3} parent=0 // pred_check_branch
    %22 = sbr.rel (0) target = $region13
  $region12: #{actor_forward.3} parent=0 // pred_region
    _
  $region13: #{actor_forward.3} parent=0 // pred_fallthru
    _
  // Predicated region
  $region14: #{actor_forward.3} parent=0 // pred_check
    _
  $region15: #{actor_forward.3} parent=0 // pred_check_branch
    %24 = sbr.rel (0) target = $region17
  $region16: #{actor_forward.3} parent=0 // pred_region
    _
  $region17: #{actor_forward.3} parent=0 // pred_fallthru
    _
  // Predicated region
  $region18: #{actor_forward.3} parent=0 // pred_check
    _
  $region19: #{actor_forward.3} parent=0 // pred_check_branch
    %26 = sbr.rel (0) target = $region21
  $region20: #{actor_forward.3} parent=0 // pred_region
    _
  $region21: #{actor_forward.3} parent=0 // pred_fallthru
    _
  // Predicated region
  $region22: #{actor_forward.3} parent=0 // pred_check
    _
  $region23: #{actor_forward.3} parent=0 // pred_check_branch
    %28 = sbr.rel (0) target = $region25
  $region24: #{actor_forward.3} parent=0 // pred_region
    _
  $region25: #{actor_forward.3} parent=0 // pred_fallthru
    _
  // Predicated region
  $region26: #{actor_forward.3} parent=0 // pred_check
    _
  $region27: #{actor_forward.3} parent=0 // pred_check_branch
    %30 = sbr.rel (0) target = $region29
  $region28: #{actor_forward.3} parent=0 // pred_region
    _
  $region29: #{actor_forward.3} parent=0 // pred_fallthru
    _
  // Predicated region
  $region30: #{actor_forward.3} parent=0 // pred_check
    _
  $region31: #{actor_forward.3} parent=0 // pred_check_branch
    %32 = sbr.rel (0) target = $region33
  $region32: #{actor_forward.3} parent=0 // pred_region
    _
  $region33: #{actor_forward.3} parent=0 // pred_fallthru
    _
  // Predicated region
  $region34: #{actor_forward.3} parent=0 // pred_check
    _
  $region35: #{actor_forward.3} parent=0 // pred_check_branch
    %34 = sbr.rel (0) target = $region37
  $region36: #{actor_forward.3} parent=0 // pred_region
    _
  $region37: #{actor_forward.3} parent=0 // pred_fallthru
    _
  // Predicated region
  $region38: #{actor_forward.3} parent=0 // pred_check
    _
  $region39: #{actor_forward.3} parent=0 // pred_check_branch
    %36 = sbr.rel (0) target = $region41
  $region40: #{actor_forward.3} parent=0 // pred_region
    _
  $region41: #{actor_forward.3} parent=0 // pred_fallthru
    _
  // Predicated region
  $region42: #{actor_forward.3} parent=0 // pred_check
    _
  $region43: #{actor_forward.3} parent=0 // pred_check_branch
    %38 = sbr.rel (0) target = $region45
  $region44: #{actor_forward.3} parent=0 // pred_region
    _
  $region45: #{actor_forward.3} parent=0 // pred_fallthru
    _
  // Predicated region
  $region46: #{actor_forward.3} parent=0 // pred_check
    _
  $region47: #{actor_forward.3} parent=0 // pred_check_branch
    %40 = sbr.rel (0) target = $region49
  $region48: #{actor_forward.3} parent=0 // pred_region
    _
  $region49: #{actor_forward.3} parent=0 // pred_fallthru
    _
  %v42 = vld [vmem:[%s0] sm:$0xf]
  %v43 = vld [vmem:[%s1] sm:$0xf]
  %v44 = vld [vmem:[%s1 + $0x4] sm:$0xf]
  %v45 = vld [vmem:[%s1 + $0x8] sm:$0xf]
  %v46 = vld [vmem:[%s1 + $0xc] sm:$0xf]
  %v47 = vld [vmem:[%s1 + $0x10] sm:$0xf]
  %v48 = vld [vmem:[%s1 + $0x14] sm:$0xf]
  %v49 = vld [vmem:[%s1 + $0x18] sm:$0xf]
  %v50 = vld [vmem:[%s1 + $0x1c] sm:$0xf]
  %v51 = vld [vmem:[%s1 + $0x20] sm:$0xf]
  %v52 = vld [vmem:[%s1 + $0x24] sm:$0xf]
  %v53 = vld [vmem:[%s1 + $0x28] sm:$0xf]
  %v54 = vld [vmem:[%s1 + $0x2c] sm:$0xf]
  %v55 = vld [vmem:[%s1 + $0x30] sm:$0xf]
  %v56 = vld [vmem:[%s1 + $0x34] sm:$0xf]
  %v57 = vld [vmem:[%s1 + $0x38] sm:$0xf]
  %v58 = vld [vmem:[%s1 + $0x3c] sm:$0xf]
  %v59 = vld [vmem:[%s1 + $0x40] sm:$0xf]
  %v60 = vld [vmem:[%s1 + $0x44] sm:$0xf]
  %v61 = vld [vmem:[%s1 + $0x48] sm:$0xf]
  %v62 = vld [vmem:[%s1 + $0x4c] sm:$0xf]
  %v63 = vld [vmem:[%s1 + $0x50] sm:$0xf]
  %v64 = vld [vmem:[%s1 + $0x54] sm:$0xf]
  %v65 = vld [vmem:[%s1 + $0x58] sm:$0xf]
  %v66 = vld [vmem:[%s1 + $0x5c] sm:$0xf]
  %v67 = vld [vmem:[%s1 + $0x60] sm:$0xf]
  %v68 = vld [vmem:[%s1 + $0x64] sm:$0xf]
  %v69 = vld [vmem:[%s1 + $0x68] sm:$0xf]
  %v70 = vld [vmem:[%s1 + $0x6c] sm:$0xf]
  %v71 = vld [vmem:[%s1 + $0x70] sm:$0xf]
  %v72 = vld [vmem:[%s1 + $0x74] sm:$0xf]
  %v73 = vld [vmem:[%s1 + $0x78] sm:$0xf]
  %v74 = vld [vmem:[%s1 + $0x7c] sm:$0xf]
  %v75 = vld [vmem:[%s1 + $0x80] sm:$0xf]
  %v76 = vld [vmem:[%s1 + $0x84] sm:$0xf]
  %v77 = vld [vmem:[%s1 + $0x88] sm:$0xf]
  %v78 = vld [vmem:[%s1 + $0x8c] sm:$0xf]
  %v79 = vld [vmem:[%s1 + $0x90] sm:$0xf]
  %v80 = vld [vmem:[%s1 + $0x94] sm:$0xf]
  %v81 = vld [vmem:[%s1 + $0x98] sm:$0xf]
  %v82 = vld [vmem:[%s1 + $0x9c] sm:$0xf]
  %v83 = vld [vmem:[%s1 + $0xa0] sm:$0xf]
  %v84 = vld [vmem:[%s1 + $0xa4] sm:$0xf]
  %v85 = vld [vmem:[%s1 + $0xa8] sm:$0xf]
  %v86 = vld [vmem:[%s1 + $0xac] sm:$0xf]
  %v87 = vld [vmem:[%s1 + $0xb0] sm:$0xf]
  %v88 = vld [vmem:[%s1 + $0xb4] sm:$0xf]
  %v89 = vld [vmem:[%s1 + $0xb8] sm:$0xf]
  %v90 = vld [vmem:[%s1 + $0xbc] sm:$0xf]
  %v91 = vld [vmem:[%s1 + $0xc0] sm:$0xf]
  %v92 = vld [vmem:[%s1 + $0xc4] sm:$0xf]
  %v93 = vld [vmem:[%s1 + $0xc8] sm:$0xf]
  %v94 = vld [vmem:[%s1 + $0xcc] sm:$0xf]
  %v95 = vld [vmem:[%s1 + $0xd0] sm:$0xf]
  %v96 = vld [vmem:[%s1 + $0xd4] sm:$0xf]
  %v97 = vld [vmem:[%s1 + $0xd8] sm:$0xf]
  %v98 = vld [vmem:[%s1 + $0xdc] sm:$0xf]
  %v99 = vld [vmem:[%s1 + $0xe0] sm:$0xf]
  %v100 = vld [vmem:[%s1 + $0xe4] sm:$0xf]
  %v101 = vld [vmem:[%s1 + $0xe8] sm:$0xf]
  %v102 = vld [vmem:[%s1 + $0xec] sm:$0xf]
  %v103 = vld [vmem:[%s1 + $0xf0] sm:$0xf]
  %v104 = vld [vmem:[%s1 + $0xf4] sm:$0xf]
  %v105 = vld [vmem:[%s1 + $0xf8] sm:$0xf]
  %v106 = vld [vmem:[%s1 + $0xfc] sm:$0xf]
  %v107 = vld [vmem:[%s2] sm:$0x1]
  %v109 = vlaneseq
  %v110 = vshrl.u32 %v109, 7
  %v111 = vsub.s32 0, %v110
  %v112 = vrot.slane %v107, %v111
  %v116 = vunpack.c.l.s4 1966171168
  %v117 = vunpack.c.0.s8 %v116
  %v118 = vlaneseq
  %v119 = vshrl.u32 %v118, 7
  %v120 = vsub.s32 %v117, %v119
  %v121 = vrot.slane %v42, %v120
  %v122 = vcombine.high %v121, %v121
  %v124 = vunpack.c.l.s4 1966171168
  %v125 = vunpack.c.0.s8 %v124
  %v126 = vlaneseq
  %v127 = vshrl.u32 %v126, 7
  %v128 = vsub.s32 %v125, %v127
  %v129 = vrot.slane %v121, %v128
  %v131 = vunpack.c.l.s4 1966171168
  %v132 = vunpack.c.0.s8 %v131
  %v133 = vlaneseq
  %v134 = vshrl.u32 %v133, 7
  %v135 = vsub.s32 %v132, %v134
  %v136 = vrot.slane %v122, %v135
  %v137 = vcombine.high %v129, %v129
  %v138 = vcombine.high %v136, %v136
  %v207 = vunpack.c.l.b16 %v43
  %v208 = vunpack.c.l.b16 %v44
  %v209 = vunpack.c.l.b16 %v45
  %v210 = vunpack.c.l.b16 %v46
  %v211 = vunpack.c.l.b16 %v47
  %v212 = vunpack.c.l.b16 %v48
  %v213 = vunpack.c.l.b16 %v49
  %v214 = vunpack.c.l.b16 %v50
  %v215 = vunpack.c.l.b16 %v51
  %v216 = vunpack.c.l.b16 %v52
  %v217 = vunpack.c.l.b16 %v53
  %v218 = vunpack.c.l.b16 %v54
  %v219 = vunpack.c.l.b16 %v55
  %v220 = vunpack.c.l.b16 %v56
  %v221 = vunpack.c.l.b16 %v57
  %v222 = vunpack.c.l.b16 %v58
  %v223 = vunpack.c.l.b16 %v59
  %v224 = vunpack.c.l.b16 %v60
  %v225 = vunpack.c.l.b16 %v61
  %v226 = vunpack.c.l.b16 %v62
  %v227 = vunpack.c.l.b16 %v63
  %v228 = vunpack.c.l.b16 %v64
  %v229 = vunpack.c.l.b16 %v65
  %v230 = vunpack.c.l.b16 %v66
  %v231 = vunpack.c.l.b16 %v67
  %v232 = vunpack.c.l.b16 %v68
  %v233 = vunpack.c.l.b16 %v69
  %v234 = vunpack.c.l.b16 %v70
  %v235 = vunpack.c.l.b16 %v71
  %v236 = vunpack.c.l.b16 %v72
  %v237 = vunpack.c.l.b16 %v73
  %v238 = vunpack.c.l.b16 %v74
  %v239 = vunpack.c.l.b16 %v75
  %v240 = vunpack.c.l.b16 %v76
  %v241 = vunpack.c.l.b16 %v77
  %v242 = vunpack.c.l.b16 %v78
  %v243 = vunpack.c.l.b16 %v79
  %v244 = vunpack.c.l.b16 %v80
  %v245 = vunpack.c.l.b16 %v81
  %v246 = vunpack.c.l.b16 %v82
  %v247 = vunpack.c.l.b16 %v83
  %v248 = vunpack.c.l.b16 %v84
  %v249 = vunpack.c.l.b16 %v85
  %v250 = vunpack.c.l.b16 %v86
  %v251 = vunpack.c.l.b16 %v87
  %v252 = vunpack.c.l.b16 %v88
  %v253 = vunpack.c.l.b16 %v89
  %v254 = vunpack.c.l.b16 %v90
  %v255 = vunpack.c.l.b16 %v91
  %v256 = vunpack.c.l.b16 %v92
  %v257 = vunpack.c.l.b16 %v93
  %v258 = vunpack.c.l.b16 %v94
  %v259 = vunpack.c.l.b16 %v95
  %v260 = vunpack.c.l.b16 %v96
  %v261 = vunpack.c.l.b16 %v97
  %v262 = vunpack.c.l.b16 %v98
  %v263 = vunpack.c.l.b16 %v99
  %v264 = vunpack.c.l.b16 %v100
  %v265 = vunpack.c.l.b16 %v101
  %v266 = vunpack.c.l.b16 %v102
  %v267 = vunpack.c.l.b16 %v103
  %v268 = vunpack.c.l.b16 %v104
  %v269 = vunpack.c.l.b16 %v105
  %v270 = vunpack.c.l.b16 %v106
  %v271 = vpack.c.b16 %v208, %v207
  %v272 = vpack.c.b16 %v210, %v209
  %v273 = vpack.c.b16 %v212, %v211
  %v274 = vpack.c.b16 %v214, %v213
  %v275 = vpack.c.b16 %v216, %v215
  %v276 = vpack.c.b16 %v218, %v217
  %v277 = vpack.c.b16 %v220, %v219
  %v278 = vpack.c.b16 %v222, %v221
  %v279 = vpack.c.b16 %v224, %v223
  %v280 = vpack.c.b16 %v226, %v225
  %v281 = vpack.c.b16 %v228, %v227
  %v282 = vpack.c.b16 %v230, %v229
  %v283 = vpack.c.b16 %v232, %v231
  %v284 = vpack.c.b16 %v234, %v233
  %v285 = vpack.c.b16 %v236, %v235
  %v286 = vpack.c.b16 %v238, %v237
  %v287 = vpack.c.b16 %v240, %v239
  %v288 = vpack.c.b16 %v242, %v241
  %v289 = vpack.c.b16 %v244, %v243
  %v290 = vpack.c.b16 %v246, %v245
  %v291 = vpack.c.b16 %v248, %v247
  %v292 = vpack.c.b16 %v250, %v249
  %v293 = vpack.c.b16 %v252, %v251
  %v294 = vpack.c.b16 %v254, %v253
  %v295 = vpack.c.b16 %v256, %v255
  %v296 = vpack.c.b16 %v258, %v257
  %v297 = vpack.c.b16 %v260, %v259
  %v298 = vpack.c.b16 %v262, %v261
  %v299 = vpack.c.b16 %v264, %v263
  %v300 = vpack.c.b16 %v266, %v265
  %v301 = vpack.c.b16 %v268, %v267
  %v302 = vpack.c.b16 %v270, %v269
  %335 = vmatprep.subr.bf16.mxu0 0
  %336 = vmatpush1.bf16.msra.mxu0 %v271
  %337 = vmatprep.subr.bf16.mxu0 0
  %338 = vmatpush1.bf16.msra.mxu0 %v272
  %339 = vmatprep.subr.bf16.mxu0 0
  %340 = vmatpush1.bf16.msra.mxu0 %v273
  %341 = vmatprep.subr.bf16.mxu0 0
  %342 = vmatpush1.bf16.msra.mxu0 %v274
  %343 = vmatprep.subr.bf16.mxu0 0
  %344 = vmatpush1.bf16.msra.mxu0 %v275
  %345 = vmatprep.subr.bf16.mxu0 0
  %346 = vmatpush1.bf16.msra.mxu0 %v276
  %347 = vmatprep.subr.bf16.mxu0 0
  %348 = vmatpush1.bf16.msra.mxu0 %v277
  %349 = vmatprep.subr.bf16.mxu0 0
  %350 = vmatpush1.bf16.msra.mxu0 %v278
  %351 = vmatprep.subr.bf16.mxu0 0
  %352 = vmatpush1.bf16.msra.mxu0 %v279
  %353 = vmatprep.subr.bf16.mxu0 0
  %354 = vmatpush1.bf16.msra.mxu0 %v280
  %355 = vmatprep.subr.bf16.mxu0 0
  %356 = vmatpush1.bf16.msra.mxu0 %v281
  %357 = vmatprep.subr.bf16.mxu0 0
  %358 = vmatpush1.bf16.msra.mxu0 %v282
  %359 = vmatprep.subr.bf16.mxu0 0
  %360 = vmatpush1.bf16.msra.mxu0 %v283
  %361 = vmatprep.subr.bf16.mxu0 0
  %362 = vmatpush1.bf16.msra.mxu0 %v284
  %363 = vmatprep.subr.bf16.mxu0 0
  %364 = vmatpush1.bf16.msra.mxu0 %v285
  %365 = vmatprep.subr.bf16.mxu0 0
  %366 = vmatpush1.bf16.msra.mxu0 %v286
  %367 = vmatprep.mubr.bf16.mxu0 %v136
  %368 = vmatmul.mubr.bf16.gmra.mrb[0].mxu0 %v129
  %v369 = vpop.f32.mrb[0].mxu0
  %v370 = vadd.f32 %v112, %v369
  %v371 = vpop.f32.mrb[0].mxu0
  %v372 = vpop.f32.mrb[0].mxu0
  %v373 = vpop.f32.mrb[0].mxu0
  %374 = vdwg.mxu0
  %375 = vmatprep.subr.bf16.mxu0 0
  %376 = vmatpush1.bf16.msra.mxu0 %v287
  %377 = vmatprep.subr.bf16.mxu0 0
  %378 = vmatpush1.bf16.msra.mxu0 %v288
  %379 = vmatprep.subr.bf16.mxu0 0
  %380 = vmatpush1.bf16.msra.mxu0 %v289
  %381 = vmatprep.subr.bf16.mxu0 0
  %382 = vmatpush1.bf16.msra.mxu0 %v290
  %383 = vmatprep.subr.bf16.mxu0 0
  %384 = vmatpush1.bf16.msra.mxu0 %v291
  %385 = vmatprep.subr.bf16.mxu0 0
  %386 = vmatpush1.bf16.msra.mxu0 %v292
  %387 = vmatprep.subr.bf16.mxu0 0
  %388 = vmatpush1.bf16.msra.mxu0 %v293
  %389 = vmatprep.subr.bf16.mxu0 0
  %390 = vmatpush1.bf16.msra.mxu0 %v294
  %391 = vmatprep.subr.bf16.mxu0 0
  %392 = vmatpush1.bf16.msra.mxu0 %v295
  %393 = vmatprep.subr.bf16.mxu0 0
  %394 = vmatpush1.bf16.msra.mxu0 %v296
  %395 = vmatprep.subr.bf16.mxu0 0
  %396 = vmatpush1.bf16.msra.mxu0 %v297
  %397 = vmatprep.subr.bf16.mxu0 0
  %398 = vmatpush1.bf16.msra.mxu0 %v298
  %399 = vmatprep.subr.bf16.mxu0 0
  %400 = vmatpush1.bf16.msra.mxu0 %v299
  %401 = vmatprep.subr.bf16.mxu0 0
  %402 = vmatpush1.bf16.msra.mxu0 %v300
  %403 = vmatprep.subr.bf16.mxu0 0
  %404 = vmatpush1.bf16.msra.mxu0 %v301
  %405 = vmatprep.subr.bf16.mxu0 0
  %406 = vmatpush1.bf16.msra.mxu0 %v302
  %407 = vmatprep.mubr.bf16.mxu0 %v138
  %408 = vmatmul.mubr.bf16.gmra.mrb[0].mxu0 %v137
  %v409 = vpop.f32.mrb[0].mxu0
  %v410 = vadd.f32 %v370, %v409
  %v411 = vpop.f32.mrb[0].mxu0
  %v412 = vpop.f32.mrb[0].mxu0
  %v413 = vpop.f32.mrb[0].mxu0
  %414 = vdwg.mxu0
  %vm415 = vcmask 254976
  %v416 = vsel %vm415, %v410, 0.0
  %417 = vadd.xlane.f32.xlu0 %v416
  %v418 = vpop.xlane.xlu0 %417
  %v419 = vrcp.pop 32.0
  %v420 = vmul.f32 %v418, %v419
  %v421 = vsub.f32 %v410, %v420
  %v422 = vmul.f32 %v421, %v421
  %v423 = vsel %vm415, %v422, 0.0
  %424 = vadd.xlane.f32.xlu0 %v423
  %v425 = vpop.xlane.xlu0 %424
  %v426 = vmul.f32 %v425, %v419
  %v427 = vadd.f32 %v426, 1e-05
  %v428 = vrsqrt.pop %v427
  %v429 = vmul.f32 %v421, %v428
  %v430 = vld [vmem:[%s3] sm:$0x1]
  %v432 = vlaneseq
  %v433 = vshrl.u32 %v432, 7
  %v434 = vsub.s32 0, %v433
  %v435 = vrot.slane %v430, %v434
  %v437 = vmul.f32 %v429, %v435
  %v438 = vld [vmem:[%s4] sm:$0x1]
  %v440 = vlaneseq
  %v441 = vshrl.u32 %v440, 7
  %v442 = vsub.s32 0, %v441
  %v443 = vrot.slane %v438, %v442
  %v445 = vadd.f32 %v437, %v443
  %v446 = vtanh.pop %v445
  %v447 = vround.ne.pseudo %v446
  %v448 = vpack.c.bf16 %v447, %v447
  %v449 = vld [vmem:[%s5] sm:$0xf]
  %v450 = vld [vmem:[%s5 + $0x4] sm:$0xf]
  %v451 = vld [vmem:[%s5 + $0x8] sm:$0xf]
  %v452 = vld [vmem:[%s5 + $0xc] sm:$0xf]
  %v453 = vld [vmem:[%s6] sm:$0x1]
  %v455 = vlaneseq
  %v456 = vshrl.u32 %v455, 7
  %v457 = vsub.s32 0, %v456
  %v458 = vrot.slane %v453, %v457
  %v464 = vunpack.c.l.b16 %v449
  %v465 = vunpack.c.l.b16 %v450
  %v466 = vunpack.c.l.b16 %v451
  %v467 = vunpack.c.l.b16 %v452
  %v468 = vpack.c.b16 %v465, %v464
  %v469 = vpack.c.b16 %v467, %v466
  %vm472 = vcmask 261120
  %v474 = vsel %vm472, %v448, 0
  %476 = vmatprep.subr.bf16.mxu0 0
  %477 = vmatpush1.bf16.msra.mxu0 %v468
  %478 = vmatprep.subr.bf16.mxu0 0
  %479 = vmatpush1.bf16.msra.mxu0 %v469
  %480 = vmatprep.subr.bf16.mxu0 0
  %481 = vmatpush1.bf16.msra.mxu0 0
  %482 = vmatprep.subr.bf16.mxu0 0
  %483 = vmatpush1.bf16.msra.mxu0 0
  %484 = vmatprep.subr.bf16.mxu0 0
  %485 = vmatpush1.bf16.msra.mxu0 0
  %486 = vmatprep.subr.bf16.mxu0 0
  %487 = vmatpush1.bf16.msra.mxu0 0
  %488 = vmatprep.subr.bf16.mxu0 0
  %489 = vmatpush1.bf16.msra.mxu0 0
  %490 = vmatprep.subr.bf16.mxu0 0
  %491 = vmatpush1.bf16.msra.mxu0 0
  %492 = vmatprep.subr.bf16.mxu0 0
  %493 = vmatpush1.bf16.msra.mxu0 0
  %494 = vmatprep.subr.bf16.mxu0 0
  %495 = vmatpush1.bf16.msra.mxu0 0
  %496 = vmatprep.subr.bf16.mxu0 0
  %497 = vmatpush1.bf16.msra.mxu0 0
  %498 = vmatprep.subr.bf16.mxu0 0
  %499 = vmatpush1.bf16.msra.mxu0 0
  %500 = vmatprep.subr.bf16.mxu0 0
  %501 = vmatpush1.bf16.msra.mxu0 0
  %502 = vmatprep.subr.bf16.mxu0 0
  %503 = vmatpush1.bf16.msra.mxu0 0
  %504 = vmatprep.subr.bf16.mxu0 0
  %505 = vmatpush1.bf16.msra.mxu0 0
  %506 = vmatprep.subr.bf16.mxu0 0
  %507 = vmatpush1.bf16.msra.mxu0 0
  %508 = vmatprep.mubr.bf16.mxu0 0
  %509 = vmatmul.mubr.bf16.gmra.mrb[0].mxu0 %v474
  %v510 = vpop.f32.mrb[0].mxu0
  %v511 = vadd.f32 %v458, %v510
  %v512 = vpop.f32.mrb[0].mxu0
  %v513 = vpop.f32.mrb[0].mxu0
  %v514 = vpop.f32.mrb[0].mxu0
  %515 = vdwg.mxu0
  %v516 = vmax.f32 %v511, 0.0
  %v517 = vpack.c.bf16 %v516, %v516
  %v518 = vld [vmem:[%s7] sm:$0xf]
  %v519 = vld [vmem:[%s7 + $0x4] sm:$0xf]
  %v520 = vld [vmem:[%s7 + $0x8] sm:$0xf]
  %v521 = vld [vmem:[%s7 + $0xc] sm:$0xf]
  %v522 = vld [vmem:[%s8] sm:$0x1]
  %v524 = vlaneseq
  %v525 = vshrl.u32 %v524, 7
  %v526 = vsub.s32 0, %v525
  %v527 = vrot.slane %v522, %v526
  %v533 = vunpack.c.l.b16 %v518
  %v534 = vunpack.c.l.b16 %v519
  %v535 = vunpack.c.l.b16 %v520
  %v536 = vunpack.c.l.b16 %v521
  %v537 = vpack.c.b16 %v534, %v533
  %v538 = vpack.c.b16 %v536, %v535
  %v542 = vsel %vm472, %v517, 0
  %544 = vmatprep.subr.bf16.mxu0 0
  %545 = vmatpush1.bf16.msra.mxu0 %v537
  %546 = vmatprep.subr.bf16.mxu0 0
  %547 = vmatpush1.bf16.msra.mxu0 %v538
  %548 = vmatprep.subr.bf16.mxu0 0
  %549 = vmatpush1.bf16.msra.mxu0 0
  %550 = vmatprep.subr.bf16.mxu0 0
  %551 = vmatpush1.bf16.msra.mxu0 0
  %552 = vmatprep.subr.bf16.mxu0 0
  %553 = vmatpush1.bf16.msra.mxu0 0
  %554 = vmatprep.subr.bf16.mxu0 0
  %555 = vmatpush1.bf16.msra.mxu0 0
  %556 = vmatprep.subr.bf16.mxu0 0
  %557 = vmatpush1.bf16.msra.mxu0 0
  %558 = vmatprep.subr.bf16.mxu0 0
  %559 = vmatpush1.bf16.msra.mxu0 0
  %560 = vmatprep.subr.bf16.mxu0 0
  %561 = vmatpush1.bf16.msra.mxu0 0
  %562 = vmatprep.subr.bf16.mxu0 0
  %563 = vmatpush1.bf16.msra.mxu0 0
  %564 = vmatprep.subr.bf16.mxu0 0
  %565 = vmatpush1.bf16.msra.mxu0 0
  %566 = vmatprep.subr.bf16.mxu0 0
  %567 = vmatpush1.bf16.msra.mxu0 0
  %568 = vmatprep.subr.bf16.mxu0 0
  %569 = vmatpush1.bf16.msra.mxu0 0
  %570 = vmatprep.subr.bf16.mxu0 0
  %571 = vmatpush1.bf16.msra.mxu0 0
  %572 = vmatprep.subr.bf16.mxu0 0
  %573 = vmatpush1.bf16.msra.mxu0 0
  %574 = vmatprep.subr.bf16.mxu0 0
  %575 = vmatpush1.bf16.msra.mxu0 0
  %576 = vmatprep.mubr.bf16.mxu0 0
  %577 = vmatmul.mubr.bf16.gmra.mrb[0].mxu0 %v542
  %v578 = vpop.f32.mrb[0].mxu0
  %v579 = vadd.f32 %v527, %v578
  %v580 = vpop.f32.mrb[0].mxu0
  %v581 = vpop.f32.mrb[0].mxu0
  %v582 = vpop.f32.mrb[0].mxu0
  %583 = vdwg.mxu0
  %v584 = vmax.f32 %v579, 0.0
  %v585 = vpack.c.bf16 %v584, %v584
  %v586 = vld [vmem:[%s9] sm:$0xff]
  %v587 = vld [vmem:[%s9 + $0x8] sm:$0xff]
  %v588 = vld [vmem:[%s9 + $0x10] sm:$0xff]
  %v589 = vld [vmem:[%s9 + $0x18] sm:$0xff]
  %v590 = vld [vmem:[%s10] sm:$0x3]
  %v592 = vlaneseq
  %v593 = vshrl.u32 %v592, 7
  %v594 = vsub.s32 0, %v593
  %v595 = vrot.slane %v590, %v594
  %v596 = vlaneseq
  %v597 = vshrl.u32 %v596, 7
  %v598 = vsub.s32 1, %v597
  %v599 = vrot.slane %v590, %v598
  %v606 = vunpack.c.l.b16 %v586
  %v607 = vunpack.c.h.b16 %v586
  %v608 = vunpack.c.l.b16 %v587
  %v609 = vunpack.c.h.b16 %v587
  %v610 = vunpack.c.l.b16 %v588
  %v611 = vunpack.c.h.b16 %v588
  %v612 = vunpack.c.l.b16 %v589
  %v613 = vunpack.c.h.b16 %v589
  %v614 = vpack.c.b16 %v608, %v606
  %v615 = vpack.c.b16 %v609, %v607
  %v616 = vpack.c.b16 %v612, %v610
  %v617 = vpack.c.b16 %v613, %v611
  %v623 = vsel %vm472, %v585, 0
  %625 = vmatprep.subr.bf16.mxu0 %v615
  %626 = vmatpush1.bf16.msra.mxu0 %v614
  %627 = vmatprep.subr.bf16.mxu0 %v617
  %628 = vmatpush1.bf16.msra.mxu0 %v616
  %629 = vmatprep.subr.bf16.mxu0 0
  %630 = vmatpush1.bf16.msra.mxu0 0
  %631 = vmatprep.subr.bf16.mxu0 0
  %632 = vmatpush1.bf16.msra.mxu0 0
  %633 = vmatprep.subr.bf16.mxu0 0
  %634 = vmatpush1.bf16.msra.mxu0 0
  %635 = vmatprep.subr.bf16.mxu0 0
  %636 = vmatpush1.bf16.msra.mxu0 0
  %637 = vmatprep.subr.bf16.mxu0 0
  %638 = vmatpush1.bf16.msra.mxu0 0
  %639 = vmatprep.subr.bf16.mxu0 0
  %640 = vmatpush1.bf16.msra.mxu0 0
  %641 = vmatprep.subr.bf16.mxu0 0
  %642 = vmatpush1.bf16.msra.mxu0 0
  %643 = vmatprep.subr.bf16.mxu0 0
  %644 = vmatpush1.bf16.msra.mxu0 0
  %645 = vmatprep.subr.bf16.mxu0 0
  %646 = vmatpush1.bf16.msra.mxu0 0
  %647 = vmatprep.subr.bf16.mxu0 0
  %648 = vmatpush1.bf16.msra.mxu0 0
  %649 = vmatprep.subr.bf16.mxu0 0
  %650 = vmatpush1.bf16.msra.mxu0 0
  %651 = vmatprep.subr.bf16.mxu0 0
  %652 = vmatpush1.bf16.msra.mxu0 0
  %653 = vmatprep.subr.bf16.mxu0 0
  %654 = vmatpush1.bf16.msra.mxu0 0
  %655 = vmatprep.subr.bf16.mxu0 0
  %656 = vmatpush1.bf16.msra.mxu0 0
  %657 = vmatprep.mubr.bf16.mxu0 0
  %658 = vmatmul.mubr.bf16.gmra.mrb[0].mxu0 %v623
  %v659 = vpop.f32.mrb[0].mxu0
  %v660 = vadd.f32 %v595, %v659
  %v661 = vpop.f32.mrb[0].mxu0
  %v662 = vadd.f32 %v599, %v661
  %v663 = vpop.f32.mrb[0].mxu0
  %v664 = vpop.f32.mrb[0].mxu0
  %665 = vdwg.mxu0
  %v666 = vtanh.pop %v662
  %v667 = vadd.f32 %v666, 1.0
  %v668 = vmul.f32 %v667, 6.0
  %v669 = vadd.f32 %v668, -10.0
  %v670 = vmul.f32 %v669, 1.442695
  %v671 = vpow.pop %v670
  %v672 = vld [vmem:[%s11] sm:$0x3]
  %v673 = vmul.f32 %v672, %v671
  %v674 = vadd.f32 %v660, %v673
  %v675 = vlaneseq
  %v676 = vand.u32 %v675, 127
  %vm677 = vcmp.lt.s32.totalorder %v676, 6
  %v678 = vmul.f32 %v672, -0.5
  %v679 = vmul.f32 %v678, %v672
  %v680 = vsub.f32 %v679, %v669
  %v681 = vsel %vm677, %v680, 0.0
  %vm682 = vcmask 1041408
  %v683 = vsel %vm682, %v681, 0.0
  %684 = vadd.xlane.f32.xlu0 %v683
  %v685 = vpop.xlane.xlu0 %684
  %v686 = vsub.f32 %v685, 5.5136313
  %v687 = vtanh.pop %v660
  %v688 = vtanh.pop %v674
  %v689 = vmul.f32 %v688, %v688
  %v690 = vsub.f32 1.0, %v689
  %v691 = vmax.f32 %v690, 0.0
  %v692 = vadd.f32 %v691, 1e-06
  %v693 = vlog2.pop %v692
  %v694 = vmul.f32 %v693, 0.6931472
  %v695 = vsel %vm677, %v694, 0.0
  %v696 = vsel %vm682, %v695, 0.0
  %697 = vadd.xlane.f32.xlu0 %v696
  %v698 = vpop.xlane.xlu0 %697
  %v699 = vsub.f32 %v686, %v698
  %v700 = vsel %vm677, %v669, 0.0
  %vm701 = vcmp.eq.s32.totalorder %v676, 0
  %v702 = vsel %vm701, %v699, 0.0
  %v707 = vcombine.low %v687, %v688
  %v708 = vcombine.low %v700, %v702
  %v710 = vunpack.c.l.s4 1983009808
  %v711 = vunpack.c.0.s8 %v710
  %v712 = vlaneseq
  %v713 = vshrl.u32 %v712, 7
  %v714 = vsub.s32 %v711, %v713
  %v715 = vrot.slane %v707, %v714
  %v717 = vunpack.c.l.s4 1983009808
  %v718 = vunpack.c.0.s8 %v717
  %v719 = vlaneseq
  %v720 = vshrl.u32 %v719, 7
  %v721 = vsub.s32 %v718, %v720
  %v722 = vrot.slane %v708, %v721
  %v723 = vcombine.low %v715, %v722
  %725 = vst [vmem:[%s12] sm:$0xff] %v723
  // Predicated region
  $region50: #{actor_forward.3} parent=0 // pred_check
    _
  $region51: #{actor_forward.3} parent=0 // pred_check_branch
    %727 = sbr.rel (0) target = $region53
  $region52: #{actor_forward.3} parent=0 // pred_region
    _
  $region53: #{actor_forward.3} parent=0 // pred_fallthru
    _
  // Predicated region
  $region54: #{actor_forward.3} parent=0 // pred_check
    _
  $region55: #{actor_forward.3} parent=0 // pred_check_branch
    %729 = sbr.rel (0) target = $region57
  $region56: #{actor_forward.3} parent=0 // pred_region
    _
  $region57: #{actor_forward.3} parent=0 // pred_fallthru
    _

// kernel: actor_forward.2
$region0: #{actor_forward.2}
  #allocation0 [shape = 'u32[]', space=smem, size = 0x4, offset = 0x4, fixed_abs, tag = 'smem constant byte address 0x4 - core index']
  #allocation1 [shape = 'u32[144,128]{1,0:T(1,128)}', space=vmem, size = 0x12000, scoped, tag = 'internal scratch']
  %s0 = inlined_call_operand.vmem [shape: bf16[1,128,16], index: 0, kind: input, shape index: {}]
  %s1 = inlined_call_operand.vmem [shape: bf16[4,16,8], index: 1, kind: input, shape index: {}]
  %s2 = inlined_call_operand.vmem [shape: f32[1,8], index: 2, kind: input, shape index: {}]
  %s3 = inlined_call_operand.vmem [shape: bf16[9,8,8], index: 3, kind: input, shape index: {}]
  %s4 = inlined_call_operand.vmem [shape: f32[1,8], index: 4, kind: input, shape index: {}]
  %s5 = inlined_call_operand.vmem [shape: bf16[1,128,8], index: 5, kind: output, shape index: {}]
  %s6 = sld [smem:[#allocation0]]
  $region30: #{actor_forward.2} parent=0
    _
  %s8 = ssub.s32 1, %s6
  %s9 = scalar_select 0, %s8, %s6
  // Predicated region
  $region2: #{actor_forward.2} parent=0 // pred_check
    _
  $region3: #{actor_forward.2} parent=0 // pred_check_branch
    %11 = sbr.rel (0) target = $region5
  $region4: #{actor_forward.2} parent=0 // pred_region
    _
  $region5: #{actor_forward.2} parent=0 // pred_fallthru
    _
  // Predicated region
  $region6: #{actor_forward.2} parent=0 // pred_check
    _
  $region7: #{actor_forward.2} parent=0 // pred_check_branch
    %13 = sbr.rel (0) target = $region9
  $region8: #{actor_forward.2} parent=0 // pred_region
    _
  $region9: #{actor_forward.2} parent=0 // pred_fallthru
    _
  // Predicated region
  $region10: #{actor_forward.2} parent=0 // pred_check
    _
  $region11: #{actor_forward.2} parent=0 // pred_check_branch
    %15 = sbr.rel (0) target = $region13
  $region12: #{actor_forward.2} parent=0 // pred_region
    _
  $region13: #{actor_forward.2} parent=0 // pred_fallthru
    _
  // Predicated region
  $region14: #{actor_forward.2} parent=0 // pred_check
    _
  $region15: #{actor_forward.2} parent=0 // pred_check_branch
    %17 = sbr.rel (0) target = $region17
  $region16: #{actor_forward.2} parent=0 // pred_region
    _
  $region17: #{actor_forward.2} parent=0 // pred_fallthru
    _
  // Predicated region
  $region18: #{actor_forward.2} parent=0 // pred_check
    _
  $region19: #{actor_forward.2} parent=0 // pred_check_branch
    %19 = sbr.rel (0) target = $region21
  $region20: #{actor_forward.2} parent=0 // pred_region
    _
  $region21: #{actor_forward.2} parent=0 // pred_fallthru
    _
  %v21 = vld [vmem:[%s0] sm:$0xf]
  %v22 = vld [vmem:[%s0 + $0x4] sm:$0xf]
  %v23 = vld [vmem:[%s0 + $0x8] sm:$0xf]
  %v24 = vld [vmem:[%s0 + $0xc] sm:$0xf]
  %v25 = vld [vmem:[%s0 + $0x10] sm:$0xf]
  %v26 = vld [vmem:[%s0 + $0x14] sm:$0xf]
  %v27 = vld [vmem:[%s0 + $0x18] sm:$0xf]
  %v28 = vld [vmem:[%s0 + $0x1c] sm:$0xf]
  %v29 = vld [vmem:[%s0 + $0x20] sm:$0xf]
  %v30 = vld [vmem:[%s0 + $0x24] sm:$0xf]
  %v31 = vld [vmem:[%s0 + $0x28] sm:$0xf]
  %v32 = vld [vmem:[%s0 + $0x2c] sm:$0xf]
  %v33 = vld [vmem:[%s0 + $0x30] sm:$0xf]
  %v34 = vld [vmem:[%s0 + $0x34] sm:$0xf]
  %v35 = vld [vmem:[%s0 + $0x38] sm:$0xf]
  %v36 = vld [vmem:[%s0 + $0x3c] sm:$0xf]
  %v37 = vld [vmem:[%s1] sm:$0xf]
  %v38 = vld [vmem:[%s1 + $0x4] sm:$0xf]
  %s39 = scalar_lea.vmem %s1, 8
  %v40 = vld [vmem:[%s39] sm:$0xf]
  %v41 = vld [vmem:[%s39 + $0x4] sm:$0xf]
  %v57 = vunpack.c.l.b16 %v21
  %v58 = vunpack.c.l.b16 %v22
  %v59 = vunpack.c.l.b16 %v23
  %v60 = vunpack.c.l.b16 %v24
  %v61 = vunpack.c.l.b16 %v25
  %v62 = vunpack.c.l.b16 %v26
  %v63 = vunpack.c.l.b16 %v27
  %v64 = vunpack.c.l.b16 %v28
  %v65 = vunpack.c.l.b16 %v29
  %v66 = vunpack.c.l.b16 %v30
  %v67 = vunpack.c.l.b16 %v31
  %v68 = vunpack.c.l.b16 %v32
  %v69 = vunpack.c.l.b16 %v33
  %v70 = vunpack.c.l.b16 %v34
  %v71 = vunpack.c.l.b16 %v35
  %v72 = vpack.c.b16 %v58, %v57
  %v73 = vpack.c.b16 %v60, %v59
  %v74 = vpack.c.b16 %v62, %v61
  %v75 = vpack.c.b16 %v64, %v63
  %v76 = vpack.c.b16 %v66, %v65
  %v77 = vpack.c.b16 %v68, %v67
  %v78 = vpack.c.b16 %v70, %v69
  %v79 = vpack.c.b16 %v71, %v71
  %vm80 = vsmask.f32 7424
  %v82 = vshrl.u32 %v72, 16
  %v84 = vshll.u32 %v72, 16
  %v86 = vrot.slane %v84, 1
  %v87 = vor.u32 %v82, %v86
  %v89 = vshll.u32 %v73, 16
  %v91 = vrot.slane %v89, 1
  %v92 = vsel %vm80, %v87, %v91
  %v93 = vshrl.u32 %v73, 16
  %v95 = vor.u32 %v93, %v91
  %v97 = vshll.u32 %v74, 16
  %v99 = vrot.slane %v97, 1
  %v100 = vsel %vm80, %v95, %v99
  %v101 = vshrl.u32 %v74, 16
  %v103 = vor.u32 %v101, %v99
  %v105 = vshll.u32 %v75, 16
  %v107 = vrot.slane %v105, 1
  %v108 = vsel %vm80, %v103, %v107
  %v109 = vshrl.u32 %v75, 16
  %v111 = vor.u32 %v109, %v107
  %v113 = vshll.u32 %v76, 16
  %v115 = vrot.slane %v113, 1
  %v116 = vsel %vm80, %v111, %v115
  %v117 = vshrl.u32 %v76, 16
  %v119 = vor.u32 %v117, %v115
  %v121 = vshll.u32 %v77, 16
  %v123 = vrot.slane %v121, 1
  %v124 = vsel %vm80, %v119, %v123
  %v125 = vshrl.u32 %v77, 16
  %v127 = vor.u32 %v125, %v123
  %v129 = vshll.u32 %v78, 16
  %v131 = vrot.slane %v129, 1
  %v132 = vsel %vm80, %v127, %v131
  %v133 = vshrl.u32 %v78, 16
  %v135 = vor.u32 %v133, %v131
  %v137 = vshll.u32 %v79, 16
  %v139 = vrot.slane %v137, 1
  %v140 = vsel %vm80, %v135, %v139
  %v141 = vshrl.u32 %v79, 16
  %v143 = vor.u32 %v141, %v139
  %v146 = vunpack.c.l.b16 %v40
  %v147 = vunpack.c.l.b16 %v41
  %v148 = vpack.c.b16 %v147, %v146
  %vm150 = vcmask 130048
  %v152 = vsel %vm150, %v92, 0
  %v155 = vsel %vm150, %v100, 0
  %v158 = vsel %vm150, %v108, 0
  %v161 = vsel %vm150, %v116, 0
  %v164 = vsel %vm150, %v124, 0
  %v167 = vsel %vm150, %v132, 0
  %v170 = vsel %vm150, %v140, 0
  %v173 = vsel %vm150, %v143, 0
  %175 = vmatprep.subr.bf16.mxu0 0
  %176 = vmatpush1.bf16.msra.mxu0 %v148
  %177 = vmatprep.subr.bf16.mxu0 0
  %178 = vmatpush1.bf16.msra.mxu0 0
  %179 = vmatprep.subr.bf16.mxu0 0
  %180 = vmatpush1.bf16.msra.mxu0 0
  %181 = vmatprep.subr.bf16.mxu0 0
  %182 = vmatpush1.bf16.msra.mxu0 0
  %183 = vmatprep.subr.bf16.mxu0 0
  %184 = vmatpush1.bf16.msra.mxu0 0
  %185 = vmatprep.subr.bf16.mxu0 0
  %186 = vmatpush1.bf16.msra.mxu0 0
  %187 = vmatprep.subr.bf16.mxu0 0
  %188 = vmatpush1.bf16.msra.mxu0 0
  %189 = vmatprep.subr.bf16.mxu0 0
  %190 = vmatpush1.bf16.msra.mxu0 0
  %191 = vmatprep.subr.bf16.mxu0 0
  %192 = vmatpush1.bf16.msra.mxu0 0
  %193 = vmatprep.subr.bf16.mxu0 0
  %194 = vmatpush1.bf16.msra.mxu0 0
  %195 = vmatprep.subr.bf16.mxu0 0
  %196 = vmatpush1.bf16.msra.mxu0 0
  %197 = vmatprep.subr.bf16.mxu0 0
  %198 = vmatpush1.bf16.msra.mxu0 0
  %199 = vmatprep.subr.bf16.mxu0 0
  %200 = vmatpush1.bf16.msra.mxu0 0
  %201 = vmatprep.subr.bf16.mxu0 0
  %202 = vmatpush1.bf16.msra.mxu0 0
  %203 = vmatprep.subr.bf16.mxu0 0
  %204 = vmatpush1.bf16.msra.mxu0 0
  %205 = vmatprep.subr.bf16.mxu0 0
  %206 = vmatpush1.bf16.msra.mxu0 0
  %207 = vmatprep.mubr.bf16.mxu0 0
  %208 = vmatmul.mubr.bf16.gmra.mrb[0].mxu0 %v152
  %v209 = vpop.f32.mrb[0].mxu0
  %v210 = vadd.f32 0.0, %v209
  %v211 = vpop.f32.mrb[0].mxu0
  %v212 = vpop.f32.mrb[0].mxu0
  %v213 = vadd.f32 0.0, %v212
  %v214 = vpop.f32.mrb[0].mxu0
  %215 = vmatprep.mubr.bf16.mxu0 0
  %216 = vmatmul.mubr.bf16.gmra.mrb[0].mxu0 %v155
  %v217 = vpop.f32.mrb[0].mxu0
  %v218 = vadd.f32 0.0, %v217
  %v219 = vpop.f32.mrb[0].mxu0
  %v220 = vpop.f32.mrb[0].mxu0
  %v221 = vadd.f32 0.0, %v220
  %v222 = vpop.f32.mrb[0].mxu0
  %223 = vmatprep.mubr.bf16.mxu0 0
  %224 = vmatmul.mubr.bf16.gmra.mrb[0].mxu0 %v158
  %v225 = vpop.f32.mrb[0].mxu0
  %v226 = vadd.f32 0.0, %v225
  %v227 = vpop.f32.mrb[0].mxu0
  %v228 = vpop.f32.mrb[0].mxu0
  %v229 = vadd.f32 0.0, %v228
  %v230 = vpop.f32.mrb[0].mxu0
  %231 = vmatprep.mubr.bf16.mxu0 0
  %232 = vmatmul.mubr.bf16.gmra.mrb[0].mxu0 %v161
  %v233 = vpop.f32.mrb[0].mxu0
  %v234 = vadd.f32 0.0, %v233
  %v235 = vpop.f32.mrb[0].mxu0
  %v236 = vpop.f32.mrb[0].mxu0
  %v237 = vadd.f32 0.0, %v236
  %v238 = vpop.f32.mrb[0].mxu0
  %239 = vmatprep.mubr.bf16.mxu0 0
  %240 = vmatmul.mubr.bf16.gmra.mrb[0].mxu0 %v164
  %v241 = vpop.f32.mrb[0].mxu0
  %v242 = vadd.f32 0.0, %v241
  %v243 = vpop.f32.mrb[0].mxu0
  %v244 = vpop.f32.mrb[0].mxu0
  %v245 = vadd.f32 0.0, %v244
  %v246 = vpop.f32.mrb[0].mxu0
  %247 = vmatprep.mubr.bf16.mxu0 0
  %248 = vmatmul.mubr.bf16.gmra.mrb[0].mxu0 %v167
  %v249 = vpop.f32.mrb[0].mxu0
  %v250 = vadd.f32 0.0, %v249
  %v251 = vpop.f32.mrb[0].mxu0
  %v252 = vpop.f32.mrb[0].mxu0
  %v253 = vadd.f32 0.0, %v252
  %v254 = vpop.f32.mrb[0].mxu0
  %255 = vmatprep.mubr.bf16.mxu0 0
  %256 = vmatmul.mubr.bf16.gmra.mrb[0].mxu0 %v170
  %v257 = vpop.f32.mrb[0].mxu0
  %v258 = vadd.f32 0.0, %v257
  %v259 = vpop.f32.mrb[0].mxu0
  %v260 = vpop.f32.mrb[0].mxu0
  %v261 = vadd.f32 0.0, %v260
  %v262 = vpop.f32.mrb[0].mxu0
  %263 = vmatprep.mubr.bf16.mxu0 0
  %264 = vmatmul.mubr.bf16.gmra.mrb[0].mxu0 %v173
  %v265 = vpop.f32.mrb[0].mxu0
  %v266 = vadd.f32 0.0, %v265
  %v267 = vpop.f32.mrb[0].mxu0
  %v268 = vpop.f32.mrb[0].mxu0
  %v269 = vpop.f32.mrb[0].mxu0
  %270 = vdwg.mxu0
  %v273 = vunpack.c.l.b16 %v37
  %v274 = vunpack.c.l.b16 %v38
  %v275 = vpack.c.b16 %v274, %v273
  %v277 = vsel %vm150, %v72, 0
  %v279 = vsel %vm150, %v73, 0
  %v281 = vsel %vm150, %v74, 0
  %v283 = vsel %vm150, %v75, 0
  %v285 = vsel %vm150, %v76, 0
  %v287 = vsel %vm150, %v77, 0
  %v289 = vsel %vm150, %v78, 0
  %v291 = vsel %vm150, %v79, 0
  %293 = vmatprep.subr.bf16.mxu0 0
  %294 = vmatpush1.bf16.msra.mxu0 %v275
  %295 = vmatprep.subr.bf16.mxu0 0
  %296 = vmatpush1.bf16.msra.mxu0 0
  %297 = vmatprep.subr.bf16.mxu0 0
  %298 = vmatpush1.bf16.msra.mxu0 0
  %299 = vmatprep.subr.bf16.mxu0 0
  %300 = vmatpush1.bf16.msra.mxu0 0
  %301 = vmatprep.subr.bf16.mxu0 0
  %302 = vmatpush1.bf16.msra.mxu0 0
  %303 = vmatprep.subr.bf16.mxu0 0
  %304 = vmatpush1.bf16.msra.mxu0 0
  %305 = vmatprep.subr.bf16.mxu0 0
  %306 = vmatpush1.bf16.msra.mxu0 0
  %307 = vmatprep.subr.bf16.mxu0 0
  %308 = vmatpush1.bf16.msra.mxu0 0
  %309 = vmatprep.subr.bf16.mxu0 0
  %310 = vmatpush1.bf16.msra.mxu0 0
  %311 = vmatprep.subr.bf16.mxu0 0
  %312 = vmatpush1.bf16.msra.mxu0 0
  %313 = vmatprep.subr.bf16.mxu0 0
  %314 = vmatpush1.bf16.msra.mxu0 0
  %315 = vmatprep.subr.bf16.mxu0 0
  %316 = vmatpush1.bf16.msra.mxu0 0
  %317 = vmatprep.subr.bf16.mxu0 0
  %318 = vmatpush1.bf16.msra.mxu0 0
  %319 = vmatprep.subr.bf16.mxu0 0
  %320 = vmatpush1.bf16.msra.mxu0 0
  %321 = vmatprep.subr.bf16.mxu0 0
  %322 = vmatpush1.bf16.msra.mxu0 0
  %323 = vmatprep.subr.bf16.mxu0 0
  %324 = vmatpush1.bf16.msra.mxu0 0
  %325 = vmatprep.mubr.bf16.mxu0 0
  %326 = vmatmul.mubr.bf16.gmra.mrb[0].mxu0 %v277
  %v327 = vpop.f32.mrb[0].mxu0
  %v328 = vadd.f32 %v210, %v327
  %v329 = vpop.f32.mrb[0].mxu0
  %v330 = vpop.f32.mrb[0].mxu0
  %v331 = vadd.f32 %v213, %v330
  %v332 = vpop.f32.mrb[0].mxu0
  %333 = vmatprep.mubr.bf16.mxu0 0
  %334 = vmatmul.mubr.bf16.gmra.mrb[0].mxu0 %v279
  %v335 = vpop.f32.mrb[0].mxu0
  %v336 = vadd.f32 %v218, %v335
  %v337 = vpop.f32.mrb[0].mxu0
  %v338 = vpop.f32.mrb[0].mxu0
  %v339 = vadd.f32 %v221, %v338
  %v340 = vpop.f32.mrb[0].mxu0
  %341 = vmatprep.mubr.bf16.mxu0 0
  %342 = vmatmul.mubr.bf16.gmra.mrb[0].mxu0 %v281
  %v343 = vpop.f32.mrb[0].mxu0
  %v344 = vadd.f32 %v226, %v343
  %v345 = vpop.f32.mrb[0].mxu0
  %v346 = vpop.f32.mrb[0].mxu0
  %v347 = vadd.f32 %v229, %v346
  %v348 = vpop.f32.mrb[0].mxu0
  %349 = vmatprep.mubr.bf16.mxu0 0
  %350 = vmatmul.mubr.bf16.gmra.mrb[0].mxu0 %v283
  %v351 = vpop.f32.mrb[0].mxu0
  %v352 = vadd.f32 %v234, %v351
  %v353 = vpop.f32.mrb[0].mxu0
  %v354 = vpop.f32.mrb[0].mxu0
  %v355 = vadd.f32 %v237, %v354
  %v356 = vpop.f32.mrb[0].mxu0
  %357 = vmatprep.mubr.bf16.mxu0 0
  %358 = vmatmul.mubr.bf16.gmra.mrb[0].mxu0 %v285
  %v359 = vpop.f32.mrb[0].mxu0
  %v360 = vadd.f32 %v242, %v359
  %v361 = vpop.f32.mrb[0].mxu0
  %v362 = vpop.f32.mrb[0].mxu0
  %v363 = vadd.f32 %v245, %v362
  %v364 = vpop.f32.mrb[0].mxu0
  %365 = vmatprep.mubr.bf16.mxu0 0
  %366 = vmatmul.mubr.bf16.gmra.mrb[0].mxu0 %v287
  %v367 = vpop.f32.mrb[0].mxu0
  %v368 = vadd.f32 %v250, %v367
  %v369 = vpop.f32.mrb[0].mxu0
  %v370 = vpop.f32.mrb[0].mxu0
  %v371 = vadd.f32 %v253, %v370
  %v372 = vpop.f32.mrb[0].mxu0
  %373 = vmatprep.mubr.bf16.mxu0 0
  %374 = vmatmul.mubr.bf16.gmra.mrb[0].mxu0 %v289
  %v375 = vpop.f32.mrb[0].mxu0
  %v376 = vadd.f32 %v258, %v375
  %v377 = vpop.f32.mrb[0].mxu0
  %v378 = vpop.f32.mrb[0].mxu0
  %v379 = vadd.f32 %v261, %v378
  %v380 = vpop.f32.mrb[0].mxu0
  %381 = vmatprep.mubr.bf16.mxu0 0
  %382 = vmatmul.mubr.bf16.gmra.mrb[0].mxu0 %v291
  %v383 = vpop.f32.mrb[0].mxu0
  %v384 = vadd.f32 %v266, %v383
  %v385 = vpop.f32.mrb[0].mxu0
  %v386 = vpop.f32.mrb[0].mxu0
  %v387 = vpop.f32.mrb[0].mxu0
  %388 = vdwg.mxu0
  %s389 = scalar_lea.vmem %s1, 16
  %v390 = vld [vmem:[%s389] sm:$0xf]
  %v391 = vld [vmem:[%s389 + $0x4] sm:$0xf]
  %v393 = vunpack.c.l.b16 %v36
  %v394 = vpack.c.b16 %v59, %v58
  %v395 = vpack.c.b16 %v61, %v60
  %v396 = vpack.c.b16 %v63, %v62
  %v397 = vpack.c.b16 %v65, %v64
  %v398 = vpack.c.b16 %v67, %v66
  %v399 = vpack.c.b16 %v69, %v68
  %v400 = vpack.c.b16 %v71, %v70
  %v401 = vpack.c.b16 %v393, %v393
  %v404 = vunpack.c.l.b16 %v390
  %v405 = vunpack.c.l.b16 %v391
  %v406 = vpack.c.b16 %v405, %v404
  %v409 = vsel %vm150, %v394, 0
  %v412 = vsel %vm150, %v395, 0
  %v415 = vsel %vm150, %v396, 0
  %v418 = vsel %vm150, %v397, 0
  %v421 = vsel %vm150, %v398, 0
  %v424 = vsel %vm150, %v399, 0
  %v427 = vsel %vm150, %v400, 0
  %v430 = vsel %vm150, %v401, 0
  %432 = vmatprep.subr.bf16.mxu0 0
  %433 = vmatpush1.bf16.msra.mxu0 %v406
  %434 = vmatprep.subr.bf16.mxu0 0
  %435 = vmatpush1.bf16.msra.mxu0 0
  %436 = vmatprep.subr.bf16.mxu0 0
  %437 = vmatpush1.bf16.msra.mxu0 0
  %438 = vmatprep.subr.bf16.mxu0 0
  %439 = vmatpush1.bf16.msra.mxu0 0
  %440 = vmatprep.subr.bf16.mxu0 0
  %441 = vmatpush1.bf16.msra.mxu0 0
  %442 = vmatprep.subr.bf16.mxu0 0
  %443 = vmatpush1.bf16.msra.mxu0 0
  %444 = vmatprep.subr.bf16.mxu0 0
  %445 = vmatpush1.bf16.msra.mxu0 0
  %446 = vmatprep.subr.bf16.mxu0 0
  %447 = vmatpush1.bf16.msra.mxu0 0
  %448 = vmatprep.subr.bf16.mxu0 0
  %449 = vmatpush1.bf16.msra.mxu0 0
  %450 = vmatprep.subr.bf16.mxu0 0
  %451 = vmatpush1.bf16.msra.mxu0 0
  %452 = vmatprep.subr.bf16.mxu0 0
  %453 = vmatpush1.bf16.msra.mxu0 0
  %454 = vmatprep.subr.bf16.mxu0 0
  %455 = vmatpush1.bf16.msra.mxu0 0
  %456 = vmatprep.subr.bf16.mxu0 0
  %457 = vmatpush1.bf16.msra.mxu0 0
  %458 = vmatprep.subr.bf16.mxu0 0
  %459 = vmatpush1.bf16.msra.mxu0 0
  %460 = vmatprep.subr.bf16.mxu0 0
  %461 = vmatpush1.bf16.msra.mxu0 0
  %462 = vmatprep.subr.bf16.mxu0 0
  %463 = vmatpush1.bf16.msra.mxu0 0
  %464 = vmatprep.mubr.bf16.mxu0 0
  %465 = vmatmul.mubr.bf16.gmra.mrb[0].mxu0 %v409
  %v466 = vpop.f32.mrb[0].mxu0
  %v467 = vadd.f32 0.0, %v466
  %v468 = vpop.f32.mrb[0].mxu0
  %v469 = vpop.f32.mrb[0].mxu0
  %v470 = vadd.f32 0.0, %v469
  %v471 = vpop.f32.mrb[0].mxu0
  %472 = vmatprep.mubr.bf16.mxu0 0
  %473 = vmatmul.mubr.bf16.gmra.mrb[0].mxu0 %v412
  %v474 = vpop.f32.mrb[0].mxu0
  %v475 = vadd.f32 0.0, %v474
  %v476 = vpop.f32.mrb[0].mxu0
  %v477 = vpop.f32.mrb[0].mxu0
  %v478 = vadd.f32 0.0, %v477
  %v479 = vpop.f32.mrb[0].mxu0
  %480 = vmatprep.mubr.bf16.mxu0 0
  %481 = vmatmul.mubr.bf16.gmra.mrb[0].mxu0 %v415
  %v482 = vpop.f32.mrb[0].mxu0
  %v483 = vadd.f32 0.0, %v482
  %v484 = vpop.f32.mrb[0].mxu0
  %v485 = vpop.f32.mrb[0].mxu0
  %v486 = vadd.f32 0.0, %v485
  %v487 = vpop.f32.mrb[0].mxu0
  %488 = vmatprep.mubr.bf16.mxu0 0
  %489 = vmatmul.mubr.bf16.gmra.mrb[0].mxu0 %v418
  %v490 = vpop.f32.mrb[0].mxu0
  %v491 = vadd.f32 0.0, %v490
  %v492 = vpop.f32.mrb[0].mxu0
  %v493 = vpop.f32.mrb[0].mxu0
  %v494 = vadd.f32 0.0, %v493
  %v495 = vpop.f32.mrb[0].mxu0
  %496 = vmatprep.mubr.bf16.mxu0 0
  %497 = vmatmul.mubr.bf16.gmra.mrb[0].mxu0 %v421
  %v498 = vpop.f32.mrb[0].mxu0
  %v499 = vadd.f32 0.0, %v498
  %v500 = vpop.f32.mrb[0].mxu0
  %v501 = vpop.f32.mrb[0].mxu0
  %v502 = vadd.f32 0.0, %v501
  %v503 = vpop.f32.mrb[0].mxu0
  %504 = vmatprep.mubr.bf16.mxu0 0
  %505 = vmatmul.mubr.bf16.gmra.mrb[0].mxu0 %v424
  %v506 = vpop.f32.mrb[0].mxu0
  %v507 = vadd.f32 0.0, %v506
  %v508 = vpop.f32.mrb[0].mxu0
  %v509 = vpop.f32.mrb[0].mxu0
  %v510 = vadd.f32 0.0, %v509
  %v511 = vpop.f32.mrb[0].mxu0
  %512 = vmatprep.mubr.bf16.mxu0 0
  %513 = vmatmul.mubr.bf16.gmra.mrb[0].mxu0 %v427
  %v514 = vpop.f32.mrb[0].mxu0
  %v515 = vadd.f32 0.0, %v514
  %v516 = vpop.f32.mrb[0].mxu0
  %v517 = vpop.f32.mrb[0].mxu0
  %v518 = vadd.f32 0.0, %v517
  %v519 = vpop.f32.mrb[0].mxu0
  %520 = vmatprep.mubr.bf16.mxu0 0
  %521 = vmatmul.mubr.bf16.gmra.mrb[0].mxu0 %v430
  %v522 = vpop.f32.mrb[0].mxu0
  %v523 = vadd.f32 0.0, %v522
  %v524 = vpop.f32.mrb[0].mxu0
  %v525 = vpop.f32.mrb[0].mxu0
  %v526 = vpop.f32.mrb[0].mxu0
  %527 = vdwg.mxu0
  %v528 = vadd.f32 %v328, %v467
  %v529 = vadd.f32 %v331, %v470
  %v530 = vadd.f32 %v336, %v475
  %v531 = vadd.f32 %v339, %v478
  %v532 = vadd.f32 %v344, %v483
  %v533 = vadd.f32 %v347, %v486
  %v534 = vadd.f32 %v352, %v491
  %v535 = vadd.f32 %v355, %v494
  %v536 = vadd.f32 %v360, %v499
  %v537 = vadd.f32 %v363, %v502
  %v538 = vadd.f32 %v368, %v507
  %v539 = vadd.f32 %v371, %v510
  %v540 = vadd.f32 %v376, %v515
  %v541 = vadd.f32 %v379, %v518
  %v542 = vadd.f32 %v384, %v523
  %s543 = scalar_lea.vmem %s1, 24
  %v544 = vld [vmem:[%s543] sm:$0xf]
  %v545 = vld [vmem:[%s543 + $0x4] sm:$0xf]
  %v546 = vshrl.u32 %v394, 16
  %v548 = vshll.u32 %v394, 16
  %v550 = vrot.slane %v548, 1
  %v551 = vor.u32 %v546, %v550
  %v552 = vshll.u32 %v395, 16
  %v554 = vrot.slane %v552, 1
  %v555 = vsel %vm80, %v551, %v554
  %v556 = vshrl.u32 %v395, 16
  %v558 = vor.u32 %v556, %v554
  %v559 = vshll.u32 %v396, 16
  %v561 = vrot.slane %v559, 1
  %v562 = vsel %vm80, %v558, %v561
  %v563 = vshrl.u32 %v396, 16
  %v565 = vor.u32 %v563, %v561
  %v566 = vshll.u32 %v397, 16
  %v568 = vrot.slane %v566, 1
  %v569 = vsel %vm80, %v565, %v568
  %v570 = vshrl.u32 %v397, 16
  %v572 = vor.u32 %v570, %v568
  %v573 = vshll.u32 %v398, 16
  %v575 = vrot.slane %v573, 1
  %v576 = vsel %vm80, %v572, %v575
  %v577 = vshrl.u32 %v398, 16
  %v579 = vor.u32 %v577, %v575
  %v580 = vshll.u32 %v399, 16
  %v582 = vrot.slane %v580, 1
  %v583 = vsel %vm80, %v579, %v582
  %v584 = vshrl.u32 %v399, 16
  %v586 = vor.u32 %v584, %v582
  %v587 = vshll.u32 %v400, 16
  %v589 = vrot.slane %v587, 1
  %v590 = vsel %vm80, %v586, %v589
  %v591 = vshrl.u32 %v400, 16
  %v593 = vor.u32 %v591, %v589
  %v594 = vshll.u32 %v401, 16
  %v596 = vrot.slane %v594, 1
  %v597 = vsel %vm80, %v593, %v596
  %v598 = vshrl.u32 %v401, 16
  %v600 = vor.u32 %v598, %v596
  %v603 = vunpack.c.l.b16 %v544
  %v604 = vunpack.c.l.b16 %v545
  %v605 = vpack.c.b16 %v604, %v603
  %v608 = vsel %vm150, %v555, 0
  %v611 = vsel %vm150, %v562, 0
  %v614 = vsel %vm150, %v569, 0
  %v617 = vsel %vm150, %v576, 0
  %v620 = vsel %vm150, %v583, 0
  %v623 = vsel %vm150, %v590, 0
  %v626 = vsel %vm150, %v597, 0
  %v629 = vsel %vm150, %v600, 0
  %631 = vmatprep.subr.bf16.mxu0 0
  %632 = vmatpush1.bf16.msra.mxu0 %v605
  %633 = vmatprep.subr.bf16.mxu0 0
  %634 = vmatpush1.bf16.msra.mxu0 0
  %635 = vmatprep.subr.bf16.mxu0 0
  %636 = vmatpush1.bf16.msra.mxu0 0
  %637 = vmatprep.subr.bf16.mxu0 0
  %638 = vmatpush1.bf16.msra.mxu0 0
  %639 = vmatprep.subr.bf16.mxu0 0
  %640 = vmatpush1.bf16.msra.mxu0 0
  %641 = vmatprep.subr.bf16.mxu0 0
  %642 = vmatpush1.bf16.msra.mxu0 0
  %643 = vmatprep.subr.bf16.mxu0 0
  %644 = vmatpush1.bf16.msra.mxu0 0
  %645 = vmatprep.subr.bf16.mxu0 0
  %646 = vmatpush1.bf16.msra.mxu0 0
  %647 = vmatprep.subr.bf16.mxu0 0
  %648 = vmatpush1.bf16.msra.mxu0 0
  %649 = vmatprep.subr.bf16.mxu0 0
  %650 = vmatpush1.bf16.msra.mxu0 0
  %651 = vmatprep.subr.bf16.mxu0 0
  %652 = vmatpush1.bf16.msra.mxu0 0
  %653 = vmatprep.subr.bf16.mxu0 0
  %654 = vmatpush1.bf16.msra.mxu0 0
  %655 = vmatprep.subr.bf16.mxu0 0
  %656 = vmatpush1.bf16.msra.mxu0 0
  %657 = vmatprep.subr.bf16.mxu0 0
  %658 = vmatpush1.bf16.msra.mxu0 0
  %659 = vmatprep.subr.bf16.mxu0 0
  %660 = vmatpush1.bf16.msra.mxu0 0
  %661 = vmatprep.subr.bf16.mxu0 0
  %662 = vmatpush1.bf16.msra.mxu0 0
  %663 = vmatprep.mubr.bf16.mxu0 0
  %664 = vmatmul.mubr.bf16.gmra.mrb[0].mxu0 %v608
  %v665 = vpop.f32.mrb[0].mxu0
  %v666 = vadd.f32 0.0, %v665
  %v667 = vpop.f32.mrb[0].mxu0
  %v668 = vpop.f32.mrb[0].mxu0
  %v669 = vadd.f32 0.0, %v668
  %v670 = vpop.f32.mrb[0].mxu0
  %671 = vmatprep.mubr.bf16.mxu0 0
  %672 = vmatmul.mubr.bf16.gmra.mrb[0].mxu0 %v611
  %v673 = vpop.f32.mrb[0].mxu0
  %v674 = vadd.f32 0.0, %v673
  %v675 = vpop.f32.mrb[0].mxu0
  %v676 = vpop.f32.mrb[0].mxu0
  %v677 = vadd.f32 0.0, %v676
  %v678 = vpop.f32.mrb[0].mxu0
  %679 = vmatprep.mubr.bf16.mxu0 0
  %680 = vmatmul.mubr.bf16.gmra.mrb[0].mxu0 %v614
  %v681 = vpop.f32.mrb[0].mxu0
  %v682 = vadd.f32 0.0, %v681
  %v683 = vpop.f32.mrb[0].mxu0
  %v684 = vpop.f32.mrb[0].mxu0
  %v685 = vadd.f32 0.0, %v684
  %v686 = vpop.f32.mrb[0].mxu0
  %687 = vmatprep.mubr.bf16.mxu0 0
  %688 = vmatmul.mubr.bf16.gmra.mrb[0].mxu0 %v617
  %v689 = vpop.f32.mrb[0].mxu0
  %v690 = vadd.f32 0.0, %v689
  %v691 = vpop.f32.mrb[0].mxu0
  %v692 = vpop.f32.mrb[0].mxu0
  %v693 = vadd.f32 0.0, %v692
  %v694 = vpop.f32.mrb[0].mxu0
  %695 = vmatprep.mubr.bf16.mxu0 0
  %696 = vmatmul.mubr.bf16.gmra.mrb[0].mxu0 %v620
  %v697 = vpop.f32.mrb[0].mxu0
  %v698 = vadd.f32 0.0, %v697
  %v699 = vpop.f32.mrb[0].mxu0
  %v700 = vpop.f32.mrb[0].mxu0
  %v701 = vadd.f32 0.0, %v700
  %v702 = vpop.f32.mrb[0].mxu0
  %703 = vmatprep.mubr.bf16.mxu0 0
  %704 = vmatmul.mubr.bf16.gmra.mrb[0].mxu0 %v623
  %v705 = vpop.f32.mrb[0].mxu0
  %v706 = vadd.f32 0.0, %v705
  %v707 = vpop.f32.mrb[0].mxu0
  %v708 = vpop.f32.mrb[0].mxu0
  %v709 = vadd.f32 0.0, %v708
  %v710 = vpop.f32.mrb[0].mxu0
  %711 = vmatprep.mubr.bf16.mxu0 0
  %712 = vmatmul.mubr.bf16.gmra.mrb[0].mxu0 %v626
  %v713 = vpop.f32.mrb[0].mxu0
  %v714 = vadd.f32 0.0, %v713
  %v715 = vpop.f32.mrb[0].mxu0
  %v716 = vpop.f32.mrb[0].mxu0
  %v717 = vadd.f32 0.0, %v716
  %v718 = vpop.f32.mrb[0].mxu0
  %719 = vmatprep.mubr.bf16.mxu0 0
  %720 = vmatmul.mubr.bf16.gmra.mrb[0].mxu0 %v629
  %v721 = vpop.f32.mrb[0].mxu0
  %v722 = vadd.f32 0.0, %v721
  %v723 = vpop.f32.mrb[0].mxu0
  %v724 = vpop.f32.mrb[0].mxu0
  %v725 = vpop.f32.mrb[0].mxu0
  %726 = vdwg.mxu0
  %v727 = vadd.f32 %v528, %v666
  %v728 = vadd.f32 %v529, %v669
  %v729 = vadd.f32 %v530, %v674
  %v730 = vadd.f32 %v531, %v677
  %v731 = vadd.f32 %v532, %v682
  %v732 = vadd.f32 %v533, %v685
  %v733 = vadd.f32 %v534, %v690
  %v734 = vadd.f32 %v535, %v693
  %v735 = vadd.f32 %v536, %v698
  %v736 = vadd.f32 %v537, %v701
  %v737 = vadd.f32 %v538, %v706
  %v738 = vadd.f32 %v539, %v709
  %v739 = vadd.f32 %v540, %v714
  %v740 = vadd.f32 %v541, %v717
  %v741 = vadd.f32 %v542, %v722
  %v742 = vld [vmem:[%s2] sm:$0x1]
  %v744 = vlaneseq
  %v745 = vshrl.u32 %v744, 7
  %v746 = vsub.s32 0, %v745
  %v747 = vrot.slane %v742, %v746
  %v749 = vadd.f32 %v727, %v747
  %v750 = vadd.f32 %v728, %v747
  %v751 = vadd.f32 %v729, %v747
  %v752 = vadd.f32 %v730, %v747
  %v753 = vadd.f32 %v731, %v747
  %v754 = vadd.f32 %v732, %v747
  %v755 = vadd.f32 %v733, %v747
  %v756 = vadd.f32 %v734, %v747
  %v757 = vadd.f32 %v735, %v747
  %v758 = vadd.f32 %v736, %v747
  %v759 = vadd.f32 %v737, %v747
  %v760 = vadd.f32 %v738, %v747
  %v761 = vadd.f32 %v739, %v747
  %v762 = vadd.f32 %v740, %v747
  %v763 = vadd.f32 %v741, %v747
  %v764 = vmax.f32 %v749, 0.0
  %v765 = vmax.f32 %v750, 0.0
  %v766 = vmax.f32 %v751, 0.0
  %v767 = vmax.f32 %v752, 0.0
  %v768 = vmax.f32 %v753, 0.0
  %v769 = vmax.f32 %v754, 0.0
  %v770 = vmax.f32 %v755, 0.0
  %v771 = vmax.f32 %v756, 0.0
  %v772 = vmax.f32 %v757, 0.0
  %v773 = vmax.f32 %v758, 0.0
  %v774 = vmax.f32 %v759, 0.0
  %v775 = vmax.f32 %v760, 0.0
  %v776 = vmax.f32 %v761, 0.0
  %v777 = vmax.f32 %v762, 0.0
  %v778 = vmax.f32 %v763, 0.0
  %v779 = vpack.c.bf16 %v765, %v764
  %v780 = vpack.c.bf16 %v767, %v766
  %v781 = vpack.c.bf16 %v769, %v768
  %v782 = vpack.c.bf16 %v771, %v770
  %v783 = vpack.c.bf16 %v773, %v772
  %v784 = vpack.c.bf16 %v775, %v774
  %v785 = vpack.c.bf16 %v777, %v776
  %v786 = vpack.c.bf16 %v778, %v778
  %v787 = vld [vmem:[%s3] sm:$0xf]
  %s788 = scalar_lea.vmem %s3, 4
  %v789 = vld [vmem:[%s788] sm:$0xf]
  %v791 = vshrl.u32 %v779, 16
  %v793 = vshll.u32 %v779, 16
  %v795 = vrot.slane %v793, 1
  %v796 = vor.u32 %v791, %v795
  %v798 = vshll.u32 %v780, 16
  %v800 = vrot.slane %v798, 1
  %v801 = vsel %vm80, %v796, %v800
  %v802 = vshrl.u32 %v780, 16
  %v804 = vor.u32 %v802, %v800
  %v806 = vshll.u32 %v781, 16
  %v808 = vrot.slane %v806, 1
  %v809 = vsel %vm80, %v804, %v808
  %v810 = vshrl.u32 %v781, 16
  %v812 = vor.u32 %v810, %v808
  %v814 = vshll.u32 %v782, 16
  %v816 = vrot.slane %v814, 1
  %v817 = vsel %vm80, %v812, %v816
  %v818 = vshrl.u32 %v782, 16
  %v820 = vor.u32 %v818, %v816
  %v822 = vshll.u32 %v783, 16
  %v824 = vrot.slane %v822, 1
  %v825 = vsel %vm80, %v820, %v824
  %v826 = vshrl.u32 %v783, 16
  %v828 = vor.u32 %v826, %v824
  %v830 = vshll.u32 %v784, 16
  %v832 = vrot.slane %v830, 1
  %v833 = vsel %vm80, %v828, %v832
  %v834 = vshrl.u32 %v784, 16
  %v836 = vor.u32 %v834, %v832
  %v838 = vshll.u32 %v785, 16
  %v840 = vrot.slane %v838, 1
  %v841 = vsel %vm80, %v836, %v840
  %v842 = vshrl.u32 %v785, 16
  %v844 = vor.u32 %v842, %v840
  %vm845 = vcmask 64512
  %v847 = vsel %vm845, %v801, 0
  %v850 = vsel %vm845, %v809, 0
  %v853 = vsel %vm845, %v817, 0
  %v856 = vsel %vm845, %v825, 0
  %v859 = vsel %vm845, %v833, 0
  %v862 = vsel %vm845, %v841, 0
  %v865 = vsel %vm845, %v844, 0
  %vm867 = vcmask 1043456
  %v869 = vsel %vm867, %v789, 0
  %871 = vmatprep.subr.bf16.mxu0 0
  %872 = vmatpush1.bf16.msra.mxu0 %v869
  %873 = vmatprep.subr.bf16.mxu0 0
  %874 = vmatpush1.bf16.msra.mxu0 0
  %875 = vmatprep.subr.bf16.mxu0 0
  %876 = vmatpush1.bf16.msra.mxu0 0
  %877 = vmatprep.subr.bf16.mxu0 0
  %878 = vmatpush1.bf16.msra.mxu0 0
  %879 = vmatprep.subr.bf16.mxu0 0
  %880 = vmatpush1.bf16.msra.mxu0 0
  %881 = vmatprep.subr.bf16.mxu0 0
  %882 = vmatpush1.bf16.msra.mxu0 0
  %883 = vmatprep.subr.bf16.mxu0 0
  %884 = vmatpush1.bf16.msra.mxu0 0
  %885 = vmatprep.subr.bf16.mxu0 0
  %886 = vmatpush1.bf16.msra.mxu0 0
  %887 = vmatprep.subr.bf16.mxu0 0
  %888 = vmatpush1.bf16.msra.mxu0 0
  %889 = vmatprep.subr.bf16.mxu0 0
  %890 = vmatpush1.bf16.msra.mxu0 0
  %891 = vmatprep.subr.bf16.mxu0 0
  %892 = vmatpush1.bf16.msra.mxu0 0
  %893 = vmatprep.subr.bf16.mxu0 0
  %894 = vmatpush1.bf16.msra.mxu0 0
  %895 = vmatprep.subr.bf16.mxu0 0
  %896 = vmatpush1.bf16.msra.mxu0 0
  %897 = vmatprep.subr.bf16.mxu0 0
  %898 = vmatpush1.bf16.msra.mxu0 0
  %899 = vmatprep.subr.bf16.mxu0 0
  %900 = vmatpush1.bf16.msra.mxu0 0
  %901 = vmatprep.subr.bf16.mxu0 0
  %902 = vmatpush1.bf16.msra.mxu0 0
  %903 = vmatprep.mubr.bf16.mxu0 0
  %904 = vmatmul.mubr.bf16.gmra.mrb[0].mxu0 %v847
  %v905 = vpop.f32.mrb[0].mxu0
  %v906 = vadd.f32 0.0, %v905
  %v907 = vpop.f32.mrb[0].mxu0
  %v908 = vpop.f32.mrb[0].mxu0
  %v909 = vadd.f32 0.0, %v908
  %v910 = vpop.f32.mrb[0].mxu0
  %911 = vmatprep.mubr.bf16.mxu0 0
  %912 = vmatmul.mubr.bf16.gmra.mrb[0].mxu0 %v850
  %v913 = vpop.f32.mrb[0].mxu0
  %v914 = vadd.f32 0.0, %v913
  %v915 = vpop.f32.mrb[0].mxu0
  %v916 = vpop.f32.mrb[0].mxu0
  %v917 = vadd.f32 0.0, %v916
  %v918 = vpop.f32.mrb[0].mxu0
  %919 = vmatprep.mubr.bf16.mxu0 0
  %920 = vmatmul.mubr.bf16.gmra.mrb[0].mxu0 %v853
  %v921 = vpop.f32.mrb[0].mxu0
  %v922 = vadd.f32 0.0, %v921
  %v923 = vpop.f32.mrb[0].mxu0
  %v924 = vpop.f32.mrb[0].mxu0
  %v925 = vadd.f32 0.0, %v924
  %v926 = vpop.f32.mrb[0].mxu0
  %927 = vmatprep.mubr.bf16.mxu0 0
  %928 = vmatmul.mubr.bf16.gmra.mrb[0].mxu0 %v856
  %v929 = vpop.f32.mrb[0].mxu0
  %v930 = vadd.f32 0.0, %v929
  %v931 = vpop.f32.mrb[0].mxu0
  %v932 = vpop.f32.mrb[0].mxu0
  %v933 = vadd.f32 0.0, %v932
  %v934 = vpop.f32.mrb[0].mxu0
  %935 = vmatprep.mubr.bf16.mxu0 0
  %936 = vmatmul.mubr.bf16.gmra.mrb[0].mxu0 %v859
  %v937 = vpop.f32.mrb[0].mxu0
  %v938 = vadd.f32 0.0, %v937
  %v939 = vpop.f32.mrb[0].mxu0
  %v940 = vpop.f32.mrb[0].mxu0
  %v941 = vadd.f32 0.0, %v940
  %v942 = vpop.f32.mrb[0].mxu0
  %943 = vmatprep.mubr.bf16.mxu0 0
  %944 = vmatmul.mubr.bf16.gmra.mrb[0].mxu0 %v862
  %v945 = vpop.f32.mrb[0].mxu0
  %v946 = vadd.f32 0.0, %v945
  %v947 = vpop.f32.mrb[0].mxu0
  %v948 = vpop.f32.mrb[0].mxu0
  %v949 = vadd.f32 0.0, %v948
  %v950 = vpop.f32.mrb[0].mxu0
  %951 = vmatprep.mubr.bf16.mxu0 0
  %952 = vmatmul.mubr.bf16.gmra.mrb[0].mxu0 %v865
  %v953 = vpop.f32.mrb[0].mxu0
  %v954 = vadd.f32 0.0, %v953
  %v955 = vpop.f32.mrb[0].mxu0
  %v956 = vpop.f32.mrb[0].mxu0
  %v957 = vpop.f32.mrb[0].mxu0
  %958 = vdwg.mxu0
  %v959 = vsel %vm845, %v779, 0
  %v961 = vsel %vm845, %v780, 0
  %v963 = vsel %vm845, %v781, 0
  %v965 = vsel %vm845, %v782, 0
  %v967 = vsel %vm845, %v783, 0
  %v969 = vsel %vm845, %v784, 0
  %v971 = vsel %vm845, %v785, 0
  %v974 = vsel %vm867, %v787, 0
  %976 = vmatprep.subr.bf16.mxu0 0
  %977 = vmatpush1.bf16.msra.mxu0 %v974
  %978 = vmatprep.subr.bf16.mxu0 0
  %979 = vmatpush1.bf16.msra.mxu0 0
  %980 = vmatprep.subr.bf16.mxu0 0
  %981 = vmatpush1.bf16.msra.mxu0 0
  %982 = vmatprep.subr.bf16.mxu0 0
  %983 = vmatpush1.bf16.msra.mxu0 0
  %984 = vmatprep.subr.bf16.mxu0 0
  %985 = vmatpush1.bf16.msra.mxu0 0
  %986 = vmatprep.subr.bf16.mxu0 0
  %987 = vmatpush1.bf16.msra.mxu0 0
  %988 = vmatprep.subr.bf16.mxu0 0
  %989 = vmatpush1.bf16.msra.mxu0 0
  %990 = vmatprep.subr.bf16.mxu0 0
  %991 = vmatpush1.bf16.msra.mxu0 0
  %992 = vmatprep.subr.bf16.mxu0 0
  %993 = vmatpush1.bf16.msra.mxu0 0
  %994 = vmatprep.subr.bf16.mxu0 0
  %995 = vmatpush1.bf16.msra.mxu0 0
  %996 = vmatprep.subr.bf16.mxu0 0
  %997 = vmatpush1.bf16.msra.mxu0 0
  %998 = vmatprep.subr.bf16.mxu0 0
  %999 = vmatpush1.bf16.msra.mxu0 0
  %1000 = vmatprep.subr.bf16.mxu0 0
  %1001 = vmatpush1.bf16.msra.mxu0 0
  %1002 = vmatprep.subr.bf16.mxu0 0
  %1003 = vmatpush1.bf16.msra.mxu0 0
  %1004 = vmatprep.subr.bf16.mxu0 0
  %1005 = vmatpush1.bf16.msra.mxu0 0
  %1006 = vmatprep.subr.bf16.mxu0 0
  %1007 = vmatpush1.bf16.msra.mxu0 0
  %1008 = vmatprep.mubr.bf16.mxu0 0
  %1009 = vmatmul.mubr.bf16.gmra.mrb[0].mxu0 %v959
  %v1010 = vpop.f32.mrb[0].mxu0
  %v1011 = vadd.f32 %v906, %v1010
  %v1012 = vpop.f32.mrb[0].mxu0
  %v1013 = vpop.f32.mrb[0].mxu0
  %v1014 = vadd.f32 %v909, %v1013
  %v1015 = vpop.f32.mrb[0].mxu0
  %1016 = vmatprep.mubr.bf16.mxu0 0
  %1017 = vmatmul.mubr.bf16.gmra.mrb[0].mxu0 %v961
  %v1018 = vpop.f32.mrb[0].mxu0
  %v1019 = vadd.f32 %v914, %v1018
  %v1020 = vpop.f32.mrb[0].mxu0
  %v1021 = vpop.f32.mrb[0].mxu0
  %v1022 = vadd.f32 %v917, %v1021
  %v1023 = vpop.f32.mrb[0].mxu0
  %1024 = vmatprep.mubr.bf16.mxu0 0
  %1025 = vmatmul.mubr.bf16.gmra.mrb[0].mxu0 %v963
  %v1026 = vpop.f32.mrb[0].mxu0
  %v1027 = vadd.f32 %v922, %v1026
  %v1028 = vpop.f32.mrb[0].mxu0
  %v1029 = vpop.f32.mrb[0].mxu0
  %v1030 = vadd.f32 %v925, %v1029
  %v1031 = vpop.f32.mrb[0].mxu0
  %1032 = vmatprep.mubr.bf16.mxu0 0
  %1033 = vmatmul.mubr.bf16.gmra.mrb[0].mxu0 %v965
  %v1034 = vpop.f32.mrb[0].mxu0
  %v1035 = vadd.f32 %v930, %v1034
  %v1036 = vpop.f32.mrb[0].mxu0
  %v1037 = vpop.f32.mrb[0].mxu0
  %v1038 = vadd.f32 %v933, %v1037
  %v1039 = vpop.f32.mrb[0].mxu0
  %1040 = vmatprep.mubr.bf16.mxu0 0
  %1041 = vmatmul.mubr.bf16.gmra.mrb[0].mxu0 %v967
  %v1042 = vpop.f32.mrb[0].mxu0
  %v1043 = vadd.f32 %v938, %v1042
  %v1044 = vpop.f32.mrb[0].mxu0
  %v1045 = vpop.f32.mrb[0].mxu0
  %v1046 = vadd.f32 %v941, %v1045
  %v1047 = vpop.f32.mrb[0].mxu0
  %1048 = vmatprep.mubr.bf16.mxu0 0
  %1049 = vmatmul.mubr.bf16.gmra.mrb[0].mxu0 %v969
  %v1050 = vpop.f32.mrb[0].mxu0
  %v1051 = vadd.f32 %v946, %v1050
  %v1052 = vpop.f32.mrb[0].mxu0
  %v1053 = vpop.f32.mrb[0].mxu0
  %v1054 = vadd.f32 %v949, %v1053
  %v1055 = vpop.f32.mrb[0].mxu0
  %1056 = vmatprep.mubr.bf16.mxu0 0
  %1057 = vmatmul.mubr.bf16.gmra.mrb[0].mxu0 %v971
  %v1058 = vpop.f32.mrb[0].mxu0
  %v1059 = vadd.f32 %v954, %v1058
  %v1060 = vpop.f32.mrb[0].mxu0
  %v1061 = vpop.f32.mrb[0].mxu0
  %v1062 = vpop.f32.mrb[0].mxu0
  %1063 = vdwg.mxu0
  %s1064 = scalar_lea.vmem %s3, 8
  %v1065 = vld [vmem:[%s1064] sm:$0xf]
  %vm1073 = vcmask 1046528
  %v1074 = vrot.slane %v779, 1
  %v1075 = vrot.slane %v780, 1
  %v1076 = vsel %vm1073, %v1074, %v1075
  %v1077 = vrot.slane %v781, 1
  %v1078 = vsel %vm1073, %v1075, %v1077
  %v1079 = vrot.slane %v782, 1
  %v1080 = vsel %vm1073, %v1077, %v1079
  %v1081 = vrot.slane %v783, 1
  %v1082 = vsel %vm1073, %v1079, %v1081
  %v1083 = vrot.slane %v784, 1
  %v1084 = vsel %vm1073, %v1081, %v1083
  %v1085 = vrot.slane %v785, 1
  %v1086 = vsel %vm1073, %v1083, %v1085
  %v1088 = vsel %vm845, %v1076, 0
  %v1091 = vsel %vm845, %v1078, 0
  %v1094 = vsel %vm845, %v1080, 0
  %v1097 = vsel %vm845, %v1082, 0
  %v1100 = vsel %vm845, %v1084, 0
  %v1103 = vsel %vm845, %v1086, 0
  %v1106 = vsel %vm845, %v1085, 0
  %v1109 = vsel %vm867, %v1065, 0
  %1111 = vmatprep.subr.bf16.mxu0 0
  %1112 = vmatpush1.bf16.msra.mxu0 %v1109
  %1113 = vmatprep.subr.bf16.mxu0 0
  %1114 = vmatpush1.bf16.msra.mxu0 0
  %1115 = vmatprep.subr.bf16.mxu0 0
  %1116 = vmatpush1.bf16.msra.mxu0 0
  %1117 = vmatprep.subr.bf16.mxu0 0
  %1118 = vmatpush1.bf16.msra.mxu0 0
  %1119 = vmatprep.subr.bf16.mxu0 0
  %1120 = vmatpush1.bf16.msra.mxu0 0
  %1121 = vmatprep.subr.bf16.mxu0 0
  %1122 = vmatpush1.bf16.msra.mxu0 0
  %1123 = vmatprep.subr.bf16.mxu0 0
  %1124 = vmatpush1.bf16.msra.mxu0 0
  %1125 = vmatprep.subr.bf16.mxu0 0
  %1126 = vmatpush1.bf16.msra.mxu0 0
  %1127 = vmatprep.subr.bf16.mxu0 0
  %1128 = vmatpush1.bf16.msra.mxu0 0
  %1129 = vmatprep.subr.bf16.mxu0 0
  %1130 = vmatpush1.bf16.msra.mxu0 0
  %1131 = vmatprep.subr.bf16.mxu0 0
  %1132 = vmatpush1.bf16.msra.mxu0 0
  %1133 = vmatprep.subr.bf16.mxu0 0
  %1134 = vmatpush1.bf16.msra.mxu0 0
  %1135 = vmatprep.subr.bf16.mxu0 0
  %1136 = vmatpush1.bf16.msra.mxu0 0
  %1137 = vmatprep.subr.bf16.mxu0 0
  %1138 = vmatpush1.bf16.msra.mxu0 0
  %1139 = vmatprep.subr.bf16.mxu0 0
  %1140 = vmatpush1.bf16.msra.mxu0 0
  %1141 = vmatprep.subr.bf16.mxu0 0
  %1142 = vmatpush1.bf16.msra.mxu0 0
  %1143 = vmatprep.mubr.bf16.mxu0 0
  %1144 = vmatmul.mubr.bf16.gmra.mrb[0].mxu0 %v1088
  %v1145 = vpop.f32.mrb[0].mxu0
  %v1146 = vadd.f32 0.0, %v1145
  %v1147 = vpop.f32.mrb[0].mxu0
  %v1148 = vpop.f32.mrb[0].mxu0
  %v1149 = vadd.f32 0.0, %v1148
  %v1150 = vpop.f32.mrb[0].mxu0
  %1151 = vmatprep.mubr.bf16.mxu0 0
  %1152 = vmatmul.mubr.bf16.gmra.mrb[0].mxu0 %v1091
  %v1153 = vpop.f32.mrb[0].mxu0
  %v1154 = vadd.f32 0.0, %v1153
  %v1155 = vpop.f32.mrb[0].mxu0
  %v1156 = vpop.f32.mrb[0].mxu0
  %v1157 = vadd.f32 0.0, %v1156
  %v1158 = vpop.f32.mrb[0].mxu0
  %1159 = vmatprep.mubr.bf16.mxu0 0
  %1160 = vmatmul.mubr.bf16.gmra.mrb[0].mxu0 %v1094
  %v1161 = vpop.f32.mrb[0].mxu0
  %v1162 = vadd.f32 0.0, %v1161
  %v1163 = vpop.f32.mrb[0].mxu0
  %v1164 = vpop.f32.mrb[0].mxu0
  %v1165 = vadd.f32 0.0, %v1164
  %v1166 = vpop.f32.mrb[0].mxu0
  %1167 = vmatprep.mubr.bf16.mxu0 0
  %1168 = vmatmul.mubr.bf16.gmra.mrb[0].mxu0 %v1097
  %v1169 = vpop.f32.mrb[0].mxu0
  %v1170 = vadd.f32 0.0, %v1169
  %v1171 = vpop.f32.mrb[0].mxu0
  %v1172 = vpop.f32.mrb[0].mxu0
  %v1173 = vadd.f32 0.0, %v1172
  %v1174 = vpop.f32.mrb[0].mxu0
  %1175 = vmatprep.mubr.bf16.mxu0 0
  %1176 = vmatmul.mubr.bf16.gmra.mrb[0].mxu0 %v1100
  %v1177 = vpop.f32.mrb[0].mxu0
  %v1178 = vadd.f32 0.0, %v1177
  %v1179 = vpop.f32.mrb[0].mxu0
  %v1180 = vpop.f32.mrb[0].mxu0
  %v1181 = vadd.f32 0.0, %v1180
  %v1182 = vpop.f32.mrb[0].mxu0
  %1183 = vmatprep.mubr.bf16.mxu0 0
  %1184 = vmatmul.mubr.bf16.gmra.mrb[0].mxu0 %v1103
  %v1185 = vpop.f32.mrb[0].mxu0
  %v1186 = vadd.f32 0.0, %v1185
  %v1187 = vpop.f32.mrb[0].mxu0
  %v1188 = vpop.f32.mrb[0].mxu0
  %v1189 = vadd.f32 0.0, %v1188
  %v1190 = vpop.f32.mrb[0].mxu0
  %1191 = vmatprep.mubr.bf16.mxu0 0
  %1192 = vmatmul.mubr.bf16.gmra.mrb[0].mxu0 %v1106
  %v1193 = vpop.f32.mrb[0].mxu0
  %v1194 = vadd.f32 0.0, %v1193
  %v1195 = vpop.f32.mrb[0].mxu0
  %v1196 = vpop.f32.mrb[0].mxu0
  %v1197 = vpop.f32.mrb[0].mxu0
  %1198 = vdwg.mxu0
  %v1199 = vadd.f32 %v1011, %v1146
  %v1200 = vadd.f32 %v1014, %v1149
  %v1201 = vadd.f32 %v1019, %v1154
  %v1202 = vadd.f32 %v1022, %v1157
  %v1203 = vadd.f32 %v1027, %v1162
  %v1204 = vadd.f32 %v1030, %v1165
  %v1205 = vadd.f32 %v1035, %v1170
  %v1206 = vadd.f32 %v1038, %v1173
  %v1207 = vadd.f32 %v1043, %v1178
  %v1208 = vadd.f32 %v1046, %v1181
  %v1209 = vadd.f32 %v1051, %v1186
  %v1210 = vadd.f32 %v1054, %v1189
  %v1211 = vadd.f32 %v1059, %v1194
  %s1212 = scalar_lea.vmem %s3, 12
  %v1213 = vld [vmem:[%s1212] sm:$0xf]
  %vm1214 = vcmask 1043456
  %v1215 = vrot.slane %v779, 4
  %v1216 = vrot.slane %v780, 4
  %v1217 = vsel %vm1214, %v1215, %v1216
  %v1218 = vrot.slane %v781, 4
  %v1219 = vsel %vm1214, %v1216, %v1218
  %v1220 = vrot.slane %v782, 4
  %v1221 = vsel %vm1214, %v1218, %v1220
  %v1222 = vrot.slane %v783, 4
  %v1223 = vsel %vm1214, %v1220, %v1222
  %v1224 = vrot.slane %v784, 4
  %v1225 = vsel %vm1214, %v1222, %v1224
  %v1226 = vrot.slane %v785, 4
  %v1227 = vsel %vm1214, %v1224, %v1226
  %v1229 = vsel %vm845, %v1217, 0
  %v1232 = vsel %vm845, %v1219, 0
  %v1235 = vsel %vm845, %v1221, 0
  %v1238 = vsel %vm845, %v1223, 0
  %v1241 = vsel %vm845, %v1225, 0
  %v1244 = vsel %vm845, %v1227, 0
  %v1247 = vsel %vm845, %v1226, 0
  %v1250 = vsel %vm867, %v1213, 0
  %1252 = vmatprep.subr.bf16.mxu0 0
  %1253 = vmatpush1.bf16.msra.mxu0 %v1250
  %1254 = vmatprep.subr.bf16.mxu0 0
  %1255 = vmatpush1.bf16.msra.mxu0 0
  %1256 = vmatprep.subr.bf16.mxu0 0
  %1257 = vmatpush1.bf16.msra.mxu0 0
  %1258 = vmatprep.subr.bf16.mxu0 0
  %1259 = vmatpush1.bf16.msra.mxu0 0
  %1260 = vmatprep.subr.bf16.mxu0 0
  %1261 = vmatpush1.bf16.msra.mxu0 0
  %1262 = vmatprep.subr.bf16.mxu0 0
  %1263 = vmatpush1.bf16.msra.mxu0 0
  %1264 = vmatprep.subr.bf16.mxu0 0
  %1265 = vmatpush1.bf16.msra.mxu0 0
  %1266 = vmatprep.subr.bf16.mxu0 0
  %1267 = vmatpush1.bf16.msra.mxu0 0
  %1268 = vmatprep.subr.bf16.mxu0 0
  %1269 = vmatpush1.bf16.msra.mxu0 0
  %1270 = vmatprep.subr.bf16.mxu0 0
  %1271 = vmatpush1.bf16.msra.mxu0 0
  %1272 = vmatprep.subr.bf16.mxu0 0
  %1273 = vmatpush1.bf16.msra.mxu0 0
  %1274 = vmatprep.subr.bf16.mxu0 0
  %1275 = vmatpush1.bf16.msra.mxu0 0
  %1276 = vmatprep.subr.bf16.mxu0 0
  %1277 = vmatpush1.bf16.msra.mxu0 0
  %1278 = vmatprep.subr.bf16.mxu0 0
  %1279 = vmatpush1.bf16.msra.mxu0 0
  %1280 = vmatprep.subr.bf16.mxu0 0
  %1281 = vmatpush1.bf16.msra.mxu0 0
  %1282 = vmatprep.subr.bf16.mxu0 0
  %1283 = vmatpush1.bf16.msra.mxu0 0
  %1284 = vmatprep.mubr.bf16.mxu0 0
  %1285 = vmatmul.mubr.bf16.gmra.mrb[0].mxu0 %v1229
  %v1286 = vpop.f32.mrb[0].mxu0
  %v1287 = vadd.f32 0.0, %v1286
  %v1288 = vpop.f32.mrb[0].mxu0
  %v1289 = vpop.f32.mrb[0].mxu0
  %v1290 = vadd.f32 0.0, %v1289
  %v1291 = vpop.f32.mrb[0].mxu0
  %1292 = vmatprep.mubr.bf16.mxu0 0
  %1293 = vmatmul.mubr.bf16.gmra.mrb[0].mxu0 %v1232
  %v1294 = vpop.f32.mrb[0].mxu0
  %v1295 = vadd.f32 0.0, %v1294
  %v1296 = vpop.f32.mrb[0].mxu0
  %v1297 = vpop.f32.mrb[0].mxu0
  %v1298 = vadd.f32 0.0, %v1297
  %v1299 = vpop.f32.mrb[0].mxu0
  %1300 = vmatprep.mubr.bf16.mxu0 0
  %1301 = vmatmul.mubr.bf16.gmra.mrb[0].mxu0 %v1235
  %v1302 = vpop.f32.mrb[0].mxu0
  %v1303 = vadd.f32 0.0, %v1302
  %v1304 = vpop.f32.mrb[0].mxu0
  %v1305 = vpop.f32.mrb[0].mxu0
  %v1306 = vadd.f32 0.0, %v1305
  %v1307 = vpop.f32.mrb[0].mxu0
  %1308 = vmatprep.mubr.bf16.mxu0 0
  %1309 = vmatmul.mubr.bf16.gmra.mrb[0].mxu0 %v1238
  %v1310 = vpop.f32.mrb[0].mxu0
  %v1311 = vadd.f32 0.0, %v1310
  %v1312 = vpop.f32.mrb[0].mxu0
  %v1313 = vpop.f32.mrb[0].mxu0
  %v1314 = vadd.f32 0.0, %v1313
  %v1315 = vpop.f32.mrb[0].mxu0
  %1316 = vmatprep.mubr.bf16.mxu0 0
  %1317 = vmatmul.mubr.bf16.gmra.mrb[0].mxu0 %v1241
  %v1318 = vpop.f32.mrb[0].mxu0
  %v1319 = vadd.f32 0.0, %v1318
  %v1320 = vpop.f32.mrb[0].mxu0
  %v1321 = vpop.f32.mrb[0].mxu0
  %v1322 = vadd.f32 0.0, %v1321
  %v1323 = vpop.f32.mrb[0].mxu0
  %1324 = vmatprep.mubr.bf16.mxu0 0
  %1325 = vmatmul.mubr.bf16.gmra.mrb[0].mxu0 %v1244
  %v1326 = vpop.f32.mrb[0].mxu0
  %v1327 = vadd.f32 0.0, %v1326
  %v1328 = vpop.f32.mrb[0].mxu0
  %v1329 = vpop.f32.mrb[0].mxu0
  %v1330 = vadd.f32 0.0, %v1329
  %v1331 = vpop.f32.mrb[0].mxu0
  %1332 = vmatprep.mubr.bf16.mxu0 0
  %1333 = vmatmul.mubr.bf16.gmra.mrb[0].mxu0 %v1247
  %v1334 = vpop.f32.mrb[0].mxu0
  %v1335 = vadd.f32 0.0, %v1334
  %v1336 = vpop.f32.mrb[0].mxu0
  %v1337 = vpop.f32.mrb[0].mxu0
  %v1338 = vpop.f32.mrb[0].mxu0
  %1339 = vdwg.mxu0
  %v1340 = vadd.f32 %v1199, %v1287
  %v1341 = vadd.f32 %v1200, %v1290
  %v1342 = vadd.f32 %v1201, %v1295
  %v1343 = vadd.f32 %v1202, %v1298
  %v1344 = vadd.f32 %v1203, %v1303
  %v1345 = vadd.f32 %v1204, %v1306
  %v1346 = vadd.f32 %v1205, %v1311
  %v1347 = vadd.f32 %v1206, %v1314
  %v1348 = vadd.f32 %v1207, %v1319
  %v1349 = vadd.f32 %v1208, %v1322
  %v1350 = vadd.f32 %v1209, %v1327
  %v1351 = vadd.f32 %v1210, %v1330
  %v1352 = vadd.f32 %v1211, %v1335
  %s1353 = scalar_lea.vmem %s3, 16
  %v1354 = vld [vmem:[%s1353] sm:$0xf]
  %vm1355 = vsmask.f32 3328
  %v1356 = vrot.slane %v791, 4
  %v1357 = vrot.slane %v793, 5
  %v1358 = vor.u32 %v1356, %v1357
  %v1359 = vrot.slane %v802, 4
  %v1360 = vrot.slane %v798, 5
  %v1361 = vor.u32 %v1359, %v1360
  %v1362 = vsel %vm1355, %v1358, %v1361
  %v1363 = vrot.slane %v810, 4
  %v1364 = vrot.slane %v806, 5
  %v1365 = vor.u32 %v1363, %v1364
  %v1366 = vsel %vm1355, %v1361, %v1365
  %v1367 = vrot.slane %v818, 4
  %v1368 = vrot.slane %v814, 5
  %v1369 = vor.u32 %v1367, %v1368
  %v1370 = vsel %vm1355, %v1365, %v1369
  %v1371 = vrot.slane %v826, 4
  %v1372 = vrot.slane %v822, 5
  %v1373 = vor.u32 %v1371, %v1372
  %v1374 = vsel %vm1355, %v1369, %v1373
  %v1375 = vrot.slane %v834, 4
  %v1376 = vrot.slane %v830, 5
  %v1377 = vor.u32 %v1375, %v1376
  %v1378 = vsel %vm1355, %v1373, %v1377
  %v1379 = vrot.slane %v842, 4
  %v1380 = vrot.slane %v838, 5
  %v1381 = vor.u32 %v1379, %v1380
  %v1382 = vsel %vm1355, %v1377, %v1381
  %v1384 = vsel %vm845, %v1362, 0
  %v1387 = vsel %vm845, %v1366, 0
  %v1390 = vsel %vm845, %v1370, 0
  %v1393 = vsel %vm845, %v1374, 0
  %v1396 = vsel %vm845, %v1378, 0
  %v1399 = vsel %vm845, %v1382, 0
  %v1402 = vsel %vm845, %v1381, 0
  %v1405 = vsel %vm867, %v1354, 0
  %1407 = vmatprep.subr.bf16.mxu0 0
  %1408 = vmatpush1.bf16.msra.mxu0 %v1405
  %1409 = vmatprep.subr.bf16.mxu0 0
  %1410 = vmatpush1.bf16.msra.mxu0 0
  %1411 = vmatprep.subr.bf16.mxu0 0
  %1412 = vmatpush1.bf16.msra.mxu0 0
  %1413 = vmatprep.subr.bf16.mxu0 0
  %1414 = vmatpush1.bf16.msra.mxu0 0
  %1415 = vmatprep.subr.bf16.mxu0 0
  %1416 = vmatpush1.bf16.msra.mxu0 0
  %1417 = vmatprep.subr.bf16.mxu0 0
  %1418 = vmatpush1.bf16.msra.mxu0 0
  %1419 = vmatprep.subr.bf16.mxu0 0
  %1420 = vmatpush1.bf16.msra.mxu0 0
  %1421 = vmatprep.subr.bf16.mxu0 0
  %1422 = vmatpush1.bf16.msra.mxu0 0
  %1423 = vmatprep.subr.bf16.mxu0 0
  %1424 = vmatpush1.bf16.msra.mxu0 0
  %1425 = vmatprep.subr.bf16.mxu0 0
  %1426 = vmatpush1.bf16.msra.mxu0 0
  %1427 = vmatprep.subr.bf16.mxu0 0
  %1428 = vmatpush1.bf16.msra.mxu0 0
  %1429 = vmatprep.subr.bf16.mxu0 0
  %1430 = vmatpush1.bf16.msra.mxu0 0
  %1431 = vmatprep.subr.bf16.mxu0 0
  %1432 = vmatpush1.bf16.msra.mxu0 0
  %1433 = vmatprep.subr.bf16.mxu0 0
  %1434 = vmatpush1.bf16.msra.mxu0 0
  %1435 = vmatprep.subr.bf16.mxu0 0
  %1436 = vmatpush1.bf16.msra.mxu0 0
  %1437 = vmatprep.subr.bf16.mxu0 0
  %1438 = vmatpush1.bf16.msra.mxu0 0
  %1439 = vmatprep.mubr.bf16.mxu0 0
  %1440 = vmatmul.mubr.bf16.gmra.mrb[0].mxu0 %v1384
  %v1441 = vpop.f32.mrb[0].mxu0
  %v1442 = vadd.f32 0.0, %v1441
  %v1443 = vpop.f32.mrb[0].mxu0
  %v1444 = vpop.f32.mrb[0].mxu0
  %v1445 = vadd.f32 0.0, %v1444
  %v1446 = vpop.f32.mrb[0].mxu0
  %1447 = vmatprep.mubr.bf16.mxu0 0
  %1448 = vmatmul.mubr.bf16.gmra.mrb[0].mxu0 %v1387
  %v1449 = vpop.f32.mrb[0].mxu0
  %v1450 = vadd.f32 0.0, %v1449
  %v1451 = vpop.f32.mrb[0].mxu0
  %v1452 = vpop.f32.mrb[0].mxu0
  %v1453 = vadd.f32 0.0, %v1452
  %v1454 = vpop.f32.mrb[0].mxu0
  %1455 = vmatprep.mubr.bf16.mxu0 0
  %1456 = vmatmul.mubr.bf16.gmra.mrb[0].mxu0 %v1390
  %v1457 = vpop.f32.mrb[0].mxu0
  %v1458 = vadd.f32 0.0, %v1457
  %v1459 = vpop.f32.mrb[0].mxu0
  %v1460 = vpop.f32.mrb[0].mxu0
  %v1461 = vadd.f32 0.0, %v1460
  %v1462 = vpop.f32.mrb[0].mxu0
  %1463 = vmatprep.mubr.bf16.mxu0 0
  %1464 = vmatmul.mubr.bf16.gmra.mrb[0].mxu0 %v1393
  %v1465 = vpop.f32.mrb[0].mxu0
  %v1466 = vadd.f32 0.0, %v1465
  %v1467 = vpop.f32.mrb[0].mxu0
  %v1468 = vpop.f32.mrb[0].mxu0
  %v1469 = vadd.f32 0.0, %v1468
  %v1470 = vpop.f32.mrb[0].mxu0
  %1471 = vmatprep.mubr.bf16.mxu0 0
  %1472 = vmatmul.mubr.bf16.gmra.mrb[0].mxu0 %v1396
  %v1473 = vpop.f32.mrb[0].mxu0
  %v1474 = vadd.f32 0.0, %v1473
  %v1475 = vpop.f32.mrb[0].mxu0
  %v1476 = vpop.f32.mrb[0].mxu0
  %v1477 = vadd.f32 0.0, %v1476
  %v1478 = vpop.f32.mrb[0].mxu0
  %1479 = vmatprep.mubr.bf16.mxu0 0
  %1480 = vmatmul.mubr.bf16.gmra.mrb[0].mxu0 %v1399
  %v1481 = vpop.f32.mrb[0].mxu0
  %v1482 = vadd.f32 0.0, %v1481
  %v1483 = vpop.f32.mrb[0].mxu0
  %v1484 = vpop.f32.mrb[0].mxu0
  %v1485 = vadd.f32 0.0, %v1484
  %v1486 = vpop.f32.mrb[0].mxu0
  %1487 = vmatprep.mubr.bf16.mxu0 0
  %1488 = vmatmul.mubr.bf16.gmra.mrb[0].mxu0 %v1402
  %v1489 = vpop.f32.mrb[0].mxu0
  %v1490 = vadd.f32 0.0, %v1489
  %v1491 = vpop.f32.mrb[0].mxu0
  %v1492 = vpop.f32.mrb[0].mxu0
  %v1493 = vpop.f32.mrb[0].mxu0
  %1494 = vdwg.mxu0
  %v1495 = vadd.f32 %v1340, %v1442
  %v1496 = vadd.f32 %v1341, %v1445
  %v1497 = vadd.f32 %v1342, %v1450
  %v1498 = vadd.f32 %v1343, %v1453
  %v1499 = vadd.f32 %v1344, %v1458
  %v1500 = vadd.f32 %v1345, %v1461
  %v1501 = vadd.f32 %v1346, %v1466
  %v1502 = vadd.f32 %v1347, %v1469
  %v1503 = vadd.f32 %v1348, %v1474
  %v1504 = vadd.f32 %v1349, %v1477
  %v1505 = vadd.f32 %v1350, %v1482
  %v1506 = vadd.f32 %v1351, %v1485
  %v1507 = vadd.f32 %v1352, %v1490
  %s1508 = scalar_lea.vmem %s3, 20
  %v1509 = vld [vmem:[%s1508] sm:$0xf]
  %vm1510 = vcmask 1042432
  %v1511 = vrot.slane %v779, 5
  %v1512 = vrot.slane %v780, 5
  %v1513 = vsel %vm1510, %v1511, %v1512
  %v1514 = vrot.slane %v781, 5
  %v1515 = vsel %vm1510, %v1512, %v1514
  %v1516 = vrot.slane %v782, 5
  %v1517 = vsel %vm1510, %v1514, %v1516
  %v1518 = vrot.slane %v783, 5
  %v1519 = vsel %vm1510, %v1516, %v1518
  %v1520 = vrot.slane %v784, 5
  %v1521 = vsel %vm1510, %v1518, %v1520
  %v1522 = vrot.slane %v785, 5
  %v1523 = vsel %vm1510, %v1520, %v1522
  %v1525 = vsel %vm845, %v1513, 0
  %v1528 = vsel %vm845, %v1515, 0
  %v1531 = vsel %vm845, %v1517, 0
  %v1534 = vsel %vm845, %v1519, 0
  %v1537 = vsel %vm845, %v1521, 0
  %v1540 = vsel %vm845, %v1523, 0
  %v1543 = vsel %vm845, %v1522, 0
  %v1546 = vsel %vm867, %v1509, 0
  %1548 = vmatprep.subr.bf16.mxu0 0
  %1549 = vmatpush1.bf16.msra.mxu0 %v1546
  %1550 = vmatprep.subr.bf16.mxu0 0
  %1551 = vmatpush1.bf16.msra.mxu0 0
  %1552 = vmatprep.subr.bf16.mxu0 0
  %1553 = vmatpush1.bf16.msra.mxu0 0
  %1554 = vmatprep.subr.bf16.mxu0 0
  %1555 = vmatpush1.bf16.msra.mxu0 0
  %1556 = vmatprep.subr.bf16.mxu0 0
  %1557 = vmatpush1.bf16.msra.mxu0 0
  %1558 = vmatprep.subr.bf16.mxu0 0
  %1559 = vmatpush1.bf16.msra.mxu0 0
  %1560 = vmatprep.subr.bf16.mxu0 0
  %1561 = vmatpush1.bf16.msra.mxu0 0
  %1562 = vmatprep.subr.bf16.mxu0 0
  %1563 = vmatpush1.bf16.msra.mxu0 0
  %1564 = vmatprep.subr.bf16.mxu0 0
  %1565 = vmatpush1.bf16.msra.mxu0 0
  %1566 = vmatprep.subr.bf16.mxu0 0
  %1567 = vmatpush1.bf16.msra.mxu0 0
  %1568 = vmatprep.subr.bf16.mxu0 0
  %1569 = vmatpush1.bf16.msra.mxu0 0
  %1570 = vmatprep.subr.bf16.mxu0 0
  %1571 = vmatpush1.bf16.msra.mxu0 0
  %1572 = vmatprep.subr.bf16.mxu0 0
  %1573 = vmatpush1.bf16.msra.mxu0 0
  %1574 = vmatprep.subr.bf16.mxu0 0
  %1575 = vmatpush1.bf16.msra.mxu0 0
  %1576 = vmatprep.subr.bf16.mxu0 0
  %1577 = vmatpush1.bf16.msra.mxu0 0
  %1578 = vmatprep.subr.bf16.mxu0 0
  %1579 = vmatpush1.bf16.msra.mxu0 0
  %1580 = vmatprep.mubr.bf16.mxu0 0
  %1581 = vmatmul.mubr.bf16.gmra.mrb[0].mxu0 %v1525
  %v1582 = vpop.f32.mrb[0].mxu0
  %v1583 = vadd.f32 0.0, %v1582
  %v1584 = vpop.f32.mrb[0].mxu0
  %v1585 = vpop.f32.mrb[0].mxu0
  %v1586 = vadd.f32 0.0, %v1585
  %v1587 = vpop.f32.mrb[0].mxu0
  %1588 = vmatprep.mubr.bf16.mxu0 0
  %1589 = vmatmul.mubr.bf16.gmra.mrb[0].mxu0 %v1528
  %v1590 = vpop.f32.mrb[0].mxu0
  %v1591 = vadd.f32 0.0, %v1590
  %v1592 = vpop.f32.mrb[0].mxu0
  %v1593 = vpop.f32.mrb[0].mxu0
  %v1594 = vadd.f32 0.0, %v1593
  %v1595 = vpop.f32.mrb[0].mxu0
  %1596 = vmatprep.mubr.bf16.mxu0 0
  %1597 = vmatmul.mubr.bf16.gmra.mrb[0].mxu0 %v1531
  %v1598 = vpop.f32.mrb[0].mxu0
  %v1599 = vadd.f32 0.0, %v1598
  %v1600 = vpop.f32.mrb[0].mxu0
  %v1601 = vpop.f32.mrb[0].mxu0
  %v1602 = vadd.f32 0.0, %v1601
  %v1603 = vpop.f32.mrb[0].mxu0
  %1604 = vmatprep.mubr.bf16.mxu0 0
  %1605 = vmatmul.mubr.bf16.gmra.mrb[0].mxu0 %v1534
  %v1606 = vpop.f32.mrb[0].mxu0
  %v1607 = vadd.f32 0.0, %v1606
  %v1608 = vpop.f32.mrb[0].mxu0
  %v1609 = vpop.f32.mrb[0].mxu0
  %v1610 = vadd.f32 0.0, %v1609
  %v1611 = vpop.f32.mrb[0].mxu0
  %1612 = vmatprep.mubr.bf16.mxu0 0
  %1613 = vmatmul.mubr.bf16.gmra.mrb[0].mxu0 %v1537
  %v1614 = vpop.f32.mrb[0].mxu0
  %v1615 = vadd.f32 0.0, %v1614
  %v1616 = vpop.f32.mrb[0].mxu0
  %v1617 = vpop.f32.mrb[0].mxu0
  %v1618 = vadd.f32 0.0, %v1617
  %v1619 = vpop.f32.mrb[0].mxu0
  %1620 = vmatprep.mubr.bf16.mxu0 0
  %1621 = vmatmul.mubr.bf16.gmra.mrb[0].mxu0 %v1540
  %v1622 = vpop.f32.mrb[0].mxu0
  %v1623 = vadd.f32 0.0, %v1622
  %v1624 = vpop.f32.mrb[0].mxu0
  %v1625 = vpop.f32.mrb[0].mxu0
  %v1626 = vadd.f32 0.0, %v1625
  %v1627 = vpop.f32.mrb[0].mxu0
  %1628 = vmatprep.mubr.bf16.mxu0 0
  %1629 = vmatmul.mubr.bf16.gmra.mrb[0].mxu0 %v1543
  %v1630 = vpop.f32.mrb[0].mxu0
  %v1631 = vadd.f32 0.0, %v1630
  %v1632 = vpop.f32.mrb[0].mxu0
  %v1633 = vpop.f32.mrb[0].mxu0
  %v1634 = vpop.f32.mrb[0].mxu0
  %1635 = vdwg.mxu0
  %v1636 = vadd.f32 %v1495, %v1583
  %v1637 = vadd.f32 %v1496, %v1586
  %v1638 = vadd.f32 %v1497, %v1591
  %v1639 = vadd.f32 %v1498, %v1594
  %v1640 = vadd.f32 %v1499, %v1599
  %v1641 = vadd.f32 %v1500, %v1602
  %v1642 = vadd.f32 %v1501, %v1607
  %v1643 = vadd.f32 %v1502, %v1610
  %v1644 = vadd.f32 %v1503, %v1615
  %v1645 = vadd.f32 %v1504, %v1618
  %v1646 = vadd.f32 %v1505, %v1623
  %v1647 = vadd.f32 %v1506, %v1626
  %v1648 = vadd.f32 %v1507, %v1631
  %s1649 = scalar_lea.vmem %s3, 24
  %v1650 = vld [vmem:[%s1649] sm:$0xf]
  %v1652 = vsel %vm845, %v786, 0
  %v1655 = vsel %vm867, %v1650, 0
  %1657 = vmatprep.subr.bf16.mxu0 0
  %1658 = vmatpush1.bf16.msra.mxu0 %v1655
  %1659 = vmatprep.subr.bf16.mxu0 0
  %1660 = vmatpush1.bf16.msra.mxu0 0
  %1661 = vmatprep.subr.bf16.mxu0 0
  %1662 = vmatpush1.bf16.msra.mxu0 0
  %1663 = vmatprep.subr.bf16.mxu0 0
  %1664 = vmatpush1.bf16.msra.mxu0 0
  %1665 = vmatprep.subr.bf16.mxu0 0
  %1666 = vmatpush1.bf16.msra.mxu0 0
  %1667 = vmatprep.subr.bf16.mxu0 0
  %1668 = vmatpush1.bf16.msra.mxu0 0
  %1669 = vmatprep.subr.bf16.mxu0 0
  %1670 = vmatpush1.bf16.msra.mxu0 0
  %1671 = vmatprep.subr.bf16.mxu0 0
  %1672 = vmatpush1.bf16.msra.mxu0 0
  %1673 = vmatprep.subr.bf16.mxu0 0
  %1674 = vmatpush1.bf16.msra.mxu0 0
  %1675 = vmatprep.subr.bf16.mxu0 0
  %1676 = vmatpush1.bf16.msra.mxu0 0
  %1677 = vmatprep.subr.bf16.mxu0 0
  %1678 = vmatpush1.bf16.msra.mxu0 0
  %1679 = vmatprep.subr.bf16.mxu0 0
  %1680 = vmatpush1.bf16.msra.mxu0 0
  %1681 = vmatprep.subr.bf16.mxu0 0
  %1682 = vmatpush1.bf16.msra.mxu0 0
  %1683 = vmatprep.subr.bf16.mxu0 0
  %1684 = vmatpush1.bf16.msra.mxu0 0
  %1685 = vmatprep.subr.bf16.mxu0 0
  %1686 = vmatpush1.bf16.msra.mxu0 0
  %1687 = vmatprep.subr.bf16.mxu0 0
  %1688 = vmatpush1.bf16.msra.mxu0 0
  %1689 = vmatprep.mubr.bf16.mxu0 0
  %1690 = vmatmul.mubr.bf16.gmra.mrb[0].mxu0 %v961
  %v1691 = vpop.f32.mrb[0].mxu0
  %v1692 = vadd.f32 0.0, %v1691
  %v1693 = vpop.f32.mrb[0].mxu0
  %v1694 = vpop.f32.mrb[0].mxu0
  %v1695 = vadd.f32 0.0, %v1694
  %v1696 = vpop.f32.mrb[0].mxu0
  %1697 = vmatprep.mubr.bf16.mxu0 0
  %1698 = vmatmul.mubr.bf16.gmra.mrb[0].mxu0 %v963
  %v1699 = vpop.f32.mrb[0].mxu0
  %v1700 = vadd.f32 0.0, %v1699
  %v1701 = vpop.f32.mrb[0].mxu0
  %v1702 = vpop.f32.mrb[0].mxu0
  %v1703 = vadd.f32 0.0, %v1702
  %v1704 = vpop.f32.mrb[0].mxu0
  %1705 = vmatprep.mubr.bf16.mxu0 0
  %1706 = vmatmul.mubr.bf16.gmra.mrb[0].mxu0 %v965
  %v1707 = vpop.f32.mrb[0].mxu0
  %v1708 = vadd.f32 0.0, %v1707
  %v1709 = vpop.f32.mrb[0].mxu0
  %v1710 = vpop.f32.mrb[0].mxu0
  %v1711 = vadd.f32 0.0, %v1710
  %v1712 = vpop.f32.mrb[0].mxu0
  %1713 = vmatprep.mubr.bf16.mxu0 0
  %1714 = vmatmul.mubr.bf16.gmra.mrb[0].mxu0 %v967
  %v1715 = vpop.f32.mrb[0].mxu0
  %v1716 = vadd.f32 0.0, %v1715
  %v1717 = vpop.f32.mrb[0].mxu0
  %v1718 = vpop.f32.mrb[0].mxu0
  %v1719 = vadd.f32 0.0, %v1718
  %v1720 = vpop.f32.mrb[0].mxu0
  %1721 = vmatprep.mubr.bf16.mxu0 0
  %1722 = vmatmul.mubr.bf16.gmra.mrb[0].mxu0 %v969
  %v1723 = vpop.f32.mrb[0].mxu0
  %v1724 = vadd.f32 0.0, %v1723
  %v1725 = vpop.f32.mrb[0].mxu0
  %v1726 = vpop.f32.mrb[0].mxu0
  %v1727 = vadd.f32 0.0, %v1726
  %v1728 = vpop.f32.mrb[0].mxu0
  %1729 = vmatprep.mubr.bf16.mxu0 0
  %1730 = vmatmul.mubr.bf16.gmra.mrb[0].mxu0 %v971
  %v1731 = vpop.f32.mrb[0].mxu0
  %v1732 = vadd.f32 0.0, %v1731
  %v1733 = vpop.f32.mrb[0].mxu0
  %v1734 = vpop.f32.mrb[0].mxu0
  %v1735 = vadd.f32 0.0, %v1734
  %v1736 = vpop.f32.mrb[0].mxu0
  %1737 = vmatprep.mubr.bf16.mxu0 0
  %1738 = vmatmul.mubr.bf16.gmra.mrb[0].mxu0 %v1652
  %v1739 = vpop.f32.mrb[0].mxu0
  %v1740 = vadd.f32 0.0, %v1739
  %v1741 = vpop.f32.mrb[0].mxu0
  %v1742 = vpop.f32.mrb[0].mxu0
  %v1743 = vpop.f32.mrb[0].mxu0
  %1744 = vdwg.mxu0
  %v1745 = vadd.f32 %v1636, %v1692
  %v1746 = vadd.f32 %v1637, %v1695
  %v1747 = vadd.f32 %v1638, %v1700
  %v1748 = vadd.f32 %v1639, %v1703
  %v1749 = vadd.f32 %v1640, %v1708
  %v1750 = vadd.f32 %v1641, %v1711
  %v1751 = vadd.f32 %v1642, %v1716
  %v1752 = vadd.f32 %v1643, %v1719
  %v1753 = vadd.f32 %v1644, %v1724
  %v1754 = vadd.f32 %v1645, %v1727
  %v1755 = vadd.f32 %v1646, %v1732
  %v1756 = vadd.f32 %v1647, %v1735
  %v1757 = vadd.f32 %v1648, %v1740
  %s1758 = scalar_lea.vmem %s3, 28
  %v1759 = vld [vmem:[%s1758] sm:$0xf]
  %v1760 = vshll.u32 %v786, 16
  %v1762 = vrot.slane %v1760, 1
  %v1763 = vsel %vm80, %v844, %v1762
  %v1764 = vshrl.u32 %v786, 16
  %v1766 = vor.u32 %v1764, %v1762
  %v1768 = vsel %vm845, %v1763, 0
  %v1771 = vsel %vm845, %v1766, 0
  %v1774 = vsel %vm867, %v1759, 0
  %1776 = vmatprep.subr.bf16.mxu0 0
  %1777 = vmatpush1.bf16.msra.mxu0 %v1774
  %1778 = vmatprep.subr.bf16.mxu0 0
  %1779 = vmatpush1.bf16.msra.mxu0 0
  %1780 = vmatprep.subr.bf16.mxu0 0
  %1781 = vmatpush1.bf16.msra.mxu0 0
  %1782 = vmatprep.subr.bf16.mxu0 0
  %1783 = vmatpush1.bf16.msra.mxu0 0
  %1784 = vmatprep.subr.bf16.mxu0 0
  %1785 = vmatpush1.bf16.msra.mxu0 0
  %1786 = vmatprep.subr.bf16.mxu0 0
  %1787 = vmatpush1.bf16.msra.mxu0 0
  %1788 = vmatprep.subr.bf16.mxu0 0
  %1789 = vmatpush1.bf16.msra.mxu0 0
  %1790 = vmatprep.subr.bf16.mxu0 0
  %1791 = vmatpush1.bf16.msra.mxu0 0
  %1792 = vmatprep.subr.bf16.mxu0 0
  %1793 = vmatpush1.bf16.msra.mxu0 0
  %1794 = vmatprep.subr.bf16.mxu0 0
  %1795 = vmatpush1.bf16.msra.mxu0 0
  %1796 = vmatprep.subr.bf16.mxu0 0
  %1797 = vmatpush1.bf16.msra.mxu0 0
  %1798 = vmatprep.subr.bf16.mxu0 0
  %1799 = vmatpush1.bf16.msra.mxu0 0
  %1800 = vmatprep.subr.bf16.mxu0 0
  %1801 = vmatpush1.bf16.msra.mxu0 0
  %1802 = vmatprep.subr.bf16.mxu0 0
  %1803 = vmatpush1.bf16.msra.mxu0 0
  %1804 = vmatprep.subr.bf16.mxu0 0
  %1805 = vmatpush1.bf16.msra.mxu0 0
  %1806 = vmatprep.subr.bf16.mxu0 0
  %1807 = vmatpush1.bf16.msra.mxu0 0
  %1808 = vmatprep.mubr.bf16.mxu0 0
  %1809 = vmatmul.mubr.bf16.gmra.mrb[0].mxu0 %v850
  %v1810 = vpop.f32.mrb[0].mxu0
  %v1811 = vadd.f32 0.0, %v1810
  %v1812 = vpop.f32.mrb[0].mxu0
  %v1813 = vpop.f32.mrb[0].mxu0
  %v1814 = vadd.f32 0.0, %v1813
  %v1815 = vpop.f32.mrb[0].mxu0
  %1816 = vmatprep.mubr.bf16.mxu0 0
  %1817 = vmatmul.mubr.bf16.gmra.mrb[0].mxu0 %v853
  %v1818 = vpop.f32.mrb[0].mxu0
  %v1819 = vadd.f32 0.0, %v1818
  %v1820 = vpop.f32.mrb[0].mxu0
  %v1821 = vpop.f32.mrb[0].mxu0
  %v1822 = vadd.f32 0.0, %v1821
  %v1823 = vpop.f32.mrb[0].mxu0
  %1824 = vmatprep.mubr.bf16.mxu0 0
  %1825 = vmatmul.mubr.bf16.gmra.mrb[0].mxu0 %v856
  %v1826 = vpop.f32.mrb[0].mxu0
  %v1827 = vadd.f32 0.0, %v1826
  %v1828 = vpop.f32.mrb[0].mxu0
  %v1829 = vpop.f32.mrb[0].mxu0
  %v1830 = vadd.f32 0.0, %v1829
  %v1831 = vpop.f32.mrb[0].mxu0
  %1832 = vmatprep.mubr.bf16.mxu0 0
  %1833 = vmatmul.mubr.bf16.gmra.mrb[0].mxu0 %v859
  %v1834 = vpop.f32.mrb[0].mxu0
  %v1835 = vadd.f32 0.0, %v1834
  %v1836 = vpop.f32.mrb[0].mxu0
  %v1837 = vpop.f32.mrb[0].mxu0
  %v1838 = vadd.f32 0.0, %v1837
  %v1839 = vpop.f32.mrb[0].mxu0
  %1840 = vmatprep.mubr.bf16.mxu0 0
  %1841 = vmatmul.mubr.bf16.gmra.mrb[0].mxu0 %v862
  %v1842 = vpop.f32.mrb[0].mxu0
  %v1843 = vadd.f32 0.0, %v1842
  %v1844 = vpop.f32.mrb[0].mxu0
  %v1845 = vpop.f32.mrb[0].mxu0
  %v1846 = vadd.f32 0.0, %v1845
  %v1847 = vpop.f32.mrb[0].mxu0
  %1848 = vmatprep.mubr.bf16.mxu0 0
  %1849 = vmatmul.mubr.bf16.gmra.mrb[0].mxu0 %v1768
  %v1850 = vpop.f32.mrb[0].mxu0
  %v1851 = vadd.f32 0.0, %v1850
  %v1852 = vpop.f32.mrb[0].mxu0
  %v1853 = vpop.f32.mrb[0].mxu0
  %v1854 = vadd.f32 0.0, %v1853
  %v1855 = vpop.f32.mrb[0].mxu0
  %1856 = vmatprep.mubr.bf16.mxu0 0
  %1857 = vmatmul.mubr.bf16.gmra.mrb[0].mxu0 %v1771
  %v1858 = vpop.f32.mrb[0].mxu0
  %v1859 = vadd.f32 0.0, %v1858
  %v1860 = vpop.f32.mrb[0].mxu0
  %v1861 = vpop.f32.mrb[0].mxu0
  %v1862 = vpop.f32.mrb[0].mxu0
  %1863 = vdwg.mxu0
  %v1864 = vadd.f32 %v1745, %v1811
  %v1865 = vadd.f32 %v1746, %v1814
  %v1866 = vadd.f32 %v1747, %v1819
  %v1867 = vadd.f32 %v1748, %v1822
  %v1868 = vadd.f32 %v1749, %v1827
  %v1869 = vadd.f32 %v1750, %v1830
  %v1870 = vadd.f32 %v1751, %v1835
  %v1871 = vadd.f32 %v1752, %v1838
  %v1872 = vadd.f32 %v1753, %v1843
  %v1873 = vadd.f32 %v1754, %v1846
  %v1874 = vadd.f32 %v1755, %v1851
  %v1875 = vadd.f32 %v1756, %v1854
  %v1876 = vadd.f32 %v1757, %v1859
  %s1877 = scalar_lea.vmem %s3, 32
  %v1878 = vld [vmem:[%s1877] sm:$0xf]
  %v1880 = vrot.slane %v786, 1
  %v1881 = vsel %vm1073, %v1085, %v1880
  %v1883 = vsel %vm845, %v1881, 0
  %v1886 = vsel %vm845, %v1880, 0
  %v1889 = vsel %vm867, %v1878, 0
  %1891 = vmatprep.subr.bf16.mxu0 0
  %1892 = vmatpush1.bf16.msra.mxu0 %v1889
  %1893 = vmatprep.subr.bf16.mxu0 0
  %1894 = vmatpush1.bf16.msra.mxu0 0
  %1895 = vmatprep.subr.bf16.mxu0 0
  %1896 = vmatpush1.bf16.msra.mxu0 0
  %1897 = vmatprep.subr.bf16.mxu0 0
  %1898 = vmatpush1.bf16.msra.mxu0 0
  %1899 = vmatprep.subr.bf16.mxu0 0
  %1900 = vmatpush1.bf16.msra.mxu0 0
  %1901 = vmatprep.subr.bf16.mxu0 0
  %1902 = vmatpush1.bf16.msra.mxu0 0
  %1903 = vmatprep.subr.bf16.mxu0 0
  %1904 = vmatpush1.bf16.msra.mxu0 0
  %1905 = vmatprep.subr.bf16.mxu0 0
  %1906 = vmatpush1.bf16.msra.mxu0 0
  %1907 = vmatprep.subr.bf16.mxu0 0
  %1908 = vmatpush1.bf16.msra.mxu0 0
  %1909 = vmatprep.subr.bf16.mxu0 0
  %1910 = vmatpush1.bf16.msra.mxu0 0
  %1911 = vmatprep.subr.bf16.mxu0 0
  %1912 = vmatpush1.bf16.msra.mxu0 0
  %1913 = vmatprep.subr.bf16.mxu0 0
  %1914 = vmatpush1.bf16.msra.mxu0 0
  %1915 = vmatprep.subr.bf16.mxu0 0
  %1916 = vmatpush1.bf16.msra.mxu0 0
  %1917 = vmatprep.subr.bf16.mxu0 0
  %1918 = vmatpush1.bf16.msra.mxu0 0
  %1919 = vmatprep.subr.bf16.mxu0 0
  %1920 = vmatpush1.bf16.msra.mxu0 0
  %1921 = vmatprep.subr.bf16.mxu0 0
  %1922 = vmatpush1.bf16.msra.mxu0 0
  %1923 = vmatprep.mubr.bf16.mxu0 0
  %1924 = vmatmul.mubr.bf16.gmra.mrb[0].mxu0 %v1091
  %v1925 = vpop.f32.mrb[0].mxu0
  %v1926 = vadd.f32 0.0, %v1925
  %v1927 = vpop.f32.mrb[0].mxu0
  %v1928 = vpop.f32.mrb[0].mxu0
  %v1929 = vadd.f32 0.0, %v1928
  %v1930 = vpop.f32.mrb[0].mxu0
  %1931 = vmatprep.mubr.bf16.mxu0 0
  %1932 = vmatmul.mubr.bf16.gmra.mrb[0].mxu0 %v1094
  %v1933 = vpop.f32.mrb[0].mxu0
  %v1934 = vadd.f32 0.0, %v1933
  %v1935 = vpop.f32.mrb[0].mxu0
  %v1936 = vpop.f32.mrb[0].mxu0
  %v1937 = vadd.f32 0.0, %v1936
  %v1938 = vpop.f32.mrb[0].mxu0
  %1939 = vmatprep.mubr.bf16.mxu0 0
  %1940 = vmatmul.mubr.bf16.gmra.mrb[0].mxu0 %v1097
  %v1941 = vpop.f32.mrb[0].mxu0
  %v1942 = vadd.f32 0.0, %v1941
  %v1943 = vpop.f32.mrb[0].mxu0
  %v1944 = vpop.f32.mrb[0].mxu0
  %v1945 = vadd.f32 0.0, %v1944
  %v1946 = vpop.f32.mrb[0].mxu0
  %1947 = vmatprep.mubr.bf16.mxu0 0
  %1948 = vmatmul.mubr.bf16.gmra.mrb[0].mxu0 %v1100
  %v1949 = vpop.f32.mrb[0].mxu0
  %v1950 = vadd.f32 0.0, %v1949
  %v1951 = vpop.f32.mrb[0].mxu0
  %v1952 = vpop.f32.mrb[0].mxu0
  %v1953 = vadd.f32 0.0, %v1952
  %v1954 = vpop.f32.mrb[0].mxu0
  %1955 = vmatprep.mubr.bf16.mxu0 0
  %1956 = vmatmul.mubr.bf16.gmra.mrb[0].mxu0 %v1103
  %v1957 = vpop.f32.mrb[0].mxu0
  %v1958 = vadd.f32 0.0, %v1957
  %v1959 = vpop.f32.mrb[0].mxu0
  %v1960 = vpop.f32.mrb[0].mxu0
  %v1961 = vadd.f32 0.0, %v1960
  %v1962 = vpop.f32.mrb[0].mxu0
  %1963 = vmatprep.mubr.bf16.mxu0 0
  %1964 = vmatmul.mubr.bf16.gmra.mrb[0].mxu0 %v1883
  %v1965 = vpop.f32.mrb[0].mxu0
  %v1966 = vadd.f32 0.0, %v1965
  %v1967 = vpop.f32.mrb[0].mxu0
  %v1968 = vpop.f32.mrb[0].mxu0
  %v1969 = vadd.f32 0.0, %v1968
  %v1970 = vpop.f32.mrb[0].mxu0
  %1971 = vmatprep.mubr.bf16.mxu0 0
  %1972 = vmatmul.mubr.bf16.gmra.mrb[0].mxu0 %v1886
  %v1973 = vpop.f32.mrb[0].mxu0
  %v1974 = vadd.f32 0.0, %v1973
  %v1975 = vpop.f32.mrb[0].mxu0
  %v1976 = vpop.f32.mrb[0].mxu0
  %v1977 = vpop.f32.mrb[0].mxu0
  %1978 = vdwg.mxu0
  %v1979 = vadd.f32 %v1864, %v1926
  %v1980 = vadd.f32 %v1865, %v1929
  %v1981 = vadd.f32 %v1866, %v1934
  %v1982 = vadd.f32 %v1867, %v1937
  %v1983 = vadd.f32 %v1868, %v1942
  %v1984 = vadd.f32 %v1869, %v1945
  %v1985 = vadd.f32 %v1870, %v1950
  %v1986 = vadd.f32 %v1871, %v1953
  %v1987 = vadd.f32 %v1872, %v1958
  %v1988 = vadd.f32 %v1873, %v1961
  %v1989 = vadd.f32 %v1874, %v1966
  %v1990 = vadd.f32 %v1875, %v1969
  %v1991 = vadd.f32 %v1876, %v1974
  %v1992 = vld [vmem:[%s4] sm:$0x1]
  %v1994 = vlaneseq
  %v1995 = vshrl.u32 %v1994, 7
  %v1996 = vsub.s32 0, %v1995
  %v1997 = vrot.slane %v1992, %v1996
  %v1999 = vadd.f32 %v1979, %v1997
  %v2000 = vadd.f32 %v1980, %v1997
  %v2001 = vadd.f32 %v1981, %v1997
  %v2002 = vadd.f32 %v1982, %v1997
  %v2003 = vadd.f32 %v1983, %v1997
  %v2004 = vadd.f32 %v1984, %v1997
  %v2005 = vadd.f32 %v1985, %v1997
  %v2006 = vadd.f32 %v1986, %v1997
  %v2007 = vadd.f32 %v1987, %v1997
  %v2008 = vadd.f32 %v1988, %v1997
  %v2009 = vadd.f32 %v1989, %v1997
  %v2010 = vadd.f32 %v1990, %v1997
  %v2011 = vadd.f32 %v1991, %v1997
  %v2012 = vmax.f32 %v1999, 0.0
  %v2013 = vmax.f32 %v2000, 0.0
  %v2014 = vmax.f32 %v2001, 0.0
  %v2015 = vmax.f32 %v2002, 0.0
  %v2016 = vmax.f32 %v2003, 0.0
  %v2017 = vmax.f32 %v2004, 0.0
  %v2018 = vmax.f32 %v2005, 0.0
  %v2019 = vmax.f32 %v2006, 0.0
  %v2020 = vmax.f32 %v2007, 0.0
  %v2021 = vmax.f32 %v2008, 0.0
  %v2022 = vmax.f32 %v2009, 0.0
  %v2023 = vmax.f32 %v2010, 0.0
  %v2024 = vmax.f32 %v2011, 0.0
  %vm2025 = vcmask 1044480
  %v2026 = vsel %vm2025, %v2024, 0.0
  %v2027 = vpack.c.bf16 %v2013, %v2012
  %v2028 = vpack.c.bf16 %v2015, %v2014
  %v2029 = vpack.c.bf16 %v2017, %v2016
  %v2030 = vpack.c.bf16 %v2019, %v2018
  %v2031 = vpack.c.bf16 %v2021, %v2020
  %v2032 = vpack.c.bf16 %v2023, %v2022
  %v2033 = vpack.c.bf16 0.0, %v2026
  %v2034 = vpack.c.bf16 0.0, 0.0
  %v2043 = vunpack.c.l.b16 %v2027
  %v2044 = vunpack.c.h.b16 %v2027
  %v2045 = vunpack.c.l.b16 %v2028
  %v2046 = vunpack.c.h.b16 %v2028
  %v2047 = vunpack.c.l.b16 %v2029
  %v2048 = vunpack.c.h.b16 %v2029
  %v2049 = vunpack.c.l.b16 %v2030
  %v2050 = vunpack.c.h.b16 %v2030
  %v2051 = vunpack.c.l.b16 %v2031
  %v2052 = vunpack.c.h.b16 %v2031
  %v2053 = vunpack.c.l.b16 %v2032
  %v2054 = vunpack.c.h.b16 %v2032
  %v2055 = vunpack.c.l.b16 %v2033
  %v2056 = vunpack.c.h.b16 %v2033
  %v2057 = vunpack.c.l.b16 %v2034
  %v2058 = vunpack.c.h.b16 %v2034
  %v2059 = vpack.c.b16 %v2043, %v2043
  %v2060 = vpack.c.b16 %v2044, %v2044
  %v2061 = vpack.c.b16 %v2045, %v2045
  %v2062 = vpack.c.b16 %v2046, %v2046
  %v2063 = vpack.c.b16 %v2047, %v2047
  %v2064 = vpack.c.b16 %v2048, %v2048
  %v2065 = vpack.c.b16 %v2049, %v2049
  %v2066 = vpack.c.b16 %v2050, %v2050
  %v2067 = vpack.c.b16 %v2051, %v2051
  %v2068 = vpack.c.b16 %v2052, %v2052
  %v2069 = vpack.c.b16 %v2053, %v2053
  %v2070 = vpack.c.b16 %v2054, %v2054
  %v2071 = vpack.c.b16 %v2055, %v2055
  %v2072 = vpack.c.b16 %v2056, %v2056
  %v2073 = vpack.c.b16 %v2057, %v2057
  %v2074 = vpack.c.b16 %v2058, %v2058
  %vm2091 = vcmask 60416
  %2092 = vst.msk [vmem:[%s5] sm:$0xf] %vm2091, %v2059
  %2093 = vst.msk [vmem:[%s5 + $0x4] sm:$0xf] %vm2091, %v2060
  %2094 = vst.msk [vmem:[%s5 + $0x8] sm:$0xf] %vm2091, %v2061
  %2095 = vst.msk [vmem:[%s5 + $0xc] sm:$0xf] %vm2091, %v2062
  %2096 = vst.msk [vmem:[%s5 + $0x10] sm:$0xf] %vm2091, %v2063
  %2097 = vst.msk [vmem:[%s5 + $0x14] sm:$0xf] %vm2091, %v2064
  %2098 = vst.msk [vmem:[%s5 + $0x18] sm:$0xf] %vm2091, %v2065
  %2099 = vst.msk [vmem:[%s5 + $0x1c] sm:$0xf] %vm2091, %v2066
  %2100 = vst.msk [vmem:[%s5 + $0x20] sm:$0xf] %vm2091, %v2067
  %2101 = vst.msk [vmem:[%s5 + $0x24] sm:$0xf] %vm2091, %v2068
  %2102 = vst.msk [vmem:[%s5 + $0x28] sm:$0xf] %vm2091, %v2069
  %2103 = vst.msk [vmem:[%s5 + $0x2c] sm:$0xf] %vm2091, %v2070
  %2104 = vst.msk [vmem:[%s5 + $0x30] sm:$0xf] %vm2091, %v2071
  %2105 = vst.msk [vmem:[%s5 + $0x34] sm:$0xf] %vm2091, %v2072
  %2106 = vst.msk [vmem:[%s5 + $0x38] sm:$0xf] %vm2091, %v2073
  %2107 = vst.msk [vmem:[%s5 + $0x3c] sm:$0xf] %vm2091, %v2074
  // Predicated region
  $region22: #{actor_forward.2} parent=0 // pred_check
    _
  $region23: #{actor_forward.2} parent=0 // pred_check_branch
    %2109 = sbr.rel (0) target = $region25
  $region24: #{actor_forward.2} parent=0 // pred_region
    _
  $region25: #{actor_forward.2} parent=0 // pred_fallthru
    _
  // Predicated region
  $region26: #{actor_forward.2} parent=0 // pred_check
    _
  $region27: #{actor_forward.2} parent=0 // pred_check_branch
    %2111 = sbr.rel (0) target = $region29
  $region28: #{actor_forward.2} parent=0 // pred_region
    _
  $region29: #{actor_forward.2} parent=0 // pred_fallthru
    _

</llo_original>
